<compile_context>
chip_gen: v7x
topology: tpu7x:2x2x1
jax: 0.10.0
libtpu: 0.0.40
codegen_flags: <defaults>
</compile_context>

<pallas_src>
import jax
import jax.numpy as jnp
from jax import lax
from jax.experimental import pallas as pl
from jax.experimental.pallas import tpu as pltpu


# ----------------------------- Pallas kernel -------------------------------
def lstm_pool_kernel(x_ref, mask_ref, wih_ref, whh_f_ref, whh_b_ref, b_ref,
                     out_ref, xp_scr):
    """Whole (small) problem resident in VMEM; grid-less single invocation.

    x_ref    : (S*N, H)    inputs, time-major rows (row t*N+n = x[t, n, :])
    mask_ref : (S, N)      attention mask (float, padded rows are 0)
    wih_ref  : (H, 8H)     [wih_fwd | wih_bwd] input->gate weights (transposed)
    whh_*    : (H, 4H)     hidden->gate weights per direction (transposed)
    b_ref    : (1, 8H)     [b_fwd | b_bwd], each = b_ih + b_hh, gate order i,f,g,o
    out_ref  : (S, 2H)     masked-mean pooled bi-LSTM output
    xp_scr   : (S*N, 8H)   scratch for the hoisted input projections
    """
    SN, H8 = xp_scr.shape
    S = out_ref.shape[0]
    H = H8 // 8
    N = SN // S
    H4 = 4 * H

    # --- Hoisted, batched input projection for both directions (one big MXU op,
    #     off the serial recurrence path). Biases folded in here.
    xp_scr[...] = (jnp.dot(x_ref[...], wih_ref[...],
                           preferred_element_type=jnp.float32) + b_ref[...])

    # Hoist recurrent weights out of the loop.
    whh_f = whh_f_ref[...]
    whh_b = whh_b_ref[...]

    def cell(xp_t, h, c, whh):
        # Only the recurrent matmul remains on the per-step critical path.
        gates = xp_t + jnp.dot(h, whh, preferred_element_type=jnp.float32)  # (N, 4H)
        sg = jax.nn.sigmoid(gates)            # one EUP pass over all four gates
        g = jnp.tanh(gates[:, 2 * H:3 * H])   # g gate uses tanh instead
        c_new = sg[:, H:2 * H] * c + sg[:, 0:H] * g
        h_new = sg[:, 3 * H:4 * H] * jnp.tanh(c_new)
        return h_new, c_new

    def body(t, carry):
        hf, cf, hb, cb = carry
        tb = S - 1 - t                              # backward direction time index
        rf = pl.multiple_of(t * N, N)
        rb = pl.multiple_of(tb * N, N)

        xp_f = xp_scr[pl.ds(rf, N), 0:H4]           # (N, 4H) forward gates precompute
        xp_b = xp_scr[pl.ds(rb, N), H4:2 * H4]      # (N, 4H) backward gates precompute

        hf, cf = cell(xp_f, hf, cf, whh_f)
        hb, cb = cell(xp_b, hb, cb, whh_b)

        # Online masked pooling: (1, N) @ (N, H) -> (1, H); off the serial path.
        m_f = mask_ref[pl.ds(t, 1), :]
        m_b = mask_ref[pl.ds(tb, 1), :]
        out_ref[pl.ds(t, 1), 0:H] = jnp.dot(m_f, hf,
                                            preferred_element_type=jnp.float32)
        out_ref[pl.ds(tb, 1), H:2 * H] = jnp.dot(m_b, hb,
                                                 preferred_element_type=jnp.float32)
        return hf, cf, hb, cb

    z = jnp.zeros((N, H), jnp.float32)
    # Fully unrolled: small static trip count, lets the scheduler interleave the
    # forward/backward cells and overlap MXU with EUP work across iterations.
    lax.fori_loop(0, S, body, (z, z, z, z), unroll=True)

    # Exact mask normalization (matches clamp(min=1e-9) semantics).
    sum_mask = jnp.maximum(jnp.sum(mask_ref[...], axis=1, keepdims=True), 1e-9)
    out_ref[...] = out_ref[...] / sum_mask


# ------------------------------- Wrapper ------------------------------------
def lstm_pooling(last_hidden_state, attention_mask, params):
    S, N, H = last_hidden_state.shape

    # Pad the pooled ("batch") dim to the 8-sublane granularity; padded rows get
    # mask = 0 so they contribute nothing to the pooled sums or sum_mask.
    Np = ((N + 7) // 8) * 8
    x = last_hidden_state.astype(jnp.float32)
    m = attention_mask.astype(jnp.float32)
    if Np != N:
        x = jnp.pad(x, ((0, 0), (0, Np - N), (0, 0)))
        m = jnp.pad(m, ((0, 0), (0, Np - N)))
    x2d = x.reshape(S * Np, H)

    wih_cat = jnp.concatenate([params["wih_f"], params["wih_b"]], axis=1)  # (H, 8H)
    b_cat = jnp.concatenate([params["b_f"], params["b_b"]], axis=1)        # (1, 8H)

    return pl.pallas_call(
        lstm_pool_kernel,
        out_shape=jax.ShapeDtypeStruct((S, 2 * H), jnp.float32),
        in_specs=[pl.BlockSpec(memory_space=pltpu.MemorySpace.VMEM)] * 6,
        out_specs=pl.BlockSpec(memory_space=pltpu.MemorySpace.VMEM),
        scratch_shapes=[pltpu.VMEM((S * Np, 8 * H), jnp.float32)],
        compiler_params=pltpu.CompilerParams(vmem_limit_bytes=32 * 1024 * 1024),
    )(x2d, m, wih_cat, params["whh_f"], params["whh_b"], b_cat)


# ------------------------- Deterministic parameters --------------------------
def init_params(key, hidden_size):
    H = hidden_size
    bound = 1.0 / jnp.sqrt(jnp.float32(H))
    ks = jax.random.split(key, 12)

    def u(k, shape):
        return jax.random.uniform(k, shape, jnp.float32, -bound, bound)

    # Stored transposed w.r.t. PyTorch ((4H, H) -> (H, 4H)) so the kernel can
    # right-multiply; gate order i, f, g, o.  Bias = b_ih + b_hh.
    return dict(
        wih_f=u(ks[0], (H, 4 * H)),
        whh_f=u(ks[1], (H, 4 * H)),
        b_f=u(ks[2], (1, 4 * H)) + u(ks[3], (1, 4 * H)),
        wih_b=u(ks[4], (H, 4 * H)),
        whh_b=u(ks[5], (H, 4 * H)),
        b_b=u(ks[6], (1, 4 * H)) + u(ks[7], (1, 4 * H)),
    )


# ------------------------- Pure-JAX reference (check) ------------------------
def lstm_pooling_ref(x, mask, params):
    S, N, H = x.shape

    def cell(carry, x_t, wih, whh, b):
        h, c = carry
        gates = x_t @ wih + h @ whh + b
        i = jax.nn.sigmoid(gates[:, 0:H])
        f = jax.nn.sigmoid(gates[:, H:2 * H])
        g = jnp.tanh(gates[:, 2 * H:3 * H])
        o = jax.nn.sigmoid(gates[:, 3 * H:4 * H])
        c = f * c + i * g
        h = o * jnp.tanh(c)
        return (h, c), h

    z = jnp.zeros((N, H), jnp.float32)
    _, hf = lax.scan(
        lambda cr, xt: cell(cr, xt, params["wih_f"], params["whh_f"], params["b_f"]),
        (z, z), x)
    _, hb_rev = lax.scan(
        lambda cr, xt: cell(cr, xt, params["wih_b"], params["whh_b"], params["b_b"]),
        (z, z), x[::-1])
    hb = hb_rev[::-1]
    out = jnp.concatenate([hf, hb], axis=-1)                  # (S, N, 2H)
    m = mask.astype(jnp.float32)[..., None]
    sm = jnp.maximum(mask.sum(axis=1, keepdims=True), 1e-9)
    return (out * m).sum(axis=1) / sm


if __name__ == "__main__":
    H = 32   # hidden_size
    S = 8    # dim 0 (LSTM time axis)
    N = 4    # dim 1 (LSTM batch axis, pooled over)

    key = jax.random.PRNGKey(0)
    k_x, k_m, k_p = jax.random.split(key, 3)

    last_hidden_state = jax.random.normal(k_x, (S, N, H), jnp.float32)
    attention_mask = (jax.random.uniform(k_m, (S, N)) > 0.3).astype(jnp.float32)
    params = init_params(k_p, H)

    pooled = lstm_pooling(last_hidden_state, attention_mask, params)
    pooled = jax.block_until_ready(pooled)

    expected = lstm_pooling_ref(last_hidden_state, attention_mask, params)
    assert pooled.shape == (S, 2 * H)
    assert jnp.allclose(pooled, expected, rtol=1e-4, atol=1e-5), "mismatch vs reference"

    print("KERNEL_OK")
</pallas_src>

<mosaic_0001>
module attributes {stable_mosaic.version = 11 : i64} {
  func.func @lstm_pool_kernel(%arg0: memref<64x32xf32, #tpu.memory_space<vmem>>, %arg1: memref<8x8xf32, #tpu.memory_space<vmem>>, %arg2: memref<32x256xf32, #tpu.memory_space<vmem>>, %arg3: memref<32x128xf32, #tpu.memory_space<vmem>>, %arg4: memref<32x128xf32, #tpu.memory_space<vmem>>, %arg5: memref<1x256xf32, #tpu.memory_space<vmem>>, %arg6: memref<8x64xf32, #tpu.memory_space<vmem>>, %arg7: memref<64x256xf32, #tpu.memory_space<vmem>>) attributes {dimension_semantics = [], scalar_prefetch = 0 : i64, scratch_operands = 1 : i64, tpu.core_type = #tpu.core_type<tc>} {
    %c0 = arith.constant 0 : index
    %c0_0 = arith.constant 0 : index
    %0 = vector.load %arg0[%c0, %c0_0] : memref<64x32xf32, #tpu.memory_space<vmem>>, vector<64x32xf32>
    %c0_1 = arith.constant 0 : index
    %c0_2 = arith.constant 0 : index
    %1 = vector.load %arg2[%c0_1, %c0_2] : memref<32x256xf32, #tpu.memory_space<vmem>>, vector<32x256xf32>
    %cst = arith.constant dense<0.000000e+00> : vector<64x256xf32>
    %2 = tpu.matmul %0, %1, %cst {dimension_numbers = #tpu.dot_dimension_numbers<[1], [0], [0], [1], [0, 0, 1, 1], [], []>} : vector<64x32xf32>, vector<32x256xf32>, vector<64x256xf32> -> vector<64x256xf32>
    %c0_3 = arith.constant 0 : index
    %c0_4 = arith.constant 0 : index
    %3 = vector.load %arg5[%c0_3, %c0_4] : memref<1x256xf32, #tpu.memory_space<vmem>>, vector<1x256xf32>
    %4 = vector.broadcast %3 : vector<1x256xf32> to vector<64x256xf32>
    %5 = arith.addf %2, %4 : vector<64x256xf32>
    %c0_5 = arith.constant 0 : index
    %c0_6 = arith.constant 0 : index
    %6 = vector.load %arg7[%c0_5, %c0_6] : memref<64x256xf32, #tpu.memory_space<vmem>>, vector<64x256xf32>
    tpu.vector_store %arg7[%c0_5, %c0_6], %5 {strides = array<i32>} : memref<64x256xf32, #tpu.memory_space<vmem>>, vector<64x256xf32>,
    %c0_7 = arith.constant 0 : index
    %c0_8 = arith.constant 0 : index
    %7 = vector.load %arg3[%c0_7, %c0_8] : memref<32x128xf32, #tpu.memory_space<vmem>>, vector<32x128xf32>
    %c0_9 = arith.constant 0 : index
    %c0_10 = arith.constant 0 : index
    %8 = vector.load %arg4[%c0_9, %c0_10] : memref<32x128xf32, #tpu.memory_space<vmem>>, vector<32x128xf32>
    %cst_11 = arith.constant 0.000000e+00 : f32
    %9 = vector.broadcast %cst_11 : f32 to vector<8x32xf32>
    %c0_i32 = arith.constant 0 : i32
    %c7_i32 = arith.constant 7 : i32
    %10 = arith.subi %c7_i32, %c0_i32 : i32
    %c8_i32 = arith.constant 8 : i32
    %11 = arith.muli %c0_i32, %c8_i32 : i32
    %12 = tpu.assume_multiple %11, 8 : i32
    %c8_i32_12 = arith.constant 8 : i32
    %13 = arith.muli %10, %c8_i32_12 : i32
    %14 = tpu.assume_multiple %13, 8 : i32
    %15 = arith.index_cast %12 : i32 to index
    %c0_13 = arith.constant 0 : index
    %16 = vector.load %arg7[%15, %c0_13] : memref<64x256xf32, #tpu.memory_space<vmem>>, vector<8x128xf32>
    %17 = arith.index_cast %14 : i32 to index
    %c128 = arith.constant 128 : index
    %18 = vector.load %arg7[%17, %c128] : memref<64x256xf32, #tpu.memory_space<vmem>>, vector<8x128xf32>
    %cst_14 = arith.constant dense<0.000000e+00> : vector<8x128xf32>
    %19 = tpu.matmul %9, %7, %cst_14 {dimension_numbers = #tpu.dot_dimension_numbers<[1], [0], [0], [1], [0, 0, 1, 1], [], []>} : vector<8x32xf32>, vector<32x128xf32>, vector<8x128xf32> -> vector<8x128xf32>
    %20 = arith.addf %16, %19 : vector<8x128xf32>
    %21 = arith.negf %20 : vector<8x128xf32>
    %22 = math.exp %21 : vector<8x128xf32>
    %cst_15 = arith.constant 1.000000e+00 : f32
    %23 = vector.broadcast %cst_15 : f32 to vector<8x128xf32>
    %24 = arith.addf %23, %22 : vector<8x128xf32>
    %25 = arith.divf %23, %24 : vector<8x128xf32>
    %26 = vector.extract_strided_slice %20 {offsets = [0, 64], sizes = [8, 32], strides = [1, 1]} : vector<8x128xf32> to vector<8x32xf32>
    %27 = math.tanh %26 : vector<8x32xf32>
    %28 = vector.extract_strided_slice %25 {offsets = [0, 32], sizes = [8, 32], strides = [1, 1]} : vector<8x128xf32> to vector<8x32xf32>
    %29 = arith.mulf %28, %9 : vector<8x32xf32>
    %30 = vector.extract_strided_slice %25 {offsets = [0, 0], sizes = [8, 32], strides = [1, 1]} : vector<8x128xf32> to vector<8x32xf32>
    %31 = arith.mulf %30, %27 : vector<8x32xf32>
    %32 = arith.addf %29, %31 : vector<8x32xf32>
    %33 = vector.extract_strided_slice %25 {offsets = [0, 96], sizes = [8, 32], strides = [1, 1]} : vector<8x128xf32> to vector<8x32xf32>
    %34 = math.tanh %32 : vector<8x32xf32>
    %35 = arith.mulf %33, %34 : vector<8x32xf32>
    %cst_16 = arith.constant dense<0.000000e+00> : vector<8x128xf32>
    %36 = tpu.matmul %9, %8, %cst_16 {dimension_numbers = #tpu.dot_dimension_numbers<[1], [0], [0], [1], [0, 0, 1, 1], [], []>} : vector<8x32xf32>, vector<32x128xf32>, vector<8x128xf32> -> vector<8x128xf32>
    %37 = arith.addf %18, %36 : vector<8x128xf32>
    %38 = arith.negf %37 : vector<8x128xf32>
    %39 = math.exp %38 : vector<8x128xf32>
    %cst_17 = arith.constant 1.000000e+00 : f32
    %40 = vector.broadcast %cst_17 : f32 to vector<8x128xf32>
    %41 = arith.addf %40, %39 : vector<8x128xf32>
    %42 = arith.divf %40, %41 : vector<8x128xf32>
    %43 = vector.extract_strided_slice %37 {offsets = [0, 64], sizes = [8, 32], strides = [1, 1]} : vector<8x128xf32> to vector<8x32xf32>
    %44 = math.tanh %43 : vector<8x32xf32>
    %45 = vector.extract_strided_slice %42 {offsets = [0, 32], sizes = [8, 32], strides = [1, 1]} : vector<8x128xf32> to vector<8x32xf32>
    %46 = arith.mulf %45, %9 : vector<8x32xf32>
    %47 = vector.extract_strided_slice %42 {offsets = [0, 0], sizes = [8, 32], strides = [1, 1]} : vector<8x128xf32> to vector<8x32xf32>
    %48 = arith.mulf %47, %44 : vector<8x32xf32>
    %49 = arith.addf %46, %48 : vector<8x32xf32>
    %50 = vector.extract_strided_slice %42 {offsets = [0, 96], sizes = [8, 32], strides = [1, 1]} : vector<8x128xf32> to vector<8x32xf32>
    %51 = math.tanh %49 : vector<8x32xf32>
    %52 = arith.mulf %50, %51 : vector<8x32xf32>
    %53 = arith.index_cast %c0_i32 : i32 to index
    %c0_18 = arith.constant 0 : index
    %54 = vector.load %arg1[%53, %c0_18] : memref<8x8xf32, #tpu.memory_space<vmem>>, vector<1x8xf32>
    %55 = arith.index_cast %10 : i32 to index
    %c0_19 = arith.constant 0 : index
    %56 = vector.load %arg1[%55, %c0_19] : memref<8x8xf32, #tpu.memory_space<vmem>>, vector<1x8xf32>
    %cst_20 = arith.constant dense<0.000000e+00> : vector<1x32xf32>
    %57 = tpu.matmul %54, %35, %cst_20 {dimension_numbers = #tpu.dot_dimension_numbers<[1], [0], [0], [1], [0, 0, 1, 1], [], []>} : vector<1x8xf32>, vector<8x32xf32>, vector<1x32xf32> -> vector<1x32xf32>
    %58 = arith.index_cast %c0_i32 : i32 to index
    %c0_21 = arith.constant 0 : index
    %59 = vector.load %arg6[%58, %c0_21] : memref<8x64xf32, #tpu.memory_space<vmem>>, vector<1x32xf32>
    tpu.vector_store %arg6[%58, %c0_21], %57 {strides = array<i32>} : memref<8x64xf32, #tpu.memory_space<vmem>>, vector<1x32xf32>,
    %cst_22 = arith.constant dense<0.000000e+00> : vector<1x32xf32>
    %60 = tpu.matmul %56, %52, %cst_22 {dimension_numbers = #tpu.dot_dimension_numbers<[1], [0], [0], [1], [0, 0, 1, 1], [], []>} : vector<1x8xf32>, vector<8x32xf32>, vector<1x32xf32> -> vector<1x32xf32>
    %61 = arith.index_cast %10 : i32 to index
    %c32 = arith.constant 32 : index
    %62 = vector.load %arg6[%61, %c32] : memref<8x64xf32, #tpu.memory_space<vmem>>, vector<1x32xf32>
    tpu.vector_store %arg6[%61, %c32], %60 {strides = array<i32>} : memref<8x64xf32, #tpu.memory_space<vmem>>, vector<1x32xf32>,
    %c1_i32 = arith.constant 1 : i32
    %c7_i32_23 = arith.constant 7 : i32
    %63 = arith.subi %c7_i32_23, %c1_i32 : i32
    %c8_i32_24 = arith.constant 8 : i32
    %64 = arith.muli %c1_i32, %c8_i32_24 : i32
    %65 = tpu.assume_multiple %64, 8 : i32
    %c8_i32_25 = arith.constant 8 : i32
    %66 = arith.muli %63, %c8_i32_25 : i32
    %67 = tpu.assume_multiple %66, 8 : i32
    %68 = arith.index_cast %65 : i32 to index
    %c0_26 = arith.constant 0 : index
    %69 = vector.load %arg7[%68, %c0_26] : memref<64x256xf32, #tpu.memory_space<vmem>>, vector<8x128xf32>
    %70 = arith.index_cast %67 : i32 to index
    %c128_27 = arith.constant 128 : index
    %71 = vector.load %arg7[%70, %c128_27] : memref<64x256xf32, #tpu.memory_space<vmem>>, vector<8x128xf32>
    %cst_28 = arith.constant dense<0.000000e+00> : vector<8x128xf32>
    %72 = tpu.matmul %35, %7, %cst_28 {dimension_numbers = #tpu.dot_dimension_numbers<[1], [0], [0], [1], [0, 0, 1, 1], [], []>} : vector<8x32xf32>, vector<32x128xf32>, vector<8x128xf32> -> vector<8x128xf32>
    %73 = arith.addf %69, %72 : vector<8x128xf32>
    %74 = arith.negf %73 : vector<8x128xf32>
    %75 = math.exp %74 : vector<8x128xf32>
    %cst_29 = arith.constant 1.000000e+00 : f32
    %76 = vector.broadcast %cst_29 : f32 to vector<8x128xf32>
    %77 = arith.addf %76, %75 : vector<8x128xf32>
    %78 = arith.divf %76, %77 : vector<8x128xf32>
    %79 = vector.extract_strided_slice %73 {offsets = [0, 64], sizes = [8, 32], strides = [1, 1]} : vector<8x128xf32> to vector<8x32xf32>
    %80 = math.tanh %79 : vector<8x32xf32>
    %81 = vector.extract_strided_slice %78 {offsets = [0, 32], sizes = [8, 32], strides = [1, 1]} : vector<8x128xf32> to vector<8x32xf32>
    %82 = arith.mulf %81, %32 : vector<8x32xf32>
    %83 = vector.extract_strided_slice %78 {offsets = [0, 0], sizes = [8, 32], strides = [1, 1]} : vector<8x128xf32> to vector<8x32xf32>
    %84 = arith.mulf %83, %80 : vector<8x32xf32>
    %85 = arith.addf %82, %84 : vector<8x32xf32>
    %86 = vector.extract_strided_slice %78 {offsets = [0, 96], sizes = [8, 32], strides = [1, 1]} : vector<8x128xf32> to vector<8x32xf32>
    %87 = math.tanh %85 : vector<8x32xf32>
    %88 = arith.mulf %86, %87 : vector<8x32xf32>
    %cst_30 = arith.constant dense<0.000000e+00> : vector<8x128xf32>
    %89 = tpu.matmul %52, %8, %cst_30 {dimension_numbers = #tpu.dot_dimension_numbers<[1], [0], [0], [1], [0, 0, 1, 1], [], []>} : vector<8x32xf32>, vector<32x128xf32>, vector<8x128xf32> -> vector<8x128xf32>
    %90 = arith.addf %71, %89 : vector<8x128xf32>
    %91 = arith.negf %90 : vector<8x128xf32>
    %92 = math.exp %91 : vector<8x128xf32>
    %cst_31 = arith.constant 1.000000e+00 : f32
    %93 = vector.broadcast %cst_31 : f32 to vector<8x128xf32>
    %94 = arith.addf %93, %92 : vector<8x128xf32>
    %95 = arith.divf %93, %94 : vector<8x128xf32>
    %96 = vector.extract_strided_slice %90 {offsets = [0, 64], sizes = [8, 32], strides = [1, 1]} : vector<8x128xf32> to vector<8x32xf32>
    %97 = math.tanh %96 : vector<8x32xf32>
    %98 = vector.extract_strided_slice %95 {offsets = [0, 32], sizes = [8, 32], strides = [1, 1]} : vector<8x128xf32> to vector<8x32xf32>
    %99 = arith.mulf %98, %49 : vector<8x32xf32>
    %100 = vector.extract_strided_slice %95 {offsets = [0, 0], sizes = [8, 32], strides = [1, 1]} : vector<8x128xf32> to vector<8x32xf32>
    %101 = arith.mulf %100, %97 : vector<8x32xf32>
    %102 = arith.addf %99, %101 : vector<8x32xf32>
    %103 = vector.extract_strided_slice %95 {offsets = [0, 96], sizes = [8, 32], strides = [1, 1]} : vector<8x128xf32> to vector<8x32xf32>
    %104 = math.tanh %102 : vector<8x32xf32>
    %105 = arith.mulf %103, %104 : vector<8x32xf32>
    %106 = arith.index_cast %c1_i32 : i32 to index
    %c0_32 = arith.constant 0 : index
    %107 = vector.load %arg1[%106, %c0_32] : memref<8x8xf32, #tpu.memory_space<vmem>>, vector<1x8xf32>
    %108 = arith.index_cast %63 : i32 to index
    %c0_33 = arith.constant 0 : index
    %109 = vector.load %arg1[%108, %c0_33] : memref<8x8xf32, #tpu.memory_space<vmem>>, vector<1x8xf32>
    %cst_34 = arith.constant dense<0.000000e+00> : vector<1x32xf32>
    %110 = tpu.matmul %107, %88, %cst_34 {dimension_numbers = #tpu.dot_dimension_numbers<[1], [0], [0], [1], [0, 0, 1, 1], [], []>} : vector<1x8xf32>, vector<8x32xf32>, vector<1x32xf32> -> vector<1x32xf32>
    %111 = arith.index_cast %c1_i32 : i32 to index
    %c0_35 = arith.constant 0 : index
    %112 = vector.load %arg6[%111, %c0_35] : memref<8x64xf32, #tpu.memory_space<vmem>>, vector<1x32xf32>
    tpu.vector_store %arg6[%111, %c0_35], %110 {strides = array<i32>} : memref<8x64xf32, #tpu.memory_space<vmem>>, vector<1x32xf32>,
    %cst_36 = arith.constant dense<0.000000e+00> : vector<1x32xf32>
    %113 = tpu.matmul %109, %105, %cst_36 {dimension_numbers = #tpu.dot_dimension_numbers<[1], [0], [0], [1], [0, 0, 1, 1], [], []>} : vector<1x8xf32>, vector<8x32xf32>, vector<1x32xf32> -> vector<1x32xf32>
    %114 = arith.index_cast %63 : i32 to index
    %c32_37 = arith.constant 32 : index
    %115 = vector.load %arg6[%114, %c32_37] : memref<8x64xf32, #tpu.memory_space<vmem>>, vector<1x32xf32>
    tpu.vector_store %arg6[%114, %c32_37], %113 {strides = array<i32>} : memref<8x64xf32, #tpu.memory_space<vmem>>, vector<1x32xf32>,
    %c2_i32 = arith.constant 2 : i32
    %c7_i32_38 = arith.constant 7 : i32
    %116 = arith.subi %c7_i32_38, %c2_i32 : i32
    %c8_i32_39 = arith.constant 8 : i32
    %117 = arith.muli %c2_i32, %c8_i32_39 : i32
    %118 = tpu.assume_multiple %117, 8 : i32
    %c8_i32_40 = arith.constant 8 : i32
    %119 = arith.muli %116, %c8_i32_40 : i32
    %120 = tpu.assume_multiple %119, 8 : i32
    %121 = arith.index_cast %118 : i32 to index
    %c0_41 = arith.constant 0 : index
    %122 = vector.load %arg7[%121, %c0_41] : memref<64x256xf32, #tpu.memory_space<vmem>>, vector<8x128xf32>
    %123 = arith.index_cast %120 : i32 to index
    %c128_42 = arith.constant 128 : index
    %124 = vector.load %arg7[%123, %c128_42] : memref<64x256xf32, #tpu.memory_space<vmem>>, vector<8x128xf32>
    %cst_43 = arith.constant dense<0.000000e+00> : vector<8x128xf32>
    %125 = tpu.matmul %88, %7, %cst_43 {dimension_numbers = #tpu.dot_dimension_numbers<[1], [0], [0], [1], [0, 0, 1, 1], [], []>} : vector<8x32xf32>, vector<32x128xf32>, vector<8x128xf32> -> vector<8x128xf32>
    %126 = arith.addf %122, %125 : vector<8x128xf32>
    %127 = arith.negf %126 : vector<8x128xf32>
    %128 = math.exp %127 : vector<8x128xf32>
    %cst_44 = arith.constant 1.000000e+00 : f32
    %129 = vector.broadcast %cst_44 : f32 to vector<8x128xf32>
    %130 = arith.addf %129, %128 : vector<8x128xf32>
    %131 = arith.divf %129, %130 : vector<8x128xf32>
    %132 = vector.extract_strided_slice %126 {offsets = [0, 64], sizes = [8, 32], strides = [1, 1]} : vector<8x128xf32> to vector<8x32xf32>
    %133 = math.tanh %132 : vector<8x32xf32>
    %134 = vector.extract_strided_slice %131 {offsets = [0, 32], sizes = [8, 32], strides = [1, 1]} : vector<8x128xf32> to vector<8x32xf32>
    %135 = arith.mulf %134, %85 : vector<8x32xf32>
    %136 = vector.extract_strided_slice %131 {offsets = [0, 0], sizes = [8, 32], strides = [1, 1]} : vector<8x128xf32> to vector<8x32xf32>
    %137 = arith.mulf %136, %133 : vector<8x32xf32>
    %138 = arith.addf %135, %137 : vector<8x32xf32>
    %139 = vector.extract_strided_slice %131 {offsets = [0, 96], sizes = [8, 32], strides = [1, 1]} : vector<8x128xf32> to vector<8x32xf32>
    %140 = math.tanh %138 : vector<8x32xf32>
    %141 = arith.mulf %139, %140 : vector<8x32xf32>
    %cst_45 = arith.constant dense<0.000000e+00> : vector<8x128xf32>
    %142 = tpu.matmul %105, %8, %cst_45 {dimension_numbers = #tpu.dot_dimension_numbers<[1], [0], [0], [1], [0, 0, 1, 1], [], []>} : vector<8x32xf32>, vector<32x128xf32>, vector<8x128xf32> -> vector<8x128xf32>
    %143 = arith.addf %124, %142 : vector<8x128xf32>
    %144 = arith.negf %143 : vector<8x128xf32>
    %145 = math.exp %144 : vector<8x128xf32>
    %cst_46 = arith.constant 1.000000e+00 : f32
    %146 = vector.broadcast %cst_46 : f32 to vector<8x128xf32>
    %147 = arith.addf %146, %145 : vector<8x128xf32>
    %148 = arith.divf %146, %147 : vector<8x128xf32>
    %149 = vector.extract_strided_slice %143 {offsets = [0, 64], sizes = [8, 32], strides = [1, 1]} : vector<8x128xf32> to vector<8x32xf32>
    %150 = math.tanh %149 : vector<8x32xf32>
    %151 = vector.extract_strided_slice %148 {offsets = [0, 32], sizes = [8, 32], strides = [1, 1]} : vector<8x128xf32> to vector<8x32xf32>
    %152 = arith.mulf %151, %102 : vector<8x32xf32>
    %153 = vector.extract_strided_slice %148 {offsets = [0, 0], sizes = [8, 32], strides = [1, 1]} : vector<8x128xf32> to vector<8x32xf32>
    %154 = arith.mulf %153, %150 : vector<8x32xf32>
    %155 = arith.addf %152, %154 : vector<8x32xf32>
    %156 = vector.extract_strided_slice %148 {offsets = [0, 96], sizes = [8, 32], strides = [1, 1]} : vector<8x128xf32> to vector<8x32xf32>
    %157 = math.tanh %155 : vector<8x32xf32>
    %158 = arith.mulf %156, %157 : vector<8x32xf32>
    %159 = arith.index_cast %c2_i32 : i32 to index
    %c0_47 = arith.constant 0 : index
    %160 = vector.load %arg1[%159, %c0_47] : memref<8x8xf32, #tpu.memory_space<vmem>>, vector<1x8xf32>
    %161 = arith.index_cast %116 : i32 to index
    %c0_48 = arith.constant 0 : index
    %162 = vector.load %arg1[%161, %c0_48] : memref<8x8xf32, #tpu.memory_space<vmem>>, vector<1x8xf32>
    %cst_49 = arith.constant dense<0.000000e+00> : vector<1x32xf32>
    %163 = tpu.matmul %160, %141, %cst_49 {dimension_numbers = #tpu.dot_dimension_numbers<[1], [0], [0], [1], [0, 0, 1, 1], [], []>} : vector<1x8xf32>, vector<8x32xf32>, vector<1x32xf32> -> vector<1x32xf32>
    %164 = arith.index_cast %c2_i32 : i32 to index
    %c0_50 = arith.constant 0 : index
    %165 = vector.load %arg6[%164, %c0_50] : memref<8x64xf32, #tpu.memory_space<vmem>>, vector<1x32xf32>
    tpu.vector_store %arg6[%164, %c0_50], %163 {strides = array<i32>} : memref<8x64xf32, #tpu.memory_space<vmem>>, vector<1x32xf32>,
    %cst_51 = arith.constant dense<0.000000e+00> : vector<1x32xf32>
    %166 = tpu.matmul %162, %158, %cst_51 {dimension_numbers = #tpu.dot_dimension_numbers<[1], [0], [0], [1], [0, 0, 1, 1], [], []>} : vector<1x8xf32>, vector<8x32xf32>, vector<1x32xf32> -> vector<1x32xf32>
    %167 = arith.index_cast %116 : i32 to index
    %c32_52 = arith.constant 32 : index
    %168 = vector.load %arg6[%167, %c32_52] : memref<8x64xf32, #tpu.memory_space<vmem>>, vector<1x32xf32>
    tpu.vector_store %arg6[%167, %c32_52], %166 {strides = array<i32>} : memref<8x64xf32, #tpu.memory_space<vmem>>, vector<1x32xf32>,
    %c3_i32 = arith.constant 3 : i32
    %c7_i32_53 = arith.constant 7 : i32
    %169 = arith.subi %c7_i32_53, %c3_i32 : i32
    %c8_i32_54 = arith.constant 8 : i32
    %170 = arith.muli %c3_i32, %c8_i32_54 : i32
    %171 = tpu.assume_multiple %170, 8 : i32
    %c8_i32_55 = arith.constant 8 : i32
    %172 = arith.muli %169, %c8_i32_55 : i32
    %173 = tpu.assume_multiple %172, 8 : i32
    %174 = arith.index_cast %171 : i32 to index
    %c0_56 = arith.constant 0 : index
    %175 = vector.load %arg7[%174, %c0_56] : memref<64x256xf32, #tpu.memory_space<vmem>>, vector<8x128xf32>
    %176 = arith.index_cast %173 : i32 to index
    %c128_57 = arith.constant 128 : index
    %177 = vector.load %arg7[%176, %c128_57] : memref<64x256xf32, #tpu.memory_space<vmem>>, vector<8x128xf32>
    %cst_58 = arith.constant dense<0.000000e+00> : vector<8x128xf32>
    %178 = tpu.matmul %141, %7, %cst_58 {dimension_numbers = #tpu.dot_dimension_numbers<[1], [0], [0], [1], [0, 0, 1, 1], [], []>} : vector<8x32xf32>, vector<32x128xf32>, vector<8x128xf32> -> vector<8x128xf32>
    %179 = arith.addf %175, %178 : vector<8x128xf32>
    %180 = arith.negf %179 : vector<8x128xf32>
    %181 = math.exp %180 : vector<8x128xf32>
    %cst_59 = arith.constant 1.000000e+00 : f32
    %182 = vector.broadcast %cst_59 : f32 to vector<8x128xf32>
    %183 = arith.addf %182, %181 : vector<8x128xf32>
    %184 = arith.divf %182, %183 : vector<8x128xf32>
    %185 = vector.extract_strided_slice %179 {offsets = [0, 64], sizes = [8, 32], strides = [1, 1]} : vector<8x128xf32> to vector<8x32xf32>
    %186 = math.tanh %185 : vector<8x32xf32>
    %187 = vector.extract_strided_slice %184 {offsets = [0, 32], sizes = [8, 32], strides = [1, 1]} : vector<8x128xf32> to vector<8x32xf32>
    %188 = arith.mulf %187, %138 : vector<8x32xf32>
    %189 = vector.extract_strided_slice %184 {offsets = [0, 0], sizes = [8, 32], strides = [1, 1]} : vector<8x128xf32> to vector<8x32xf32>
    %190 = arith.mulf %189, %186 : vector<8x32xf32>
    %191 = arith.addf %188, %190 : vector<8x32xf32>
    %192 = vector.extract_strided_slice %184 {offsets = [0, 96], sizes = [8, 32], strides = [1, 1]} : vector<8x128xf32> to vector<8x32xf32>
    %193 = math.tanh %191 : vector<8x32xf32>
    %194 = arith.mulf %192, %193 : vector<8x32xf32>
    %cst_60 = arith.constant dense<0.000000e+00> : vector<8x128xf32>
    %195 = tpu.matmul %158, %8, %cst_60 {dimension_numbers = #tpu.dot_dimension_numbers<[1], [0], [0], [1], [0, 0, 1, 1], [], []>} : vector<8x32xf32>, vector<32x128xf32>, vector<8x128xf32> -> vector<8x128xf32>
    %196 = arith.addf %177, %195 : vector<8x128xf32>
    %197 = arith.negf %196 : vector<8x128xf32>
    %198 = math.exp %197 : vector<8x128xf32>
    %cst_61 = arith.constant 1.000000e+00 : f32
    %199 = vector.broadcast %cst_61 : f32 to vector<8x128xf32>
    %200 = arith.addf %199, %198 : vector<8x128xf32>
    %201 = arith.divf %199, %200 : vector<8x128xf32>
    %202 = vector.extract_strided_slice %196 {offsets = [0, 64], sizes = [8, 32], strides = [1, 1]} : vector<8x128xf32> to vector<8x32xf32>
    %203 = math.tanh %202 : vector<8x32xf32>
    %204 = vector.extract_strided_slice %201 {offsets = [0, 32], sizes = [8, 32], strides = [1, 1]} : vector<8x128xf32> to vector<8x32xf32>
    %205 = arith.mulf %204, %155 : vector<8x32xf32>
    %206 = vector.extract_strided_slice %201 {offsets = [0, 0], sizes = [8, 32], strides = [1, 1]} : vector<8x128xf32> to vector<8x32xf32>
    %207 = arith.mulf %206, %203 : vector<8x32xf32>
    %208 = arith.addf %205, %207 : vector<8x32xf32>
    %209 = vector.extract_strided_slice %201 {offsets = [0, 96], sizes = [8, 32], strides = [1, 1]} : vector<8x128xf32> to vector<8x32xf32>
    %210 = math.tanh %208 : vector<8x32xf32>
    %211 = arith.mulf %209, %210 : vector<8x32xf32>
    %212 = arith.index_cast %c3_i32 : i32 to index
    %c0_62 = arith.constant 0 : index
    %213 = vector.load %arg1[%212, %c0_62] : memref<8x8xf32, #tpu.memory_space<vmem>>, vector<1x8xf32>
    %214 = arith.index_cast %169 : i32 to index
    %c0_63 = arith.constant 0 : index
    %215 = vector.load %arg1[%214, %c0_63] : memref<8x8xf32, #tpu.memory_space<vmem>>, vector<1x8xf32>
    %cst_64 = arith.constant dense<0.000000e+00> : vector<1x32xf32>
    %216 = tpu.matmul %213, %194, %cst_64 {dimension_numbers = #tpu.dot_dimension_numbers<[1], [0], [0], [1], [0, 0, 1, 1], [], []>} : vector<1x8xf32>, vector<8x32xf32>, vector<1x32xf32> -> vector<1x32xf32>
    %217 = arith.index_cast %c3_i32 : i32 to index
    %c0_65 = arith.constant 0 : index
    %218 = vector.load %arg6[%217, %c0_65] : memref<8x64xf32, #tpu.memory_space<vmem>>, vector<1x32xf32>
    tpu.vector_store %arg6[%217, %c0_65], %216 {strides = array<i32>} : memref<8x64xf32, #tpu.memory_space<vmem>>, vector<1x32xf32>,
    %cst_66 = arith.constant dense<0.000000e+00> : vector<1x32xf32>
    %219 = tpu.matmul %215, %211, %cst_66 {dimension_numbers = #tpu.dot_dimension_numbers<[1], [0], [0], [1], [0, 0, 1, 1], [], []>} : vector<1x8xf32>, vector<8x32xf32>, vector<1x32xf32> -> vector<1x32xf32>
    %220 = arith.index_cast %169 : i32 to index
    %c32_67 = arith.constant 32 : index
    %221 = vector.load %arg6[%220, %c32_67] : memref<8x64xf32, #tpu.memory_space<vmem>>, vector<1x32xf32>
    tpu.vector_store %arg6[%220, %c32_67], %219 {strides = array<i32>} : memref<8x64xf32, #tpu.memory_space<vmem>>, vector<1x32xf32>,
    %c4_i32 = arith.constant 4 : i32
    %c7_i32_68 = arith.constant 7 : i32
    %222 = arith.subi %c7_i32_68, %c4_i32 : i32
    %c8_i32_69 = arith.constant 8 : i32
    %223 = arith.muli %c4_i32, %c8_i32_69 : i32
    %224 = tpu.assume_multiple %223, 8 : i32
    %c8_i32_70 = arith.constant 8 : i32
    %225 = arith.muli %222, %c8_i32_70 : i32
    %226 = tpu.assume_multiple %225, 8 : i32
    %227 = arith.index_cast %224 : i32 to index
    %c0_71 = arith.constant 0 : index
    %228 = vector.load %arg7[%227, %c0_71] : memref<64x256xf32, #tpu.memory_space<vmem>>, vector<8x128xf32>
    %229 = arith.index_cast %226 : i32 to index
    %c128_72 = arith.constant 128 : index
    %230 = vector.load %arg7[%229, %c128_72] : memref<64x256xf32, #tpu.memory_space<vmem>>, vector<8x128xf32>
    %cst_73 = arith.constant dense<0.000000e+00> : vector<8x128xf32>
    %231 = tpu.matmul %194, %7, %cst_73 {dimension_numbers = #tpu.dot_dimension_numbers<[1], [0], [0], [1], [0, 0, 1, 1], [], []>} : vector<8x32xf32>, vector<32x128xf32>, vector<8x128xf32> -> vector<8x128xf32>
    %232 = arith.addf %228, %231 : vector<8x128xf32>
    %233 = arith.negf %232 : vector<8x128xf32>
    %234 = math.exp %233 : vector<8x128xf32>
    %cst_74 = arith.constant 1.000000e+00 : f32
    %235 = vector.broadcast %cst_74 : f32 to vector<8x128xf32>
    %236 = arith.addf %235, %234 : vector<8x128xf32>
    %237 = arith.divf %235, %236 : vector<8x128xf32>
    %238 = vector.extract_strided_slice %232 {offsets = [0, 64], sizes = [8, 32], strides = [1, 1]} : vector<8x128xf32> to vector<8x32xf32>
    %239 = math.tanh %238 : vector<8x32xf32>
    %240 = vector.extract_strided_slice %237 {offsets = [0, 32], sizes = [8, 32], strides = [1, 1]} : vector<8x128xf32> to vector<8x32xf32>
    %241 = arith.mulf %240, %191 : vector<8x32xf32>
    %242 = vector.extract_strided_slice %237 {offsets = [0, 0], sizes = [8, 32], strides = [1, 1]} : vector<8x128xf32> to vector<8x32xf32>
    %243 = arith.mulf %242, %239 : vector<8x32xf32>
    %244 = arith.addf %241, %243 : vector<8x32xf32>
    %245 = vector.extract_strided_slice %237 {offsets = [0, 96], sizes = [8, 32], strides = [1, 1]} : vector<8x128xf32> to vector<8x32xf32>
    %246 = math.tanh %244 : vector<8x32xf32>
    %247 = arith.mulf %245, %246 : vector<8x32xf32>
    %cst_75 = arith.constant dense<0.000000e+00> : vector<8x128xf32>
    %248 = tpu.matmul %211, %8, %cst_75 {dimension_numbers = #tpu.dot_dimension_numbers<[1], [0], [0], [1], [0, 0, 1, 1], [], []>} : vector<8x32xf32>, vector<32x128xf32>, vector<8x128xf32> -> vector<8x128xf32>
    %249 = arith.addf %230, %248 : vector<8x128xf32>
    %250 = arith.negf %249 : vector<8x128xf32>
    %251 = math.exp %250 : vector<8x128xf32>
    %cst_76 = arith.constant 1.000000e+00 : f32
    %252 = vector.broadcast %cst_76 : f32 to vector<8x128xf32>
    %253 = arith.addf %252, %251 : vector<8x128xf32>
    %254 = arith.divf %252, %253 : vector<8x128xf32>
    %255 = vector.extract_strided_slice %249 {offsets = [0, 64], sizes = [8, 32], strides = [1, 1]} : vector<8x128xf32> to vector<8x32xf32>
    %256 = math.tanh %255 : vector<8x32xf32>
    %257 = vector.extract_strided_slice %254 {offsets = [0, 32], sizes = [8, 32], strides = [1, 1]} : vector<8x128xf32> to vector<8x32xf32>
    %258 = arith.mulf %257, %208 : vector<8x32xf32>
    %259 = vector.extract_strided_slice %254 {offsets = [0, 0], sizes = [8, 32], strides = [1, 1]} : vector<8x128xf32> to vector<8x32xf32>
    %260 = arith.mulf %259, %256 : vector<8x32xf32>
    %261 = arith.addf %258, %260 : vector<8x32xf32>
    %262 = vector.extract_strided_slice %254 {offsets = [0, 96], sizes = [8, 32], strides = [1, 1]} : vector<8x128xf32> to vector<8x32xf32>
    %263 = math.tanh %261 : vector<8x32xf32>
    %264 = arith.mulf %262, %263 : vector<8x32xf32>
    %265 = arith.index_cast %c4_i32 : i32 to index
    %c0_77 = arith.constant 0 : index
    %266 = vector.load %arg1[%265, %c0_77] : memref<8x8xf32, #tpu.memory_space<vmem>>, vector<1x8xf32>
    %267 = arith.index_cast %222 : i32 to index
    %c0_78 = arith.constant 0 : index
    %268 = vector.load %arg1[%267, %c0_78] : memref<8x8xf32, #tpu.memory_space<vmem>>, vector<1x8xf32>
    %cst_79 = arith.constant dense<0.000000e+00> : vector<1x32xf32>
    %269 = tpu.matmul %266, %247, %cst_79 {dimension_numbers = #tpu.dot_dimension_numbers<[1], [0], [0], [1], [0, 0, 1, 1], [], []>} : vector<1x8xf32>, vector<8x32xf32>, vector<1x32xf32> -> vector<1x32xf32>
    %270 = arith.index_cast %c4_i32 : i32 to index
    %c0_80 = arith.constant 0 : index
    %271 = vector.load %arg6[%270, %c0_80] : memref<8x64xf32, #tpu.memory_space<vmem>>, vector<1x32xf32>
    tpu.vector_store %arg6[%270, %c0_80], %269 {strides = array<i32>} : memref<8x64xf32, #tpu.memory_space<vmem>>, vector<1x32xf32>,
    %cst_81 = arith.constant dense<0.000000e+00> : vector<1x32xf32>
    %272 = tpu.matmul %268, %264, %cst_81 {dimension_numbers = #tpu.dot_dimension_numbers<[1], [0], [0], [1], [0, 0, 1, 1], [], []>} : vector<1x8xf32>, vector<8x32xf32>, vector<1x32xf32> -> vector<1x32xf32>
    %273 = arith.index_cast %222 : i32 to index
    %c32_82 = arith.constant 32 : index
    %274 = vector.load %arg6[%273, %c32_82] : memref<8x64xf32, #tpu.memory_space<vmem>>, vector<1x32xf32>
    tpu.vector_store %arg6[%273, %c32_82], %272 {strides = array<i32>} : memref<8x64xf32, #tpu.memory_space<vmem>>, vector<1x32xf32>,
    %c5_i32 = arith.constant 5 : i32
    %c7_i32_83 = arith.constant 7 : i32
    %275 = arith.subi %c7_i32_83, %c5_i32 : i32
    %c8_i32_84 = arith.constant 8 : i32
    %276 = arith.muli %c5_i32, %c8_i32_84 : i32
    %277 = tpu.assume_multiple %276, 8 : i32
    %c8_i32_85 = arith.constant 8 : i32
    %278 = arith.muli %275, %c8_i32_85 : i32
    %279 = tpu.assume_multiple %278, 8 : i32
    %280 = arith.index_cast %277 : i32 to index
    %c0_86 = arith.constant 0 : index
    %281 = vector.load %arg7[%280, %c0_86] : memref<64x256xf32, #tpu.memory_space<vmem>>, vector<8x128xf32>
    %282 = arith.index_cast %279 : i32 to index
    %c128_87 = arith.constant 128 : index
    %283 = vector.load %arg7[%282, %c128_87] : memref<64x256xf32, #tpu.memory_space<vmem>>, vector<8x128xf32>
    %cst_88 = arith.constant dense<0.000000e+00> : vector<8x128xf32>
    %284 = tpu.matmul %247, %7, %cst_88 {dimension_numbers = #tpu.dot_dimension_numbers<[1], [0], [0], [1], [0, 0, 1, 1], [], []>} : vector<8x32xf32>, vector<32x128xf32>, vector<8x128xf32> -> vector<8x128xf32>
    %285 = arith.addf %281, %284 : vector<8x128xf32>
    %286 = arith.negf %285 : vector<8x128xf32>
    %287 = math.exp %286 : vector<8x128xf32>
    %cst_89 = arith.constant 1.000000e+00 : f32
    %288 = vector.broadcast %cst_89 : f32 to vector<8x128xf32>
    %289 = arith.addf %288, %287 : vector<8x128xf32>
    %290 = arith.divf %288, %289 : vector<8x128xf32>
    %291 = vector.extract_strided_slice %285 {offsets = [0, 64], sizes = [8, 32], strides = [1, 1]} : vector<8x128xf32> to vector<8x32xf32>
    %292 = math.tanh %291 : vector<8x32xf32>
    %293 = vector.extract_strided_slice %290 {offsets = [0, 32], sizes = [8, 32], strides = [1, 1]} : vector<8x128xf32> to vector<8x32xf32>
    %294 = arith.mulf %293, %244 : vector<8x32xf32>
    %295 = vector.extract_strided_slice %290 {offsets = [0, 0], sizes = [8, 32], strides = [1, 1]} : vector<8x128xf32> to vector<8x32xf32>
    %296 = arith.mulf %295, %292 : vector<8x32xf32>
    %297 = arith.addf %294, %296 : vector<8x32xf32>
    %298 = vector.extract_strided_slice %290 {offsets = [0, 96], sizes = [8, 32], strides = [1, 1]} : vector<8x128xf32> to vector<8x32xf32>
    %299 = math.tanh %297 : vector<8x32xf32>
    %300 = arith.mulf %298, %299 : vector<8x32xf32>
    %cst_90 = arith.constant dense<0.000000e+00> : vector<8x128xf32>
    %301 = tpu.matmul %264, %8, %cst_90 {dimension_numbers = #tpu.dot_dimension_numbers<[1], [0], [0], [1], [0, 0, 1, 1], [], []>} : vector<8x32xf32>, vector<32x128xf32>, vector<8x128xf32> -> vector<8x128xf32>
    %302 = arith.addf %283, %301 : vector<8x128xf32>
    %303 = arith.negf %302 : vector<8x128xf32>
    %304 = math.exp %303 : vector<8x128xf32>
    %cst_91 = arith.constant 1.000000e+00 : f32
    %305 = vector.broadcast %cst_91 : f32 to vector<8x128xf32>
    %306 = arith.addf %305, %304 : vector<8x128xf32>
    %307 = arith.divf %305, %306 : vector<8x128xf32>
    %308 = vector.extract_strided_slice %302 {offsets = [0, 64], sizes = [8, 32], strides = [1, 1]} : vector<8x128xf32> to vector<8x32xf32>
    %309 = math.tanh %308 : vector<8x32xf32>
    %310 = vector.extract_strided_slice %307 {offsets = [0, 32], sizes = [8, 32], strides = [1, 1]} : vector<8x128xf32> to vector<8x32xf32>
    %311 = arith.mulf %310, %261 : vector<8x32xf32>
    %312 = vector.extract_strided_slice %307 {offsets = [0, 0], sizes = [8, 32], strides = [1, 1]} : vector<8x128xf32> to vector<8x32xf32>
    %313 = arith.mulf %312, %309 : vector<8x32xf32>
    %314 = arith.addf %311, %313 : vector<8x32xf32>
    %315 = vector.extract_strided_slice %307 {offsets = [0, 96], sizes = [8, 32], strides = [1, 1]} : vector<8x128xf32> to vector<8x32xf32>
    %316 = math.tanh %314 : vector<8x32xf32>
    %317 = arith.mulf %315, %316 : vector<8x32xf32>
    %318 = arith.index_cast %c5_i32 : i32 to index
    %c0_92 = arith.constant 0 : index
    %319 = vector.load %arg1[%318, %c0_92] : memref<8x8xf32, #tpu.memory_space<vmem>>, vector<1x8xf32>
    %320 = arith.index_cast %275 : i32 to index
    %c0_93 = arith.constant 0 : index
    %321 = vector.load %arg1[%320, %c0_93] : memref<8x8xf32, #tpu.memory_space<vmem>>, vector<1x8xf32>
    %cst_94 = arith.constant dense<0.000000e+00> : vector<1x32xf32>
    %322 = tpu.matmul %319, %300, %cst_94 {dimension_numbers = #tpu.dot_dimension_numbers<[1], [0], [0], [1], [0, 0, 1, 1], [], []>} : vector<1x8xf32>, vector<8x32xf32>, vector<1x32xf32> -> vector<1x32xf32>
    %323 = arith.index_cast %c5_i32 : i32 to index
    %c0_95 = arith.constant 0 : index
    %324 = vector.load %arg6[%323, %c0_95] : memref<8x64xf32, #tpu.memory_space<vmem>>, vector<1x32xf32>
    tpu.vector_store %arg6[%323, %c0_95], %322 {strides = array<i32>} : memref<8x64xf32, #tpu.memory_space<vmem>>, vector<1x32xf32>,
    %cst_96 = arith.constant dense<0.000000e+00> : vector<1x32xf32>
    %325 = tpu.matmul %321, %317, %cst_96 {dimension_numbers = #tpu.dot_dimension_numbers<[1], [0], [0], [1], [0, 0, 1, 1], [], []>} : vector<1x8xf32>, vector<8x32xf32>, vector<1x32xf32> -> vector<1x32xf32>
    %326 = arith.index_cast %275 : i32 to index
    %c32_97 = arith.constant 32 : index
    %327 = vector.load %arg6[%326, %c32_97] : memref<8x64xf32, #tpu.memory_space<vmem>>, vector<1x32xf32>
    tpu.vector_store %arg6[%326, %c32_97], %325 {strides = array<i32>} : memref<8x64xf32, #tpu.memory_space<vmem>>, vector<1x32xf32>,
    %c6_i32 = arith.constant 6 : i32
    %c7_i32_98 = arith.constant 7 : i32
    %328 = arith.subi %c7_i32_98, %c6_i32 : i32
    %c8_i32_99 = arith.constant 8 : i32
    %329 = arith.muli %c6_i32, %c8_i32_99 : i32
    %330 = tpu.assume_multiple %329, 8 : i32
    %c8_i32_100 = arith.constant 8 : i32
    %331 = arith.muli %328, %c8_i32_100 : i32
    %332 = tpu.assume_multiple %331, 8 : i32
    %333 = arith.index_cast %330 : i32 to index
    %c0_101 = arith.constant 0 : index
    %334 = vector.load %arg7[%333, %c0_101] : memref<64x256xf32, #tpu.memory_space<vmem>>, vector<8x128xf32>
    %335 = arith.index_cast %332 : i32 to index
    %c128_102 = arith.constant 128 : index
    %336 = vector.load %arg7[%335, %c128_102] : memref<64x256xf32, #tpu.memory_space<vmem>>, vector<8x128xf32>
    %cst_103 = arith.constant dense<0.000000e+00> : vector<8x128xf32>
    %337 = tpu.matmul %300, %7, %cst_103 {dimension_numbers = #tpu.dot_dimension_numbers<[1], [0], [0], [1], [0, 0, 1, 1], [], []>} : vector<8x32xf32>, vector<32x128xf32>, vector<8x128xf32> -> vector<8x128xf32>
    %338 = arith.addf %334, %337 : vector<8x128xf32>
    %339 = arith.negf %338 : vector<8x128xf32>
    %340 = math.exp %339 : vector<8x128xf32>
    %cst_104 = arith.constant 1.000000e+00 : f32
    %341 = vector.broadcast %cst_104 : f32 to vector<8x128xf32>
    %342 = arith.addf %341, %340 : vector<8x128xf32>
    %343 = arith.divf %341, %342 : vector<8x128xf32>
    %344 = vector.extract_strided_slice %338 {offsets = [0, 64], sizes = [8, 32], strides = [1, 1]} : vector<8x128xf32> to vector<8x32xf32>
    %345 = math.tanh %344 : vector<8x32xf32>
    %346 = vector.extract_strided_slice %343 {offsets = [0, 32], sizes = [8, 32], strides = [1, 1]} : vector<8x128xf32> to vector<8x32xf32>
    %347 = arith.mulf %346, %297 : vector<8x32xf32>
    %348 = vector.extract_strided_slice %343 {offsets = [0, 0], sizes = [8, 32], strides = [1, 1]} : vector<8x128xf32> to vector<8x32xf32>
    %349 = arith.mulf %348, %345 : vector<8x32xf32>
    %350 = arith.addf %347, %349 : vector<8x32xf32>
    %351 = vector.extract_strided_slice %343 {offsets = [0, 96], sizes = [8, 32], strides = [1, 1]} : vector<8x128xf32> to vector<8x32xf32>
    %352 = math.tanh %350 : vector<8x32xf32>
    %353 = arith.mulf %351, %352 : vector<8x32xf32>
    %cst_105 = arith.constant dense<0.000000e+00> : vector<8x128xf32>
    %354 = tpu.matmul %317, %8, %cst_105 {dimension_numbers = #tpu.dot_dimension_numbers<[1], [0], [0], [1], [0, 0, 1, 1], [], []>} : vector<8x32xf32>, vector<32x128xf32>, vector<8x128xf32> -> vector<8x128xf32>
    %355 = arith.addf %336, %354 : vector<8x128xf32>
    %356 = arith.negf %355 : vector<8x128xf32>
    %357 = math.exp %356 : vector<8x128xf32>
    %cst_106 = arith.constant 1.000000e+00 : f32
    %358 = vector.broadcast %cst_106 : f32 to vector<8x128xf32>
    %359 = arith.addf %358, %357 : vector<8x128xf32>
    %360 = arith.divf %358, %359 : vector<8x128xf32>
    %361 = vector.extract_strided_slice %355 {offsets = [0, 64], sizes = [8, 32], strides = [1, 1]} : vector<8x128xf32> to vector<8x32xf32>
    %362 = math.tanh %361 : vector<8x32xf32>
    %363 = vector.extract_strided_slice %360 {offsets = [0, 32], sizes = [8, 32], strides = [1, 1]} : vector<8x128xf32> to vector<8x32xf32>
    %364 = arith.mulf %363, %314 : vector<8x32xf32>
    %365 = vector.extract_strided_slice %360 {offsets = [0, 0], sizes = [8, 32], strides = [1, 1]} : vector<8x128xf32> to vector<8x32xf32>
    %366 = arith.mulf %365, %362 : vector<8x32xf32>
    %367 = arith.addf %364, %366 : vector<8x32xf32>
    %368 = vector.extract_strided_slice %360 {offsets = [0, 96], sizes = [8, 32], strides = [1, 1]} : vector<8x128xf32> to vector<8x32xf32>
    %369 = math.tanh %367 : vector<8x32xf32>
    %370 = arith.mulf %368, %369 : vector<8x32xf32>
    %371 = arith.index_cast %c6_i32 : i32 to index
    %c0_107 = arith.constant 0 : index
    %372 = vector.load %arg1[%371, %c0_107] : memref<8x8xf32, #tpu.memory_space<vmem>>, vector<1x8xf32>
    %373 = arith.index_cast %328 : i32 to index
    %c0_108 = arith.constant 0 : index
    %374 = vector.load %arg1[%373, %c0_108] : memref<8x8xf32, #tpu.memory_space<vmem>>, vector<1x8xf32>
    %cst_109 = arith.constant dense<0.000000e+00> : vector<1x32xf32>
    %375 = tpu.matmul %372, %353, %cst_109 {dimension_numbers = #tpu.dot_dimension_numbers<[1], [0], [0], [1], [0, 0, 1, 1], [], []>} : vector<1x8xf32>, vector<8x32xf32>, vector<1x32xf32> -> vector<1x32xf32>
    %376 = arith.index_cast %c6_i32 : i32 to index
    %c0_110 = arith.constant 0 : index
    %377 = vector.load %arg6[%376, %c0_110] : memref<8x64xf32, #tpu.memory_space<vmem>>, vector<1x32xf32>
    tpu.vector_store %arg6[%376, %c0_110], %375 {strides = array<i32>} : memref<8x64xf32, #tpu.memory_space<vmem>>, vector<1x32xf32>,
    %cst_111 = arith.constant dense<0.000000e+00> : vector<1x32xf32>
    %378 = tpu.matmul %374, %370, %cst_111 {dimension_numbers = #tpu.dot_dimension_numbers<[1], [0], [0], [1], [0, 0, 1, 1], [], []>} : vector<1x8xf32>, vector<8x32xf32>, vector<1x32xf32> -> vector<1x32xf32>
    %379 = arith.index_cast %328 : i32 to index
    %c32_112 = arith.constant 32 : index
    %380 = vector.load %arg6[%379, %c32_112] : memref<8x64xf32, #tpu.memory_space<vmem>>, vector<1x32xf32>
    tpu.vector_store %arg6[%379, %c32_112], %378 {strides = array<i32>} : memref<8x64xf32, #tpu.memory_space<vmem>>, vector<1x32xf32>,
    %c7_i32_113 = arith.constant 7 : i32
    %c7_i32_114 = arith.constant 7 : i32
    %381 = arith.subi %c7_i32_114, %c7_i32_113 : i32
    %c8_i32_115 = arith.constant 8 : i32
    %382 = arith.muli %c7_i32_113, %c8_i32_115 : i32
    %383 = tpu.assume_multiple %382, 8 : i32
    %c8_i32_116 = arith.constant 8 : i32
    %384 = arith.muli %381, %c8_i32_116 : i32
    %385 = tpu.assume_multiple %384, 8 : i32
    %386 = arith.index_cast %383 : i32 to index
    %c0_117 = arith.constant 0 : index
    %387 = vector.load %arg7[%386, %c0_117] : memref<64x256xf32, #tpu.memory_space<vmem>>, vector<8x128xf32>
    %388 = arith.index_cast %385 : i32 to index
    %c128_118 = arith.constant 128 : index
    %389 = vector.load %arg7[%388, %c128_118] : memref<64x256xf32, #tpu.memory_space<vmem>>, vector<8x128xf32>
    %cst_119 = arith.constant dense<0.000000e+00> : vector<8x128xf32>
    %390 = tpu.matmul %353, %7, %cst_119 {dimension_numbers = #tpu.dot_dimension_numbers<[1], [0], [0], [1], [0, 0, 1, 1], [], []>} : vector<8x32xf32>, vector<32x128xf32>, vector<8x128xf32> -> vector<8x128xf32>
    %391 = arith.addf %387, %390 : vector<8x128xf32>
    %392 = arith.negf %391 : vector<8x128xf32>
    %393 = math.exp %392 : vector<8x128xf32>
    %cst_120 = arith.constant 1.000000e+00 : f32
    %394 = vector.broadcast %cst_120 : f32 to vector<8x128xf32>
    %395 = arith.addf %394, %393 : vector<8x128xf32>
    %396 = arith.divf %394, %395 : vector<8x128xf32>
    %397 = vector.extract_strided_slice %391 {offsets = [0, 64], sizes = [8, 32], strides = [1, 1]} : vector<8x128xf32> to vector<8x32xf32>
    %398 = math.tanh %397 : vector<8x32xf32>
    %399 = vector.extract_strided_slice %396 {offsets = [0, 32], sizes = [8, 32], strides = [1, 1]} : vector<8x128xf32> to vector<8x32xf32>
    %400 = arith.mulf %399, %350 : vector<8x32xf32>
    %401 = vector.extract_strided_slice %396 {offsets = [0, 0], sizes = [8, 32], strides = [1, 1]} : vector<8x128xf32> to vector<8x32xf32>
    %402 = arith.mulf %401, %398 : vector<8x32xf32>
    %403 = arith.addf %400, %402 : vector<8x32xf32>
    %404 = vector.extract_strided_slice %396 {offsets = [0, 96], sizes = [8, 32], strides = [1, 1]} : vector<8x128xf32> to vector<8x32xf32>
    %405 = math.tanh %403 : vector<8x32xf32>
    %406 = arith.mulf %404, %405 : vector<8x32xf32>
    %cst_121 = arith.constant dense<0.000000e+00> : vector<8x128xf32>
    %407 = tpu.matmul %370, %8, %cst_121 {dimension_numbers = #tpu.dot_dimension_numbers<[1], [0], [0], [1], [0, 0, 1, 1], [], []>} : vector<8x32xf32>, vector<32x128xf32>, vector<8x128xf32> -> vector<8x128xf32>
    %408 = arith.addf %389, %407 : vector<8x128xf32>
    %409 = arith.negf %408 : vector<8x128xf32>
    %410 = math.exp %409 : vector<8x128xf32>
    %cst_122 = arith.constant 1.000000e+00 : f32
    %411 = vector.broadcast %cst_122 : f32 to vector<8x128xf32>
    %412 = arith.addf %411, %410 : vector<8x128xf32>
    %413 = arith.divf %411, %412 : vector<8x128xf32>
    %414 = vector.extract_strided_slice %408 {offsets = [0, 64], sizes = [8, 32], strides = [1, 1]} : vector<8x128xf32> to vector<8x32xf32>
    %415 = math.tanh %414 : vector<8x32xf32>
    %416 = vector.extract_strided_slice %413 {offsets = [0, 32], sizes = [8, 32], strides = [1, 1]} : vector<8x128xf32> to vector<8x32xf32>
    %417 = arith.mulf %416, %367 : vector<8x32xf32>
    %418 = vector.extract_strided_slice %413 {offsets = [0, 0], sizes = [8, 32], strides = [1, 1]} : vector<8x128xf32> to vector<8x32xf32>
    %419 = arith.mulf %418, %415 : vector<8x32xf32>
    %420 = arith.addf %417, %419 : vector<8x32xf32>
    %421 = vector.extract_strided_slice %413 {offsets = [0, 96], sizes = [8, 32], strides = [1, 1]} : vector<8x128xf32> to vector<8x32xf32>
    %422 = math.tanh %420 : vector<8x32xf32>
    %423 = arith.mulf %421, %422 : vector<8x32xf32>
    %424 = arith.index_cast %c7_i32_113 : i32 to index
    %c0_123 = arith.constant 0 : index
    %425 = vector.load %arg1[%424, %c0_123] : memref<8x8xf32, #tpu.memory_space<vmem>>, vector<1x8xf32>
    %426 = arith.index_cast %381 : i32 to index
    %c0_124 = arith.constant 0 : index
    %427 = vector.load %arg1[%426, %c0_124] : memref<8x8xf32, #tpu.memory_space<vmem>>, vector<1x8xf32>
    %cst_125 = arith.constant dense<0.000000e+00> : vector<1x32xf32>
    %428 = tpu.matmul %425, %406, %cst_125 {dimension_numbers = #tpu.dot_dimension_numbers<[1], [0], [0], [1], [0, 0, 1, 1], [], []>} : vector<1x8xf32>, vector<8x32xf32>, vector<1x32xf32> -> vector<1x32xf32>
    %429 = arith.index_cast %c7_i32_113 : i32 to index
    %c0_126 = arith.constant 0 : index
    %430 = vector.load %arg6[%429, %c0_126] : memref<8x64xf32, #tpu.memory_space<vmem>>, vector<1x32xf32>
    tpu.vector_store %arg6[%429, %c0_126], %428 {strides = array<i32>} : memref<8x64xf32, #tpu.memory_space<vmem>>, vector<1x32xf32>,
    %cst_127 = arith.constant dense<0.000000e+00> : vector<1x32xf32>
    %431 = tpu.matmul %427, %423, %cst_127 {dimension_numbers = #tpu.dot_dimension_numbers<[1], [0], [0], [1], [0, 0, 1, 1], [], []>} : vector<1x8xf32>, vector<8x32xf32>, vector<1x32xf32> -> vector<1x32xf32>
    %432 = arith.index_cast %381 : i32 to index
    %c32_128 = arith.constant 32 : index
    %433 = vector.load %arg6[%432, %c32_128] : memref<8x64xf32, #tpu.memory_space<vmem>>, vector<1x32xf32>
    tpu.vector_store %arg6[%432, %c32_128], %431 {strides = array<i32>} : memref<8x64xf32, #tpu.memory_space<vmem>>, vector<1x32xf32>,
    %c8_i32_129 = arith.constant 8 : i32
    %c0_130 = arith.constant 0 : index
    %c0_131 = arith.constant 0 : index
    %434 = vector.load %arg1[%c0_130, %c0_131] : memref<8x8xf32, #tpu.memory_space<vmem>>, vector<8x8xf32>
    %cst_132 = arith.constant dense<0.000000e+00> : vector<8xf32>
    %435 = vector.multi_reduction <add>, %434, %cst_132 [1] : vector<8x8xf32> to vector<8xf32>
    %436 = vector.shape_cast %435 : vector<8xf32> to vector<8x1xf32>
    %cst_133 = arith.constant 9.99999971E-10 : f32
    %437 = vector.broadcast %cst_133 : f32 to vector<8x1xf32>
    %438 = arith.maximumf %436, %437 : vector<8x1xf32>
    %c0_134 = arith.constant 0 : index
    %c0_135 = arith.constant 0 : index
    %439 = vector.load %arg6[%c0_134, %c0_135] : memref<8x64xf32, #tpu.memory_space<vmem>>, vector<8x64xf32>
    %440 = vector.broadcast %438 : vector<8x1xf32> to vector<8x64xf32>
    %441 = arith.divf %439, %440 : vector<8x64xf32>
    %c0_136 = arith.constant 0 : index
    %c0_137 = arith.constant 0 : index
    %442 = vector.load %arg6[%c0_136, %c0_137] : memref<8x64xf32, #tpu.memory_space<vmem>>, vector<8x64xf32>
    tpu.vector_store %arg6[%c0_136, %c0_137], %441 {strides = array<i32>} : memref<8x64xf32, #tpu.memory_space<vmem>>, vector<8x64xf32>,
    return
  }
}

</mosaic_0001>

<llo_original>
// kernel: tpu_custom_call.1
$region0: #{tpu_custom_call.1}
  #allocation0 [shape = 'u32[]', space=smem, size = 0x4, offset = 0x4, fixed_abs, tag = 'smem constant byte address 0x4 - core index']
  #allocation1 [shape = 'u32[144,128]{1,0:T(1,128)}', space=vmem, size = 0x12000, scoped, tag = 'internal scratch']
  #allocation2 [shape = 'f32[64,256]{1,0:T(8,128)}', space=vmem, size = 0x10000, scoped, tag = 'scratch operand']
  %s0 = inlined_call_operand.vmem [shape: f32[64,32], index: 0, kind: input, shape index: {}]
  %s1 = inlined_call_operand.hbm [shape: f32[8,8], index: 1, kind: input, shape index: {}]
  %s2 = inlined_call_operand.vmem [shape: f32[32,256], index: 2, kind: input, shape index: {}]
  %s3 = inlined_call_operand.vmem [shape: f32[32,128], index: 3, kind: input, shape index: {}]
  %s4 = inlined_call_operand.hbm [shape: f32[32,128], index: 4, kind: input, shape index: {}]
  %s5 = inlined_call_operand.vmem [shape: f32[1,256], index: 5, kind: input, shape index: {}]
  %s6 = inlined_call_operand.hbm [shape: f32[8,64], index: 6, kind: output, shape index: {}]
  %s7 = sld [smem:[#allocation0]]
  $region42: #{tpu_custom_call.1} parent=0
    _
  %s9 = ssub.s32 1, %s7
  %s10 = scalar_select 0, %s9, %s7
  $region1: #{tpu_custom_call.1} parent=0
    #allocation3 [shape = 'u8[4096]{0}', space=vmem, size = 0x1000, scoped, tag = 'input window, operand 1, single buffered']
    #allocation4 [shape = 's32[1]{0}', space=sflag, size = 0x4, scoped, tag = 'scoped memory for tpu_custom_call.1']
    #allocation5 [shape = 's32[1]{0}', space=sflag, size = 0x4, scoped, tag = 'scoped memory for tpu_custom_call.1']
    #allocation6 [shape = 'u8[16384]{0}', space=vmem, size = 0x4000, scoped, tag = 'input window, operand 4, single buffered']
    #allocation7 [shape = 's32[1]{0}', space=sflag, size = 0x4, scoped, tag = 'scoped memory for tpu_custom_call.1']
    #allocation8 [shape = 'u8[4096]{0}', space=vmem, size = 0x1000, scoped, tag = 'output window, operand 0, single buffered']
    %11 = vsyncpa [#allocation4], 0
    %12 = vsyncpa [#allocation7], 0
    %13 = vsyncpa [#allocation5], 0
    // Predicated region
    $region2: #{tpu_custom_call.1} parent=1 // pred_check
      _
    $region3: #{tpu_custom_call.1} parent=1 // pred_check_branch
      %15 = sbr.rel (0) target = $region5
    $region4: #{tpu_custom_call.1} parent=1 // pred_region
      _
    $region5: #{tpu_custom_call.1} parent=1 // pred_fallthru
      _
    // Predicated region
    $region6: #{tpu_custom_call.1} parent=1 // pred_check
      _
    $region7: #{tpu_custom_call.1} parent=1 // pred_check_branch
      %17 = sbr.rel (0) target = $region9
    $region8: #{tpu_custom_call.1} parent=1 // pred_region
      %s19 = ssub.s32 128, 128
      %20 = vsyncadd [#allocation4], %s19
      %s22 = sshll.u32 [#allocation3], 4
      %s23 = int_to_ptr.vmem [resolvable:$true] %s22
      %25 = dma.hbm_to_vmem [thread:$0]  %s1, 128, %s23, [#allocation4]
    $region9: #{tpu_custom_call.1} parent=1 // pred_fallthru
      _
    // Predicated region
    $region10: #{tpu_custom_call.1} parent=1 // pred_check
      _
    $region11: #{tpu_custom_call.1} parent=1 // pred_check_branch
      %27 = sbr.rel (0) target = $region13
    $region12: #{tpu_custom_call.1} parent=1 // pred_region
      _
    $region13: #{tpu_custom_call.1} parent=1 // pred_fallthru
      _
    // Predicated region
    $region14: #{tpu_custom_call.1} parent=1 // pred_check
      _
    $region15: #{tpu_custom_call.1} parent=1 // pred_check_branch
      %29 = sbr.rel (0) target = $region17
    $region16: #{tpu_custom_call.1} parent=1 // pred_region
      _
    $region17: #{tpu_custom_call.1} parent=1 // pred_fallthru
      _
    // Predicated region
    $region18: #{tpu_custom_call.1} parent=1 // pred_check
      _
    $region19: #{tpu_custom_call.1} parent=1 // pred_check_branch
      %31 = sbr.rel (0) target = $region21
    $region20: #{tpu_custom_call.1} parent=1 // pred_region
      %s33 = ssub.s32 512, 512
      %34 = vsyncadd [#allocation7], %s33
      %s35 = sshll.u32 [#allocation6], 4
      %s36 = int_to_ptr.vmem [resolvable:$true] %s35
      %41 = dma.hbm_to_vmem [thread:$0]  %s4, 512, %s36, [#allocation7], 128, 128, 8
    $region21: #{tpu_custom_call.1} parent=1 // pred_fallthru
      _
    // Predicated region
    $region22: #{tpu_custom_call.1} parent=1 // pred_check
      _
    $region23: #{tpu_custom_call.1} parent=1 // pred_check_branch
      %43 = sbr.rel (0) target = $region25
    $region24: #{tpu_custom_call.1} parent=1 // pred_region
      _
    $region25: #{tpu_custom_call.1} parent=1 // pred_fallthru
      _
    // Predicated region
    $region26: #{tpu_custom_call.1} parent=1 // pred_check
      _
    $region27: #{tpu_custom_call.1} parent=1 // pred_check_branch
      %45 = sbr.rel (0) target = $region29
    $region28: #{tpu_custom_call.1} parent=1 // pred_region
      %46 = dma.done [#allocation4], 128
    $region29: #{tpu_custom_call.1} parent=1 // pred_fallthru
      _
    // Predicated region
    $region30: #{tpu_custom_call.1} parent=1 // pred_check
      _
    $region31: #{tpu_custom_call.1} parent=1 // pred_check_branch
      %48 = sbr.rel (0) target = $region33
    $region32: #{tpu_custom_call.1} parent=1 // pred_region
      %49 = dma.done [#allocation7], 512
    $region33: #{tpu_custom_call.1} parent=1 // pred_fallthru
      _
    %v50 = vld [vmem:[%s0] sm:$0xff]
    %v51 = vld [vmem:[%s0 + $0x8] sm:$0xff]
    %v52 = vld [vmem:[%s0 + $0x10] sm:$0xff]
    %v53 = vld [vmem:[%s0 + $0x18] sm:$0xff]
    %v54 = vld [vmem:[%s0 + $0x20] sm:$0xff]
    %v55 = vld [vmem:[%s0 + $0x28] sm:$0xff]
    %v56 = vld [vmem:[%s0 + $0x30] sm:$0xff]
    %v57 = vld [vmem:[%s0 + $0x38] sm:$0xff]
    %v58 = vld [vmem:[%s2] sm:$0xff]
    %v59 = vld [vmem:[%s2 + $0x8] sm:$0xff]
    %v60 = vld [vmem:[%s2 + $0x10] sm:$0xff]
    %v61 = vld [vmem:[%s2 + $0x18] sm:$0xff]
    %v62 = vld [vmem:[%s2 + $0x20] sm:$0xff]
    %v63 = vld [vmem:[%s2 + $0x28] sm:$0xff]
    %v64 = vld [vmem:[%s2 + $0x30] sm:$0xff]
    %v65 = vld [vmem:[%s2 + $0x38] sm:$0xff]
    %v66 = vld [vmem:[%s5] sm:$0x3]
    %v68 = vlaneseq
    %v69 = vshrl.u32 %v68, 7
    %v70 = vsub.s32 0, %v69
    %v71 = vrot.slane %v66, %v70
    %v72 = vlaneseq
    %v73 = vshrl.u32 %v72, 7
    %v74 = vsub.s32 1, %v73
    %v75 = vrot.slane %v66, %v74
    %vm78 = vcmask 261120
    %v80 = vsel %vm78, %v50, 0
    %v83 = vsel %vm78, %v51, 0
    %v86 = vsel %vm78, %v52, 0
    %v89 = vsel %vm78, %v53, 0
    %v92 = vsel %vm78, %v54, 0
    %v95 = vsel %vm78, %v55, 0
    %v98 = vsel %vm78, %v56, 0
    %v101 = vsel %vm78, %v57, 0
    %103 = vmatprep.subr.mxu0 %v59
    %104 = vmatpush1.msra.mxu0 %v58
    %105 = vmatprep.subr.mxu0 %v61
    %106 = vmatpush1.msra.mxu0 %v60
    %107 = vmatprep.subr.mxu0 %v63
    %108 = vmatpush1.msra.mxu0 %v62
    %109 = vmatprep.subr.mxu0 %v65
    %110 = vmatpush1.msra.mxu0 %v64
    %111 = vmatprep.subr.mxu0 0.0
    %112 = vmatpush1.msra.mxu0 0.0
    %113 = vmatprep.subr.mxu0 0.0
    %114 = vmatpush1.msra.mxu0 0.0
    %115 = vmatprep.subr.mxu0 0.0
    %116 = vmatpush1.msra.mxu0 0.0
    %117 = vmatprep.subr.mxu0 0.0
    %118 = vmatpush1.msra.mxu0 0.0
    %119 = vmatprep.subr.mxu0 0.0
    %120 = vmatpush1.msra.mxu0 0.0
    %121 = vmatprep.subr.mxu0 0.0
    %122 = vmatpush1.msra.mxu0 0.0
    %123 = vmatprep.subr.mxu0 0.0
    %124 = vmatpush1.msra.mxu0 0.0
    %125 = vmatprep.subr.mxu0 0.0
    %126 = vmatpush1.msra.mxu0 0.0
    %127 = vmatprep.subr.mxu0 0.0
    %128 = vmatpush1.msra.mxu0 0.0
    %129 = vmatprep.subr.mxu0 0.0
    %130 = vmatpush1.msra.mxu0 0.0
    %131 = vmatprep.subr.mxu0 0.0
    %132 = vmatpush1.msra.mxu0 0.0
    %133 = vmatprep.subr.mxu0 0.0
    %134 = vmatpush1.msra.mxu0 0.0
    %135 = vmatprep.subr.mxu0 0.0
    %136 = vmatpush1.msra.mxu0 0.0
    %137 = vmatprep.subr.mxu0 0.0
    %138 = vmatpush1.msra.mxu0 0.0
    %139 = vmatprep.subr.mxu0 0.0
    %140 = vmatpush1.msra.mxu0 0.0
    %141 = vmatprep.subr.mxu0 0.0
    %142 = vmatpush1.msra.mxu0 0.0
    %143 = vmatprep.subr.mxu0 0.0
    %144 = vmatpush1.msra.mxu0 0.0
    %145 = vmatprep.subr.mxu0 0.0
    %146 = vmatpush1.msra.mxu0 0.0
    %147 = vmatprep.subr.mxu0 0.0
    %148 = vmatpush1.msra.mxu0 0.0
    %149 = vmatprep.subr.mxu0 0.0
    %150 = vmatpush1.msra.mxu0 0.0
    %151 = vmatprep.subr.mxu0 0.0
    %152 = vmatpush1.msra.mxu0 0.0
    %153 = vmatprep.subr.mxu0 0.0
    %154 = vmatpush1.msra.mxu0 0.0
    %155 = vmatprep.subr.mxu0 0.0
    %156 = vmatpush1.msra.mxu0 0.0
    %157 = vmatprep.subr.mxu0 0.0
    %158 = vmatpush1.msra.mxu0 0.0
    %159 = vmatprep.subr.mxu0 0.0
    %160 = vmatpush1.msra.mxu0 0.0
    %161 = vmatprep.subr.mxu0 0.0
    %162 = vmatpush1.msra.mxu0 0.0
    %163 = vmatprep.subr.mxu0 0.0
    %164 = vmatpush1.msra.mxu0 0.0
    %165 = vmatprep.subr.mxu0 0.0
    %166 = vmatpush1.msra.mxu0 0.0
    %167 = vmatprep.mubr.f32.mxu0 0.0
    %168 = vmatmul.mubr.f32.gmra.mrb[0].mxu0 %v80
    %v169 = vpop.f32.mrb[0].mxu0
    %v170 = vadd.f32 %v71, %v169
    %v171 = vpop.f32.mrb[0].mxu0
    %v172 = vadd.f32 %v75, %v171
    %173 = vmatprep.mubr.f32.mxu0 0.0
    %174 = vmatmul.mubr.f32.gmra.mrb[0].mxu0 %v83
    %v175 = vpop.f32.mrb[0].mxu0
    %v176 = vadd.f32 %v71, %v175
    %v177 = vpop.f32.mrb[0].mxu0
    %v178 = vadd.f32 %v75, %v177
    %179 = vmatprep.mubr.f32.mxu0 0.0
    %180 = vmatmul.mubr.f32.gmra.mrb[0].mxu0 %v86
    %v181 = vpop.f32.mrb[0].mxu0
    %v182 = vadd.f32 %v71, %v181
    %v183 = vpop.f32.mrb[0].mxu0
    %v184 = vadd.f32 %v75, %v183
    %185 = vmatprep.mubr.f32.mxu0 0.0
    %186 = vmatmul.mubr.f32.gmra.mrb[0].mxu0 %v89
    %v187 = vpop.f32.mrb[0].mxu0
    %v188 = vadd.f32 %v71, %v187
    %v189 = vpop.f32.mrb[0].mxu0
    %v190 = vadd.f32 %v75, %v189
    %191 = vmatprep.mubr.f32.mxu0 0.0
    %192 = vmatmul.mubr.f32.gmra.mrb[0].mxu0 %v92
    %v193 = vpop.f32.mrb[0].mxu0
    %v194 = vadd.f32 %v71, %v193
    %v195 = vpop.f32.mrb[0].mxu0
    %v196 = vadd.f32 %v75, %v195
    %197 = vmatprep.mubr.f32.mxu0 0.0
    %198 = vmatmul.mubr.f32.gmra.mrb[0].mxu0 %v95
    %v199 = vpop.f32.mrb[0].mxu0
    %v200 = vadd.f32 %v71, %v199
    %v201 = vpop.f32.mrb[0].mxu0
    %v202 = vadd.f32 %v75, %v201
    %203 = vmatprep.mubr.f32.mxu0 0.0
    %204 = vmatmul.mubr.f32.gmra.mrb[0].mxu0 %v98
    %v205 = vpop.f32.mrb[0].mxu0
    %v206 = vadd.f32 %v71, %v205
    %v207 = vpop.f32.mrb[0].mxu0
    %v208 = vadd.f32 %v75, %v207
    %209 = vmatprep.mubr.f32.mxu0 0.0
    %210 = vmatmul.mubr.f32.gmra.mrb[0].mxu0 %v101
    %v211 = vpop.f32.mrb[0].mxu0
    %v212 = vadd.f32 %v71, %v211
    %v213 = vpop.f32.mrb[0].mxu0
    %v214 = vadd.f32 %v75, %v213
    %215 = vdwg.mxu0
    %216 = vst [vmem:[#allocation2] sm:$0xff] %v170
    %217 = vst [vmem:[#allocation2 + $0x8] sm:$0xff] %v172
    %218 = vst [vmem:[#allocation2 + $0x10] sm:$0xff] %v176
    %219 = vst [vmem:[#allocation2 + $0x18] sm:$0xff] %v178
    %220 = vst [vmem:[#allocation2 + $0x20] sm:$0xff] %v182
    %221 = vst [vmem:[#allocation2 + $0x28] sm:$0xff] %v184
    %222 = vst [vmem:[#allocation2 + $0x30] sm:$0xff] %v188
    %223 = vst [vmem:[#allocation2 + $0x38] sm:$0xff] %v190
    %224 = vst [vmem:[#allocation2 + $0x40] sm:$0xff] %v194
    %225 = vst [vmem:[#allocation2 + $0x48] sm:$0xff] %v196
    %226 = vst [vmem:[#allocation2 + $0x50] sm:$0xff] %v200
    %227 = vst [vmem:[#allocation2 + $0x58] sm:$0xff] %v202
    %228 = vst [vmem:[#allocation2 + $0x60] sm:$0xff] %v206
    %229 = vst [vmem:[#allocation2 + $0x68] sm:$0xff] %v208
    %230 = vst [vmem:[#allocation2 + $0x70] sm:$0xff] %v212
    %231 = vst [vmem:[#allocation2 + $0x78] sm:$0xff] %v214
    %v232 = vld [vmem:[%s3] sm:$0xff]
    %v233 = vld [vmem:[%s3 + $0x8] sm:$0xff]
    %v234 = vld [vmem:[%s3 + $0x10] sm:$0xff]
    %v235 = vld [vmem:[%s3 + $0x18] sm:$0xff]
    %v236 = vld [vmem:[#allocation6] sm:$0xff]
    %v237 = vld [vmem:[#allocation6 + $0x8] sm:$0xff]
    %v238 = vld [vmem:[#allocation6 + $0x10] sm:$0xff]
    %v239 = vld [vmem:[#allocation6 + $0x18] sm:$0xff]
    %s240 = smul.u32 0, 2
    %s241 = smul.addr %s240, 8
    %s242 = scalar_lea.vmem [#allocation2], %s241
    %v243 = vld [vmem:[%s242] sm:$0xff]
    %s244 = smul.u32 7, 2
    %s245 = smul.addr %s244, 8
    %s246 = scalar_lea.vmem [#allocation2], %s245
    %v247 = vld [vmem:[%s246 + $0x8] sm:$0xff]
    %v249 = vsel %vm78, 0.0, 0
    %251 = vmatprep.subr.mxu0 0.0
    %252 = vmatpush1.msra.mxu0 %v232
    %253 = vmatprep.subr.mxu0 0.0
    %254 = vmatpush1.msra.mxu0 %v233
    %255 = vmatprep.subr.mxu0 0.0
    %256 = vmatpush1.msra.mxu0 %v234
    %257 = vmatprep.subr.mxu0 0.0
    %258 = vmatpush1.msra.mxu0 %v235
    %259 = vmatprep.subr.mxu0 0.0
    %260 = vmatpush1.msra.mxu0 0.0
    %261 = vmatprep.subr.mxu0 0.0
    %262 = vmatpush1.msra.mxu0 0.0
    %263 = vmatprep.subr.mxu0 0.0
    %264 = vmatpush1.msra.mxu0 0.0
    %265 = vmatprep.subr.mxu0 0.0
    %266 = vmatpush1.msra.mxu0 0.0
    %267 = vmatprep.subr.mxu0 0.0
    %268 = vmatpush1.msra.mxu0 0.0
    %269 = vmatprep.subr.mxu0 0.0
    %270 = vmatpush1.msra.mxu0 0.0
    %271 = vmatprep.subr.mxu0 0.0
    %272 = vmatpush1.msra.mxu0 0.0
    %273 = vmatprep.subr.mxu0 0.0
    %274 = vmatpush1.msra.mxu0 0.0
    %275 = vmatprep.subr.mxu0 0.0
    %276 = vmatpush1.msra.mxu0 0.0
    %277 = vmatprep.subr.mxu0 0.0
    %278 = vmatpush1.msra.mxu0 0.0
    %279 = vmatprep.subr.mxu0 0.0
    %280 = vmatpush1.msra.mxu0 0.0
    %281 = vmatprep.subr.mxu0 0.0
    %282 = vmatpush1.msra.mxu0 0.0
    %283 = vmatprep.subr.mxu0 0.0
    %284 = vmatpush1.msra.mxu0 0.0
    %285 = vmatprep.subr.mxu0 0.0
    %286 = vmatpush1.msra.mxu0 0.0
    %287 = vmatprep.subr.mxu0 0.0
    %288 = vmatpush1.msra.mxu0 0.0
    %289 = vmatprep.subr.mxu0 0.0
    %290 = vmatpush1.msra.mxu0 0.0
    %291 = vmatprep.subr.mxu0 0.0
    %292 = vmatpush1.msra.mxu0 0.0
    %293 = vmatprep.subr.mxu0 0.0
    %294 = vmatpush1.msra.mxu0 0.0
    %295 = vmatprep.subr.mxu0 0.0
    %296 = vmatpush1.msra.mxu0 0.0
    %297 = vmatprep.subr.mxu0 0.0
    %298 = vmatpush1.msra.mxu0 0.0
    %299 = vmatprep.subr.mxu0 0.0
    %300 = vmatpush1.msra.mxu0 0.0
    %301 = vmatprep.subr.mxu0 0.0
    %302 = vmatpush1.msra.mxu0 0.0
    %303 = vmatprep.subr.mxu0 0.0
    %304 = vmatpush1.msra.mxu0 0.0
    %305 = vmatprep.subr.mxu0 0.0
    %306 = vmatpush1.msra.mxu0 0.0
    %307 = vmatprep.subr.mxu0 0.0
    %308 = vmatpush1.msra.mxu0 0.0
    %309 = vmatprep.subr.mxu0 0.0
    %310 = vmatpush1.msra.mxu0 0.0
    %311 = vmatprep.subr.mxu0 0.0
    %312 = vmatpush1.msra.mxu0 0.0
    %313 = vmatprep.subr.mxu0 0.0
    %314 = vmatpush1.msra.mxu0 0.0
    %315 = vmatprep.mubr.f32.mxu0 0.0
    %316 = vmatmul.mubr.f32.gmra.mrb[0].mxu0 %v249
    %v317 = vpop.f32.mrb[0].mxu0
    %v318 = vadd.f32 0.0, %v317
    %v319 = vpop.f32.mrb[0].mxu0
    %320 = vdwg.mxu0
    %v321 = vadd.f32 %v243, %v318
    %v322 = vxor.u32 %v321, 2147483648
    %v323 = vmul.f32 %v322, 1.442695
    %v324 = vpow.pop %v323
    %v325 = vadd.f32 %v324, 1.0
    %v326 = vrcp.pop %v325
    %v327 = vmul.f32 1.0, %v326
    %v328 = vtanh.pop %v321
    %v329 = vmul.f32 %v327, 0.0
    %331 = vrot.lane.b32.xlu0 %v328, 64
    %v332 = vpop.permute.xlu0 %331
    %v334 = vmul.f32 %v327, %v332
    %336 = vrot.lane.b32.xlu0 %v334, 32
    %v337 = vpop.permute.xlu0 %336
    %v339 = vadd.f32 %v329, %v337
    %v340 = vtanh.pop %v339
    %342 = vrot.lane.b32.xlu0 %v340, 64
    %v343 = vpop.permute.xlu0 %342
    %v345 = vmul.f32 %v327, %v343
    %346 = vmatprep.subr.mxu0 0.0
    %347 = vmatpush1.msra.mxu0 %v236
    %348 = vmatprep.subr.mxu0 0.0
    %349 = vmatpush1.msra.mxu0 %v237
    %350 = vmatprep.subr.mxu0 0.0
    %351 = vmatpush1.msra.mxu0 %v238
    %352 = vmatprep.subr.mxu0 0.0
    %353 = vmatpush1.msra.mxu0 %v239
    %354 = vmatprep.subr.mxu0 0.0
    %355 = vmatpush1.msra.mxu0 0.0
    %356 = vmatprep.subr.mxu0 0.0
    %357 = vmatpush1.msra.mxu0 0.0
    %358 = vmatprep.subr.mxu0 0.0
    %359 = vmatpush1.msra.mxu0 0.0
    %360 = vmatprep.subr.mxu0 0.0
    %361 = vmatpush1.msra.mxu0 0.0
    %362 = vmatprep.subr.mxu0 0.0
    %363 = vmatpush1.msra.mxu0 0.0
    %364 = vmatprep.subr.mxu0 0.0
    %365 = vmatpush1.msra.mxu0 0.0
    %366 = vmatprep.subr.mxu0 0.0
    %367 = vmatpush1.msra.mxu0 0.0
    %368 = vmatprep.subr.mxu0 0.0
    %369 = vmatpush1.msra.mxu0 0.0
    %370 = vmatprep.subr.mxu0 0.0
    %371 = vmatpush1.msra.mxu0 0.0
    %372 = vmatprep.subr.mxu0 0.0
    %373 = vmatpush1.msra.mxu0 0.0
    %374 = vmatprep.subr.mxu0 0.0
    %375 = vmatpush1.msra.mxu0 0.0
    %376 = vmatprep.subr.mxu0 0.0
    %377 = vmatpush1.msra.mxu0 0.0
    %378 = vmatprep.subr.mxu0 0.0
    %379 = vmatpush1.msra.mxu0 0.0
    %380 = vmatprep.subr.mxu0 0.0
    %381 = vmatpush1.msra.mxu0 0.0
    %382 = vmatprep.subr.mxu0 0.0
    %383 = vmatpush1.msra.mxu0 0.0
    %384 = vmatprep.subr.mxu0 0.0
    %385 = vmatpush1.msra.mxu0 0.0
    %386 = vmatprep.subr.mxu0 0.0
    %387 = vmatpush1.msra.mxu0 0.0
    %388 = vmatprep.subr.mxu0 0.0
    %389 = vmatpush1.msra.mxu0 0.0
    %390 = vmatprep.subr.mxu0 0.0
    %391 = vmatpush1.msra.mxu0 0.0
    %392 = vmatprep.subr.mxu0 0.0
    %393 = vmatpush1.msra.mxu0 0.0
    %394 = vmatprep.subr.mxu0 0.0
    %395 = vmatpush1.msra.mxu0 0.0
    %396 = vmatprep.subr.mxu0 0.0
    %397 = vmatpush1.msra.mxu0 0.0
    %398 = vmatprep.subr.mxu0 0.0
    %399 = vmatpush1.msra.mxu0 0.0
    %400 = vmatprep.subr.mxu0 0.0
    %401 = vmatpush1.msra.mxu0 0.0
    %402 = vmatprep.subr.mxu0 0.0
    %403 = vmatpush1.msra.mxu0 0.0
    %404 = vmatprep.subr.mxu0 0.0
    %405 = vmatpush1.msra.mxu0 0.0
    %406 = vmatprep.subr.mxu0 0.0
    %407 = vmatpush1.msra.mxu0 0.0
    %408 = vmatprep.subr.mxu0 0.0
    %409 = vmatpush1.msra.mxu0 0.0
    %410 = vmatprep.mubr.f32.mxu0 0.0
    %411 = vmatmul.mubr.f32.gmra.mrb[0].mxu0 %v249
    %v412 = vpop.f32.mrb[0].mxu0
    %v413 = vadd.f32 0.0, %v412
    %v414 = vpop.f32.mrb[0].mxu0
    %415 = vdwg.mxu0
    %v416 = vadd.f32 %v247, %v413
    %v417 = vxor.u32 %v416, 2147483648
    %v418 = vmul.f32 %v417, 1.442695
    %v419 = vpow.pop %v418
    %v420 = vadd.f32 %v419, 1.0
    %v421 = vrcp.pop %v420
    %v422 = vmul.f32 1.0, %v421
    %v423 = vtanh.pop %v416
    %v424 = vmul.f32 %v422, 0.0
    %426 = vrot.lane.b32.xlu0 %v423, 64
    %v427 = vpop.permute.xlu0 %426
    %v429 = vmul.f32 %v422, %v427
    %431 = vrot.lane.b32.xlu0 %v429, 32
    %v432 = vpop.permute.xlu0 %431
    %v434 = vadd.f32 %v424, %v432
    %v435 = vtanh.pop %v434
    %437 = vrot.lane.b32.xlu0 %v435, 64
    %v438 = vpop.permute.xlu0 %437
    %v440 = vmul.f32 %v422, %v438
    %v441 = vld [vmem:[#allocation3] sm:$0x1]
    %v442 = vld [vmem:[#allocation3 + $0x7] sm:$0x1]
    %444 = vrot.lane.b32.xlu0 %v345, 32
    %v445 = vpop.permute.xlu0 %444
    %vm447 = vcmask 64512
    %v449 = vsel %vm447, %v441, 0
    %451 = vmatprep.subr.mxu0 0.0
    %452 = vmatpush1.msra.mxu0 %v445
    %453 = vmatprep.subr.mxu0 0.0
    %454 = vmatpush1.msra.mxu0 0.0
    %455 = vmatprep.subr.mxu0 0.0
    %456 = vmatpush1.msra.mxu0 0.0
    %457 = vmatprep.subr.mxu0 0.0
    %458 = vmatpush1.msra.mxu0 0.0
    %459 = vmatprep.subr.mxu0 0.0
    %460 = vmatpush1.msra.mxu0 0.0
    %461 = vmatprep.subr.mxu0 0.0
    %462 = vmatpush1.msra.mxu0 0.0
    %463 = vmatprep.subr.mxu0 0.0
    %464 = vmatpush1.msra.mxu0 0.0
    %465 = vmatprep.subr.mxu0 0.0
    %466 = vmatpush1.msra.mxu0 0.0
    %467 = vmatprep.subr.mxu0 0.0
    %468 = vmatpush1.msra.mxu0 0.0
    %469 = vmatprep.subr.mxu0 0.0
    %470 = vmatpush1.msra.mxu0 0.0
    %471 = vmatprep.subr.mxu0 0.0
    %472 = vmatpush1.msra.mxu0 0.0
    %473 = vmatprep.subr.mxu0 0.0
    %474 = vmatpush1.msra.mxu0 0.0
    %475 = vmatprep.subr.mxu0 0.0
    %476 = vmatpush1.msra.mxu0 0.0
    %477 = vmatprep.subr.mxu0 0.0
    %478 = vmatpush1.msra.mxu0 0.0
    %479 = vmatprep.subr.mxu0 0.0
    %480 = vmatpush1.msra.mxu0 0.0
    %481 = vmatprep.subr.mxu0 0.0
    %482 = vmatpush1.msra.mxu0 0.0
    %483 = vmatprep.subr.mxu0 0.0
    %484 = vmatpush1.msra.mxu0 0.0
    %485 = vmatprep.subr.mxu0 0.0
    %486 = vmatpush1.msra.mxu0 0.0
    %487 = vmatprep.subr.mxu0 0.0
    %488 = vmatpush1.msra.mxu0 0.0
    %489 = vmatprep.subr.mxu0 0.0
    %490 = vmatpush1.msra.mxu0 0.0
    %491 = vmatprep.subr.mxu0 0.0
    %492 = vmatpush1.msra.mxu0 0.0
    %493 = vmatprep.subr.mxu0 0.0
    %494 = vmatpush1.msra.mxu0 0.0
    %495 = vmatprep.subr.mxu0 0.0
    %496 = vmatpush1.msra.mxu0 0.0
    %497 = vmatprep.subr.mxu0 0.0
    %498 = vmatpush1.msra.mxu0 0.0
    %499 = vmatprep.subr.mxu0 0.0
    %500 = vmatpush1.msra.mxu0 0.0
    %501 = vmatprep.subr.mxu0 0.0
    %502 = vmatpush1.msra.mxu0 0.0
    %503 = vmatprep.subr.mxu0 0.0
    %504 = vmatpush1.msra.mxu0 0.0
    %505 = vmatprep.subr.mxu0 0.0
    %506 = vmatpush1.msra.mxu0 0.0
    %507 = vmatprep.subr.mxu0 0.0
    %508 = vmatpush1.msra.mxu0 0.0
    %509 = vmatprep.subr.mxu0 0.0
    %510 = vmatpush1.msra.mxu0 0.0
    %511 = vmatprep.subr.mxu0 0.0
    %512 = vmatpush1.msra.mxu0 0.0
    %513 = vmatprep.subr.mxu0 0.0
    %514 = vmatpush1.msra.mxu0 0.0
    %515 = vmatprep.mubr.f32.mxu0 0.0
    %516 = vmatmul.mubr.f32.gmra.mrb[0].mxu0 %v449
    %v517 = vpop.f32.mrb[0].mxu0
    %v518 = vadd.f32 0.0, %v517
    %v519 = vpop.f32.mrb[0].mxu0
    %520 = vdwg.mxu0
    %vm521 = vcmask 253952
    %522 = vst.msk [vmem:[#allocation8] sm:$0x1] %vm521, %v518
    %524 = vrot.lane.b32.xlu0 %v440, 32
    %v525 = vpop.permute.xlu0 %524
    %v528 = vsel %vm447, %v442, 0
    %530 = vmatprep.subr.mxu0 0.0
    %531 = vmatpush1.msra.mxu0 %v525
    %532 = vmatprep.subr.mxu0 0.0
    %533 = vmatpush1.msra.mxu0 0.0
    %534 = vmatprep.subr.mxu0 0.0
    %535 = vmatpush1.msra.mxu0 0.0
    %536 = vmatprep.subr.mxu0 0.0
    %537 = vmatpush1.msra.mxu0 0.0
    %538 = vmatprep.subr.mxu0 0.0
    %539 = vmatpush1.msra.mxu0 0.0
    %540 = vmatprep.subr.mxu0 0.0
    %541 = vmatpush1.msra.mxu0 0.0
    %542 = vmatprep.subr.mxu0 0.0
    %543 = vmatpush1.msra.mxu0 0.0
    %544 = vmatprep.subr.mxu0 0.0
    %545 = vmatpush1.msra.mxu0 0.0
    %546 = vmatprep.subr.mxu0 0.0
    %547 = vmatpush1.msra.mxu0 0.0
    %548 = vmatprep.subr.mxu0 0.0
    %549 = vmatpush1.msra.mxu0 0.0
    %550 = vmatprep.subr.mxu0 0.0
    %551 = vmatpush1.msra.mxu0 0.0
    %552 = vmatprep.subr.mxu0 0.0
    %553 = vmatpush1.msra.mxu0 0.0
    %554 = vmatprep.subr.mxu0 0.0
    %555 = vmatpush1.msra.mxu0 0.0
    %556 = vmatprep.subr.mxu0 0.0
    %557 = vmatpush1.msra.mxu0 0.0
    %558 = vmatprep.subr.mxu0 0.0
    %559 = vmatpush1.msra.mxu0 0.0
    %560 = vmatprep.subr.mxu0 0.0
    %561 = vmatpush1.msra.mxu0 0.0
    %562 = vmatprep.subr.mxu0 0.0
    %563 = vmatpush1.msra.mxu0 0.0
    %564 = vmatprep.subr.mxu0 0.0
    %565 = vmatpush1.msra.mxu0 0.0
    %566 = vmatprep.subr.mxu0 0.0
    %567 = vmatpush1.msra.mxu0 0.0
    %568 = vmatprep.subr.mxu0 0.0
    %569 = vmatpush1.msra.mxu0 0.0
    %570 = vmatprep.subr.mxu0 0.0
    %571 = vmatpush1.msra.mxu0 0.0
    %572 = vmatprep.subr.mxu0 0.0
    %573 = vmatpush1.msra.mxu0 0.0
    %574 = vmatprep.subr.mxu0 0.0
    %575 = vmatpush1.msra.mxu0 0.0
    %576 = vmatprep.subr.mxu0 0.0
    %577 = vmatpush1.msra.mxu0 0.0
    %578 = vmatprep.subr.mxu0 0.0
    %579 = vmatpush1.msra.mxu0 0.0
    %580 = vmatprep.subr.mxu0 0.0
    %581 = vmatpush1.msra.mxu0 0.0
    %582 = vmatprep.subr.mxu0 0.0
    %583 = vmatpush1.msra.mxu0 0.0
    %584 = vmatprep.subr.mxu0 0.0
    %585 = vmatpush1.msra.mxu0 0.0
    %586 = vmatprep.subr.mxu0 0.0
    %587 = vmatpush1.msra.mxu0 0.0
    %588 = vmatprep.subr.mxu0 0.0
    %589 = vmatpush1.msra.mxu0 0.0
    %590 = vmatprep.subr.mxu0 0.0
    %591 = vmatpush1.msra.mxu0 0.0
    %592 = vmatprep.subr.mxu0 0.0
    %593 = vmatpush1.msra.mxu0 0.0
    %594 = vmatprep.mubr.f32.mxu0 0.0
    %595 = vmatmul.mubr.f32.gmra.mrb[0].mxu0 %v528
    %v596 = vpop.f32.mrb[0].mxu0
    %v597 = vadd.f32 0.0, %v596
    %v598 = vpop.f32.mrb[0].mxu0
    %599 = vdwg.mxu0
    %601 = vrot.lane.b32.xlu0 %v597, 32
    %v602 = vpop.permute.xlu0 %601
    %vm604 = vcmask 516352
    %605 = vst.msk [vmem:[#allocation8 + $0x7] sm:$0x1] %vm604, %v602
    %s606 = smul.u32 1, 2
    %s607 = smul.addr %s606, 8
    %s608 = scalar_lea.vmem [#allocation2], %s607
    %v609 = vld [vmem:[%s608] sm:$0xff]
    %s610 = smul.u32 6, 2
    %s611 = smul.addr %s610, 8
    %s612 = scalar_lea.vmem [#allocation2], %s611
    %v613 = vld [vmem:[%s612 + $0x8] sm:$0xff]
    %v614 = vsel %vm78, %v445, 0
    %616 = vmatprep.subr.mxu0 0.0
    %617 = vmatpush1.msra.mxu0 %v232
    %618 = vmatprep.subr.mxu0 0.0
    %619 = vmatpush1.msra.mxu0 %v233
    %620 = vmatprep.subr.mxu0 0.0
    %621 = vmatpush1.msra.mxu0 %v234
    %622 = vmatprep.subr.mxu0 0.0
    %623 = vmatpush1.msra.mxu0 %v235
    %624 = vmatprep.subr.mxu0 0.0
    %625 = vmatpush1.msra.mxu0 0.0
    %626 = vmatprep.subr.mxu0 0.0
    %627 = vmatpush1.msra.mxu0 0.0
    %628 = vmatprep.subr.mxu0 0.0
    %629 = vmatpush1.msra.mxu0 0.0
    %630 = vmatprep.subr.mxu0 0.0
    %631 = vmatpush1.msra.mxu0 0.0
    %632 = vmatprep.subr.mxu0 0.0
    %633 = vmatpush1.msra.mxu0 0.0
    %634 = vmatprep.subr.mxu0 0.0
    %635 = vmatpush1.msra.mxu0 0.0
    %636 = vmatprep.subr.mxu0 0.0
    %637 = vmatpush1.msra.mxu0 0.0
    %638 = vmatprep.subr.mxu0 0.0
    %639 = vmatpush1.msra.mxu0 0.0
    %640 = vmatprep.subr.mxu0 0.0
    %641 = vmatpush1.msra.mxu0 0.0
    %642 = vmatprep.subr.mxu0 0.0
    %643 = vmatpush1.msra.mxu0 0.0
    %644 = vmatprep.subr.mxu0 0.0
    %645 = vmatpush1.msra.mxu0 0.0
    %646 = vmatprep.subr.mxu0 0.0
    %647 = vmatpush1.msra.mxu0 0.0
    %648 = vmatprep.subr.mxu0 0.0
    %649 = vmatpush1.msra.mxu0 0.0
    %650 = vmatprep.subr.mxu0 0.0
    %651 = vmatpush1.msra.mxu0 0.0
    %652 = vmatprep.subr.mxu0 0.0
    %653 = vmatpush1.msra.mxu0 0.0
    %654 = vmatprep.subr.mxu0 0.0
    %655 = vmatpush1.msra.mxu0 0.0
    %656 = vmatprep.subr.mxu0 0.0
    %657 = vmatpush1.msra.mxu0 0.0
    %658 = vmatprep.subr.mxu0 0.0
    %659 = vmatpush1.msra.mxu0 0.0
    %660 = vmatprep.subr.mxu0 0.0
    %661 = vmatpush1.msra.mxu0 0.0
    %662 = vmatprep.subr.mxu0 0.0
    %663 = vmatpush1.msra.mxu0 0.0
    %664 = vmatprep.subr.mxu0 0.0
    %665 = vmatpush1.msra.mxu0 0.0
    %666 = vmatprep.subr.mxu0 0.0
    %667 = vmatpush1.msra.mxu0 0.0
    %668 = vmatprep.subr.mxu0 0.0
    %669 = vmatpush1.msra.mxu0 0.0
    %670 = vmatprep.subr.mxu0 0.0
    %671 = vmatpush1.msra.mxu0 0.0
    %672 = vmatprep.subr.mxu0 0.0
    %673 = vmatpush1.msra.mxu0 0.0
    %674 = vmatprep.subr.mxu0 0.0
    %675 = vmatpush1.msra.mxu0 0.0
    %676 = vmatprep.subr.mxu0 0.0
    %677 = vmatpush1.msra.mxu0 0.0
    %678 = vmatprep.subr.mxu0 0.0
    %679 = vmatpush1.msra.mxu0 0.0
    %680 = vmatprep.mubr.f32.mxu0 0.0
    %681 = vmatmul.mubr.f32.gmra.mrb[0].mxu0 %v614
    %v682 = vpop.f32.mrb[0].mxu0
    %v683 = vadd.f32 0.0, %v682
    %v684 = vpop.f32.mrb[0].mxu0
    %685 = vdwg.mxu0
    %v686 = vadd.f32 %v609, %v683
    %v687 = vxor.u32 %v686, 2147483648
    %v688 = vmul.f32 %v687, 1.442695
    %v689 = vpow.pop %v688
    %v690 = vadd.f32 %v689, 1.0
    %v691 = vrcp.pop %v690
    %v692 = vmul.f32 1.0, %v691
    %v693 = vtanh.pop %v686
    %v694 = vmul.f32 %v692, %v339
    %696 = vrot.lane.b32.xlu0 %v693, 64
    %v697 = vpop.permute.xlu0 %696
    %v699 = vmul.f32 %v692, %v697
    %701 = vrot.lane.b32.xlu0 %v699, 32
    %v702 = vpop.permute.xlu0 %701
    %v704 = vadd.f32 %v694, %v702
    %v705 = vtanh.pop %v704
    %707 = vrot.lane.b32.xlu0 %v705, 64
    %v708 = vpop.permute.xlu0 %707
    %v710 = vmul.f32 %v692, %v708
    %v711 = vsel %vm78, %v525, 0
    %713 = vmatprep.subr.mxu0 0.0
    %714 = vmatpush1.msra.mxu0 %v236
    %715 = vmatprep.subr.mxu0 0.0
    %716 = vmatpush1.msra.mxu0 %v237
    %717 = vmatprep.subr.mxu0 0.0
    %718 = vmatpush1.msra.mxu0 %v238
    %719 = vmatprep.subr.mxu0 0.0
    %720 = vmatpush1.msra.mxu0 %v239
    %721 = vmatprep.subr.mxu0 0.0
    %722 = vmatpush1.msra.mxu0 0.0
    %723 = vmatprep.subr.mxu0 0.0
    %724 = vmatpush1.msra.mxu0 0.0
    %725 = vmatprep.subr.mxu0 0.0
    %726 = vmatpush1.msra.mxu0 0.0
    %727 = vmatprep.subr.mxu0 0.0
    %728 = vmatpush1.msra.mxu0 0.0
    %729 = vmatprep.subr.mxu0 0.0
    %730 = vmatpush1.msra.mxu0 0.0
    %731 = vmatprep.subr.mxu0 0.0
    %732 = vmatpush1.msra.mxu0 0.0
    %733 = vmatprep.subr.mxu0 0.0
    %734 = vmatpush1.msra.mxu0 0.0
    %735 = vmatprep.subr.mxu0 0.0
    %736 = vmatpush1.msra.mxu0 0.0
    %737 = vmatprep.subr.mxu0 0.0
    %738 = vmatpush1.msra.mxu0 0.0
    %739 = vmatprep.subr.mxu0 0.0
    %740 = vmatpush1.msra.mxu0 0.0
    %741 = vmatprep.subr.mxu0 0.0
    %742 = vmatpush1.msra.mxu0 0.0
    %743 = vmatprep.subr.mxu0 0.0
    %744 = vmatpush1.msra.mxu0 0.0
    %745 = vmatprep.subr.mxu0 0.0
    %746 = vmatpush1.msra.mxu0 0.0
    %747 = vmatprep.subr.mxu0 0.0
    %748 = vmatpush1.msra.mxu0 0.0
    %749 = vmatprep.subr.mxu0 0.0
    %750 = vmatpush1.msra.mxu0 0.0
    %751 = vmatprep.subr.mxu0 0.0
    %752 = vmatpush1.msra.mxu0 0.0
    %753 = vmatprep.subr.mxu0 0.0
    %754 = vmatpush1.msra.mxu0 0.0
    %755 = vmatprep.subr.mxu0 0.0
    %756 = vmatpush1.msra.mxu0 0.0
    %757 = vmatprep.subr.mxu0 0.0
    %758 = vmatpush1.msra.mxu0 0.0
    %759 = vmatprep.subr.mxu0 0.0
    %760 = vmatpush1.msra.mxu0 0.0
    %761 = vmatprep.subr.mxu0 0.0
    %762 = vmatpush1.msra.mxu0 0.0
    %763 = vmatprep.subr.mxu0 0.0
    %764 = vmatpush1.msra.mxu0 0.0
    %765 = vmatprep.subr.mxu0 0.0
    %766 = vmatpush1.msra.mxu0 0.0
    %767 = vmatprep.subr.mxu0 0.0
    %768 = vmatpush1.msra.mxu0 0.0
    %769 = vmatprep.subr.mxu0 0.0
    %770 = vmatpush1.msra.mxu0 0.0
    %771 = vmatprep.subr.mxu0 0.0
    %772 = vmatpush1.msra.mxu0 0.0
    %773 = vmatprep.subr.mxu0 0.0
    %774 = vmatpush1.msra.mxu0 0.0
    %775 = vmatprep.subr.mxu0 0.0
    %776 = vmatpush1.msra.mxu0 0.0
    %777 = vmatprep.mubr.f32.mxu0 0.0
    %778 = vmatmul.mubr.f32.gmra.mrb[0].mxu0 %v711
    %v779 = vpop.f32.mrb[0].mxu0
    %v780 = vadd.f32 0.0, %v779
    %v781 = vpop.f32.mrb[0].mxu0
    %782 = vdwg.mxu0
    %v783 = vadd.f32 %v613, %v780
    %v784 = vxor.u32 %v783, 2147483648
    %v785 = vmul.f32 %v784, 1.442695
    %v786 = vpow.pop %v785
    %v787 = vadd.f32 %v786, 1.0
    %v788 = vrcp.pop %v787
    %v789 = vmul.f32 1.0, %v788
    %v790 = vtanh.pop %v783
    %v791 = vmul.f32 %v789, %v434
    %793 = vrot.lane.b32.xlu0 %v790, 64
    %v794 = vpop.permute.xlu0 %793
    %v796 = vmul.f32 %v789, %v794
    %798 = vrot.lane.b32.xlu0 %v796, 32
    %v799 = vpop.permute.xlu0 %798
    %v801 = vadd.f32 %v791, %v799
    %v802 = vtanh.pop %v801
    %804 = vrot.lane.b32.xlu0 %v802, 64
    %v805 = vpop.permute.xlu0 %804
    %v807 = vmul.f32 %v789, %v805
    %v808 = vld [vmem:[#allocation3 + $0x1] sm:$0x1]
    %v809 = vld [vmem:[#allocation3 + $0x6] sm:$0x1]
    %811 = vrot.lane.b32.xlu0 %v710, 32
    %v812 = vpop.permute.xlu0 %811
    %v815 = vsel %vm447, %v808, 0
    %817 = vmatprep.subr.mxu0 0.0
    %818 = vmatpush1.msra.mxu0 %v812
    %819 = vmatprep.subr.mxu0 0.0
    %820 = vmatpush1.msra.mxu0 0.0
    %821 = vmatprep.subr.mxu0 0.0
    %822 = vmatpush1.msra.mxu0 0.0
    %823 = vmatprep.subr.mxu0 0.0
    %824 = vmatpush1.msra.mxu0 0.0
    %825 = vmatprep.subr.mxu0 0.0
    %826 = vmatpush1.msra.mxu0 0.0
    %827 = vmatprep.subr.mxu0 0.0
    %828 = vmatpush1.msra.mxu0 0.0
    %829 = vmatprep.subr.mxu0 0.0
    %830 = vmatpush1.msra.mxu0 0.0
    %831 = vmatprep.subr.mxu0 0.0
    %832 = vmatpush1.msra.mxu0 0.0
    %833 = vmatprep.subr.mxu0 0.0
    %834 = vmatpush1.msra.mxu0 0.0
    %835 = vmatprep.subr.mxu0 0.0
    %836 = vmatpush1.msra.mxu0 0.0
    %837 = vmatprep.subr.mxu0 0.0
    %838 = vmatpush1.msra.mxu0 0.0
    %839 = vmatprep.subr.mxu0 0.0
    %840 = vmatpush1.msra.mxu0 0.0
    %841 = vmatprep.subr.mxu0 0.0
    %842 = vmatpush1.msra.mxu0 0.0
    %843 = vmatprep.subr.mxu0 0.0
    %844 = vmatpush1.msra.mxu0 0.0
    %845 = vmatprep.subr.mxu0 0.0
    %846 = vmatpush1.msra.mxu0 0.0
    %847 = vmatprep.subr.mxu0 0.0
    %848 = vmatpush1.msra.mxu0 0.0
    %849 = vmatprep.subr.mxu0 0.0
    %850 = vmatpush1.msra.mxu0 0.0
    %851 = vmatprep.subr.mxu0 0.0
    %852 = vmatpush1.msra.mxu0 0.0
    %853 = vmatprep.subr.mxu0 0.0
    %854 = vmatpush1.msra.mxu0 0.0
    %855 = vmatprep.subr.mxu0 0.0
    %856 = vmatpush1.msra.mxu0 0.0
    %857 = vmatprep.subr.mxu0 0.0
    %858 = vmatpush1.msra.mxu0 0.0
    %859 = vmatprep.subr.mxu0 0.0
    %860 = vmatpush1.msra.mxu0 0.0
    %861 = vmatprep.subr.mxu0 0.0
    %862 = vmatpush1.msra.mxu0 0.0
    %863 = vmatprep.subr.mxu0 0.0
    %864 = vmatpush1.msra.mxu0 0.0
    %865 = vmatprep.subr.mxu0 0.0
    %866 = vmatpush1.msra.mxu0 0.0
    %867 = vmatprep.subr.mxu0 0.0
    %868 = vmatpush1.msra.mxu0 0.0
    %869 = vmatprep.subr.mxu0 0.0
    %870 = vmatpush1.msra.mxu0 0.0
    %871 = vmatprep.subr.mxu0 0.0
    %872 = vmatpush1.msra.mxu0 0.0
    %873 = vmatprep.subr.mxu0 0.0
    %874 = vmatpush1.msra.mxu0 0.0
    %875 = vmatprep.subr.mxu0 0.0
    %876 = vmatpush1.msra.mxu0 0.0
    %877 = vmatprep.subr.mxu0 0.0
    %878 = vmatpush1.msra.mxu0 0.0
    %879 = vmatprep.subr.mxu0 0.0
    %880 = vmatpush1.msra.mxu0 0.0
    %881 = vmatprep.mubr.f32.mxu0 0.0
    %882 = vmatmul.mubr.f32.gmra.mrb[0].mxu0 %v815
    %v883 = vpop.f32.mrb[0].mxu0
    %v884 = vadd.f32 0.0, %v883
    %v885 = vpop.f32.mrb[0].mxu0
    %886 = vdwg.mxu0
    %887 = vst.msk [vmem:[#allocation8 + $0x1] sm:$0x1] %vm521, %v884
    %889 = vrot.lane.b32.xlu0 %v807, 32
    %v890 = vpop.permute.xlu0 %889
    %v893 = vsel %vm447, %v809, 0
    %895 = vmatprep.subr.mxu0 0.0
    %896 = vmatpush1.msra.mxu0 %v890
    %897 = vmatprep.subr.mxu0 0.0
    %898 = vmatpush1.msra.mxu0 0.0
    %899 = vmatprep.subr.mxu0 0.0
    %900 = vmatpush1.msra.mxu0 0.0
    %901 = vmatprep.subr.mxu0 0.0
    %902 = vmatpush1.msra.mxu0 0.0
    %903 = vmatprep.subr.mxu0 0.0
    %904 = vmatpush1.msra.mxu0 0.0
    %905 = vmatprep.subr.mxu0 0.0
    %906 = vmatpush1.msra.mxu0 0.0
    %907 = vmatprep.subr.mxu0 0.0
    %908 = vmatpush1.msra.mxu0 0.0
    %909 = vmatprep.subr.mxu0 0.0
    %910 = vmatpush1.msra.mxu0 0.0
    %911 = vmatprep.subr.mxu0 0.0
    %912 = vmatpush1.msra.mxu0 0.0
    %913 = vmatprep.subr.mxu0 0.0
    %914 = vmatpush1.msra.mxu0 0.0
    %915 = vmatprep.subr.mxu0 0.0
    %916 = vmatpush1.msra.mxu0 0.0
    %917 = vmatprep.subr.mxu0 0.0
    %918 = vmatpush1.msra.mxu0 0.0
    %919 = vmatprep.subr.mxu0 0.0
    %920 = vmatpush1.msra.mxu0 0.0
    %921 = vmatprep.subr.mxu0 0.0
    %922 = vmatpush1.msra.mxu0 0.0
    %923 = vmatprep.subr.mxu0 0.0
    %924 = vmatpush1.msra.mxu0 0.0
    %925 = vmatprep.subr.mxu0 0.0
    %926 = vmatpush1.msra.mxu0 0.0
    %927 = vmatprep.subr.mxu0 0.0
    %928 = vmatpush1.msra.mxu0 0.0
    %929 = vmatprep.subr.mxu0 0.0
    %930 = vmatpush1.msra.mxu0 0.0
    %931 = vmatprep.subr.mxu0 0.0
    %932 = vmatpush1.msra.mxu0 0.0
    %933 = vmatprep.subr.mxu0 0.0
    %934 = vmatpush1.msra.mxu0 0.0
    %935 = vmatprep.subr.mxu0 0.0
    %936 = vmatpush1.msra.mxu0 0.0
    %937 = vmatprep.subr.mxu0 0.0
    %938 = vmatpush1.msra.mxu0 0.0
    %939 = vmatprep.subr.mxu0 0.0
    %940 = vmatpush1.msra.mxu0 0.0
    %941 = vmatprep.subr.mxu0 0.0
    %942 = vmatpush1.msra.mxu0 0.0
    %943 = vmatprep.subr.mxu0 0.0
    %944 = vmatpush1.msra.mxu0 0.0
    %945 = vmatprep.subr.mxu0 0.0
    %946 = vmatpush1.msra.mxu0 0.0
    %947 = vmatprep.subr.mxu0 0.0
    %948 = vmatpush1.msra.mxu0 0.0
    %949 = vmatprep.subr.mxu0 0.0
    %950 = vmatpush1.msra.mxu0 0.0
    %951 = vmatprep.subr.mxu0 0.0
    %952 = vmatpush1.msra.mxu0 0.0
    %953 = vmatprep.subr.mxu0 0.0
    %954 = vmatpush1.msra.mxu0 0.0
    %955 = vmatprep.subr.mxu0 0.0
    %956 = vmatpush1.msra.mxu0 0.0
    %957 = vmatprep.subr.mxu0 0.0
    %958 = vmatpush1.msra.mxu0 0.0
    %959 = vmatprep.mubr.f32.mxu0 0.0
    %960 = vmatmul.mubr.f32.gmra.mrb[0].mxu0 %v893
    %v961 = vpop.f32.mrb[0].mxu0
    %v962 = vadd.f32 0.0, %v961
    %v963 = vpop.f32.mrb[0].mxu0
    %964 = vdwg.mxu0
    %966 = vrot.lane.b32.xlu0 %v962, 32
    %v967 = vpop.permute.xlu0 %966
    %969 = vst.msk [vmem:[#allocation8 + $0x6] sm:$0x1] %vm604, %v967
    %s970 = smul.u32 2, 2
    %s971 = smul.addr %s970, 8
    %s972 = scalar_lea.vmem [#allocation2], %s971
    %v973 = vld [vmem:[%s972] sm:$0xff]
    %s974 = smul.u32 5, 2
    %s975 = smul.addr %s974, 8
    %s976 = scalar_lea.vmem [#allocation2], %s975
    %v977 = vld [vmem:[%s976 + $0x8] sm:$0xff]
    %v978 = vsel %vm78, %v812, 0
    %980 = vmatprep.subr.mxu0 0.0
    %981 = vmatpush1.msra.mxu0 %v232
    %982 = vmatprep.subr.mxu0 0.0
    %983 = vmatpush1.msra.mxu0 %v233
    %984 = vmatprep.subr.mxu0 0.0
    %985 = vmatpush1.msra.mxu0 %v234
    %986 = vmatprep.subr.mxu0 0.0
    %987 = vmatpush1.msra.mxu0 %v235
    %988 = vmatprep.subr.mxu0 0.0
    %989 = vmatpush1.msra.mxu0 0.0
    %990 = vmatprep.subr.mxu0 0.0
    %991 = vmatpush1.msra.mxu0 0.0
    %992 = vmatprep.subr.mxu0 0.0
    %993 = vmatpush1.msra.mxu0 0.0
    %994 = vmatprep.subr.mxu0 0.0
    %995 = vmatpush1.msra.mxu0 0.0
    %996 = vmatprep.subr.mxu0 0.0
    %997 = vmatpush1.msra.mxu0 0.0
    %998 = vmatprep.subr.mxu0 0.0
    %999 = vmatpush1.msra.mxu0 0.0
    %1000 = vmatprep.subr.mxu0 0.0
    %1001 = vmatpush1.msra.mxu0 0.0
    %1002 = vmatprep.subr.mxu0 0.0
    %1003 = vmatpush1.msra.mxu0 0.0
    %1004 = vmatprep.subr.mxu0 0.0
    %1005 = vmatpush1.msra.mxu0 0.0
    %1006 = vmatprep.subr.mxu0 0.0
    %1007 = vmatpush1.msra.mxu0 0.0
    %1008 = vmatprep.subr.mxu0 0.0
    %1009 = vmatpush1.msra.mxu0 0.0
    %1010 = vmatprep.subr.mxu0 0.0
    %1011 = vmatpush1.msra.mxu0 0.0
    %1012 = vmatprep.subr.mxu0 0.0
    %1013 = vmatpush1.msra.mxu0 0.0
    %1014 = vmatprep.subr.mxu0 0.0
    %1015 = vmatpush1.msra.mxu0 0.0
    %1016 = vmatprep.subr.mxu0 0.0
    %1017 = vmatpush1.msra.mxu0 0.0
    %1018 = vmatprep.subr.mxu0 0.0
    %1019 = vmatpush1.msra.mxu0 0.0
    %1020 = vmatprep.subr.mxu0 0.0
    %1021 = vmatpush1.msra.mxu0 0.0
    %1022 = vmatprep.subr.mxu0 0.0
    %1023 = vmatpush1.msra.mxu0 0.0
    %1024 = vmatprep.subr.mxu0 0.0
    %1025 = vmatpush1.msra.mxu0 0.0
    %1026 = vmatprep.subr.mxu0 0.0
    %1027 = vmatpush1.msra.mxu0 0.0
    %1028 = vmatprep.subr.mxu0 0.0
    %1029 = vmatpush1.msra.mxu0 0.0
    %1030 = vmatprep.subr.mxu0 0.0
    %1031 = vmatpush1.msra.mxu0 0.0
    %1032 = vmatprep.subr.mxu0 0.0
    %1033 = vmatpush1.msra.mxu0 0.0
    %1034 = vmatprep.subr.mxu0 0.0
    %1035 = vmatpush1.msra.mxu0 0.0
    %1036 = vmatprep.subr.mxu0 0.0
    %1037 = vmatpush1.msra.mxu0 0.0
    %1038 = vmatprep.subr.mxu0 0.0
    %1039 = vmatpush1.msra.mxu0 0.0
    %1040 = vmatprep.subr.mxu0 0.0
    %1041 = vmatpush1.msra.mxu0 0.0
    %1042 = vmatprep.subr.mxu0 0.0
    %1043 = vmatpush1.msra.mxu0 0.0
    %1044 = vmatprep.mubr.f32.mxu0 0.0
    %1045 = vmatmul.mubr.f32.gmra.mrb[0].mxu0 %v978
    %v1046 = vpop.f32.mrb[0].mxu0
    %v1047 = vadd.f32 0.0, %v1046
    %v1048 = vpop.f32.mrb[0].mxu0
    %1049 = vdwg.mxu0
    %v1050 = vadd.f32 %v973, %v1047
    %v1051 = vxor.u32 %v1050, 2147483648
    %v1052 = vmul.f32 %v1051, 1.442695
    %v1053 = vpow.pop %v1052
    %v1054 = vadd.f32 %v1053, 1.0
    %v1055 = vrcp.pop %v1054
    %v1056 = vmul.f32 1.0, %v1055
    %v1057 = vtanh.pop %v1050
    %v1058 = vmul.f32 %v1056, %v704
    %1060 = vrot.lane.b32.xlu0 %v1057, 64
    %v1061 = vpop.permute.xlu0 %1060
    %v1063 = vmul.f32 %v1056, %v1061
    %1065 = vrot.lane.b32.xlu0 %v1063, 32
    %v1066 = vpop.permute.xlu0 %1065
    %v1068 = vadd.f32 %v1058, %v1066
    %v1069 = vtanh.pop %v1068
    %1071 = vrot.lane.b32.xlu0 %v1069, 64
    %v1072 = vpop.permute.xlu0 %1071
    %v1074 = vmul.f32 %v1056, %v1072
    %v1075 = vsel %vm78, %v890, 0
    %1077 = vmatprep.subr.mxu0 0.0
    %1078 = vmatpush1.msra.mxu0 %v236
    %1079 = vmatprep.subr.mxu0 0.0
    %1080 = vmatpush1.msra.mxu0 %v237
    %1081 = vmatprep.subr.mxu0 0.0
    %1082 = vmatpush1.msra.mxu0 %v238
    %1083 = vmatprep.subr.mxu0 0.0
    %1084 = vmatpush1.msra.mxu0 %v239
    %1085 = vmatprep.subr.mxu0 0.0
    %1086 = vmatpush1.msra.mxu0 0.0
    %1087 = vmatprep.subr.mxu0 0.0
    %1088 = vmatpush1.msra.mxu0 0.0
    %1089 = vmatprep.subr.mxu0 0.0
    %1090 = vmatpush1.msra.mxu0 0.0
    %1091 = vmatprep.subr.mxu0 0.0
    %1092 = vmatpush1.msra.mxu0 0.0
    %1093 = vmatprep.subr.mxu0 0.0
    %1094 = vmatpush1.msra.mxu0 0.0
    %1095 = vmatprep.subr.mxu0 0.0
    %1096 = vmatpush1.msra.mxu0 0.0
    %1097 = vmatprep.subr.mxu0 0.0
    %1098 = vmatpush1.msra.mxu0 0.0
    %1099 = vmatprep.subr.mxu0 0.0
    %1100 = vmatpush1.msra.mxu0 0.0
    %1101 = vmatprep.subr.mxu0 0.0
    %1102 = vmatpush1.msra.mxu0 0.0
    %1103 = vmatprep.subr.mxu0 0.0
    %1104 = vmatpush1.msra.mxu0 0.0
    %1105 = vmatprep.subr.mxu0 0.0
    %1106 = vmatpush1.msra.mxu0 0.0
    %1107 = vmatprep.subr.mxu0 0.0
    %1108 = vmatpush1.msra.mxu0 0.0
    %1109 = vmatprep.subr.mxu0 0.0
    %1110 = vmatpush1.msra.mxu0 0.0
    %1111 = vmatprep.subr.mxu0 0.0
    %1112 = vmatpush1.msra.mxu0 0.0
    %1113 = vmatprep.subr.mxu0 0.0
    %1114 = vmatpush1.msra.mxu0 0.0
    %1115 = vmatprep.subr.mxu0 0.0
    %1116 = vmatpush1.msra.mxu0 0.0
    %1117 = vmatprep.subr.mxu0 0.0
    %1118 = vmatpush1.msra.mxu0 0.0
    %1119 = vmatprep.subr.mxu0 0.0
    %1120 = vmatpush1.msra.mxu0 0.0
    %1121 = vmatprep.subr.mxu0 0.0
    %1122 = vmatpush1.msra.mxu0 0.0
    %1123 = vmatprep.subr.mxu0 0.0
    %1124 = vmatpush1.msra.mxu0 0.0
    %1125 = vmatprep.subr.mxu0 0.0
    %1126 = vmatpush1.msra.mxu0 0.0
    %1127 = vmatprep.subr.mxu0 0.0
    %1128 = vmatpush1.msra.mxu0 0.0
    %1129 = vmatprep.subr.mxu0 0.0
    %1130 = vmatpush1.msra.mxu0 0.0
    %1131 = vmatprep.subr.mxu0 0.0
    %1132 = vmatpush1.msra.mxu0 0.0
    %1133 = vmatprep.subr.mxu0 0.0
    %1134 = vmatpush1.msra.mxu0 0.0
    %1135 = vmatprep.subr.mxu0 0.0
    %1136 = vmatpush1.msra.mxu0 0.0
    %1137 = vmatprep.subr.mxu0 0.0
    %1138 = vmatpush1.msra.mxu0 0.0
    %1139 = vmatprep.subr.mxu0 0.0
    %1140 = vmatpush1.msra.mxu0 0.0
    %1141 = vmatprep.mubr.f32.mxu0 0.0
    %1142 = vmatmul.mubr.f32.gmra.mrb[0].mxu0 %v1075
    %v1143 = vpop.f32.mrb[0].mxu0
    %v1144 = vadd.f32 0.0, %v1143
    %v1145 = vpop.f32.mrb[0].mxu0
    %1146 = vdwg.mxu0
    %v1147 = vadd.f32 %v977, %v1144
    %v1148 = vxor.u32 %v1147, 2147483648
    %v1149 = vmul.f32 %v1148, 1.442695
    %v1150 = vpow.pop %v1149
    %v1151 = vadd.f32 %v1150, 1.0
    %v1152 = vrcp.pop %v1151
    %v1153 = vmul.f32 1.0, %v1152
    %v1154 = vtanh.pop %v1147
    %v1155 = vmul.f32 %v1153, %v801
    %1157 = vrot.lane.b32.xlu0 %v1154, 64
    %v1158 = vpop.permute.xlu0 %1157
    %v1160 = vmul.f32 %v1153, %v1158
    %1162 = vrot.lane.b32.xlu0 %v1160, 32
    %v1163 = vpop.permute.xlu0 %1162
    %v1165 = vadd.f32 %v1155, %v1163
    %v1166 = vtanh.pop %v1165
    %1168 = vrot.lane.b32.xlu0 %v1166, 64
    %v1169 = vpop.permute.xlu0 %1168
    %v1171 = vmul.f32 %v1153, %v1169
    %v1172 = vld [vmem:[#allocation3 + $0x2] sm:$0x1]
    %v1173 = vld [vmem:[#allocation3 + $0x5] sm:$0x1]
    %1175 = vrot.lane.b32.xlu0 %v1074, 32
    %v1176 = vpop.permute.xlu0 %1175
    %v1179 = vsel %vm447, %v1172, 0
    %1181 = vmatprep.subr.mxu0 0.0
    %1182 = vmatpush1.msra.mxu0 %v1176
    %1183 = vmatprep.subr.mxu0 0.0
    %1184 = vmatpush1.msra.mxu0 0.0
    %1185 = vmatprep.subr.mxu0 0.0
    %1186 = vmatpush1.msra.mxu0 0.0
    %1187 = vmatprep.subr.mxu0 0.0
    %1188 = vmatpush1.msra.mxu0 0.0
    %1189 = vmatprep.subr.mxu0 0.0
    %1190 = vmatpush1.msra.mxu0 0.0
    %1191 = vmatprep.subr.mxu0 0.0
    %1192 = vmatpush1.msra.mxu0 0.0
    %1193 = vmatprep.subr.mxu0 0.0
    %1194 = vmatpush1.msra.mxu0 0.0
    %1195 = vmatprep.subr.mxu0 0.0
    %1196 = vmatpush1.msra.mxu0 0.0
    %1197 = vmatprep.subr.mxu0 0.0
    %1198 = vmatpush1.msra.mxu0 0.0
    %1199 = vmatprep.subr.mxu0 0.0
    %1200 = vmatpush1.msra.mxu0 0.0
    %1201 = vmatprep.subr.mxu0 0.0
    %1202 = vmatpush1.msra.mxu0 0.0
    %1203 = vmatprep.subr.mxu0 0.0
    %1204 = vmatpush1.msra.mxu0 0.0
    %1205 = vmatprep.subr.mxu0 0.0
    %1206 = vmatpush1.msra.mxu0 0.0
    %1207 = vmatprep.subr.mxu0 0.0
    %1208 = vmatpush1.msra.mxu0 0.0
    %1209 = vmatprep.subr.mxu0 0.0
    %1210 = vmatpush1.msra.mxu0 0.0
    %1211 = vmatprep.subr.mxu0 0.0
    %1212 = vmatpush1.msra.mxu0 0.0
    %1213 = vmatprep.subr.mxu0 0.0
    %1214 = vmatpush1.msra.mxu0 0.0
    %1215 = vmatprep.subr.mxu0 0.0
    %1216 = vmatpush1.msra.mxu0 0.0
    %1217 = vmatprep.subr.mxu0 0.0
    %1218 = vmatpush1.msra.mxu0 0.0
    %1219 = vmatprep.subr.mxu0 0.0
    %1220 = vmatpush1.msra.mxu0 0.0
    %1221 = vmatprep.subr.mxu0 0.0
    %1222 = vmatpush1.msra.mxu0 0.0
    %1223 = vmatprep.subr.mxu0 0.0
    %1224 = vmatpush1.msra.mxu0 0.0
    %1225 = vmatprep.subr.mxu0 0.0
    %1226 = vmatpush1.msra.mxu0 0.0
    %1227 = vmatprep.subr.mxu0 0.0
    %1228 = vmatpush1.msra.mxu0 0.0
    %1229 = vmatprep.subr.mxu0 0.0
    %1230 = vmatpush1.msra.mxu0 0.0
    %1231 = vmatprep.subr.mxu0 0.0
    %1232 = vmatpush1.msra.mxu0 0.0
    %1233 = vmatprep.subr.mxu0 0.0
    %1234 = vmatpush1.msra.mxu0 0.0
    %1235 = vmatprep.subr.mxu0 0.0
    %1236 = vmatpush1.msra.mxu0 0.0
    %1237 = vmatprep.subr.mxu0 0.0
    %1238 = vmatpush1.msra.mxu0 0.0
    %1239 = vmatprep.subr.mxu0 0.0
    %1240 = vmatpush1.msra.mxu0 0.0
    %1241 = vmatprep.subr.mxu0 0.0
    %1242 = vmatpush1.msra.mxu0 0.0
    %1243 = vmatprep.subr.mxu0 0.0
    %1244 = vmatpush1.msra.mxu0 0.0
    %1245 = vmatprep.mubr.f32.mxu0 0.0
    %1246 = vmatmul.mubr.f32.gmra.mrb[0].mxu0 %v1179
    %v1247 = vpop.f32.mrb[0].mxu0
    %v1248 = vadd.f32 0.0, %v1247
    %v1249 = vpop.f32.mrb[0].mxu0
    %1250 = vdwg.mxu0
    %1251 = vst.msk [vmem:[#allocation8 + $0x2] sm:$0x1] %vm521, %v1248
    %1253 = vrot.lane.b32.xlu0 %v1171, 32
    %v1254 = vpop.permute.xlu0 %1253
    %v1257 = vsel %vm447, %v1173, 0
    %1259 = vmatprep.subr.mxu0 0.0
    %1260 = vmatpush1.msra.mxu0 %v1254
    %1261 = vmatprep.subr.mxu0 0.0
    %1262 = vmatpush1.msra.mxu0 0.0
    %1263 = vmatprep.subr.mxu0 0.0
    %1264 = vmatpush1.msra.mxu0 0.0
    %1265 = vmatprep.subr.mxu0 0.0
    %1266 = vmatpush1.msra.mxu0 0.0
    %1267 = vmatprep.subr.mxu0 0.0
    %1268 = vmatpush1.msra.mxu0 0.0
    %1269 = vmatprep.subr.mxu0 0.0
    %1270 = vmatpush1.msra.mxu0 0.0
    %1271 = vmatprep.subr.mxu0 0.0
    %1272 = vmatpush1.msra.mxu0 0.0
    %1273 = vmatprep.subr.mxu0 0.0
    %1274 = vmatpush1.msra.mxu0 0.0
    %1275 = vmatprep.subr.mxu0 0.0
    %1276 = vmatpush1.msra.mxu0 0.0
    %1277 = vmatprep.subr.mxu0 0.0
    %1278 = vmatpush1.msra.mxu0 0.0
    %1279 = vmatprep.subr.mxu0 0.0
    %1280 = vmatpush1.msra.mxu0 0.0
    %1281 = vmatprep.subr.mxu0 0.0
    %1282 = vmatpush1.msra.mxu0 0.0
    %1283 = vmatprep.subr.mxu0 0.0
    %1284 = vmatpush1.msra.mxu0 0.0
    %1285 = vmatprep.subr.mxu0 0.0
    %1286 = vmatpush1.msra.mxu0 0.0
    %1287 = vmatprep.subr.mxu0 0.0
    %1288 = vmatpush1.msra.mxu0 0.0
    %1289 = vmatprep.subr.mxu0 0.0
    %1290 = vmatpush1.msra.mxu0 0.0
    %1291 = vmatprep.subr.mxu0 0.0
    %1292 = vmatpush1.msra.mxu0 0.0
    %1293 = vmatprep.subr.mxu0 0.0
    %1294 = vmatpush1.msra.mxu0 0.0
    %1295 = vmatprep.subr.mxu0 0.0
    %1296 = vmatpush1.msra.mxu0 0.0
    %1297 = vmatprep.subr.mxu0 0.0
    %1298 = vmatpush1.msra.mxu0 0.0
    %1299 = vmatprep.subr.mxu0 0.0
    %1300 = vmatpush1.msra.mxu0 0.0
    %1301 = vmatprep.subr.mxu0 0.0
    %1302 = vmatpush1.msra.mxu0 0.0
    %1303 = vmatprep.subr.mxu0 0.0
    %1304 = vmatpush1.msra.mxu0 0.0
    %1305 = vmatprep.subr.mxu0 0.0
    %1306 = vmatpush1.msra.mxu0 0.0
    %1307 = vmatprep.subr.mxu0 0.0
    %1308 = vmatpush1.msra.mxu0 0.0
    %1309 = vmatprep.subr.mxu0 0.0
    %1310 = vmatpush1.msra.mxu0 0.0
    %1311 = vmatprep.subr.mxu0 0.0
    %1312 = vmatpush1.msra.mxu0 0.0
    %1313 = vmatprep.subr.mxu0 0.0
    %1314 = vmatpush1.msra.mxu0 0.0
    %1315 = vmatprep.subr.mxu0 0.0
    %1316 = vmatpush1.msra.mxu0 0.0
    %1317 = vmatprep.subr.mxu0 0.0
    %1318 = vmatpush1.msra.mxu0 0.0
    %1319 = vmatprep.subr.mxu0 0.0
    %1320 = vmatpush1.msra.mxu0 0.0
    %1321 = vmatprep.subr.mxu0 0.0
    %1322 = vmatpush1.msra.mxu0 0.0
    %1323 = vmatprep.mubr.f32.mxu0 0.0
    %1324 = vmatmul.mubr.f32.gmra.mrb[0].mxu0 %v1257
    %v1325 = vpop.f32.mrb[0].mxu0
    %v1326 = vadd.f32 0.0, %v1325
    %v1327 = vpop.f32.mrb[0].mxu0
    %1328 = vdwg.mxu0
    %1330 = vrot.lane.b32.xlu0 %v1326, 32
    %v1331 = vpop.permute.xlu0 %1330
    %1333 = vst.msk [vmem:[#allocation8 + $0x5] sm:$0x1] %vm604, %v1331
    %s1334 = smul.u32 3, 2
    %s1335 = smul.addr %s1334, 8
    %s1336 = scalar_lea.vmem [#allocation2], %s1335
    %v1337 = vld [vmem:[%s1336] sm:$0xff]
    %s1338 = smul.u32 4, 2
    %s1339 = smul.addr %s1338, 8
    %s1340 = scalar_lea.vmem [#allocation2], %s1339
    %v1341 = vld [vmem:[%s1340 + $0x8] sm:$0xff]
    %v1342 = vsel %vm78, %v1176, 0
    %1344 = vmatprep.subr.mxu0 0.0
    %1345 = vmatpush1.msra.mxu0 %v232
    %1346 = vmatprep.subr.mxu0 0.0
    %1347 = vmatpush1.msra.mxu0 %v233
    %1348 = vmatprep.subr.mxu0 0.0
    %1349 = vmatpush1.msra.mxu0 %v234
    %1350 = vmatprep.subr.mxu0 0.0
    %1351 = vmatpush1.msra.mxu0 %v235
    %1352 = vmatprep.subr.mxu0 0.0
    %1353 = vmatpush1.msra.mxu0 0.0
    %1354 = vmatprep.subr.mxu0 0.0
    %1355 = vmatpush1.msra.mxu0 0.0
    %1356 = vmatprep.subr.mxu0 0.0
    %1357 = vmatpush1.msra.mxu0 0.0
    %1358 = vmatprep.subr.mxu0 0.0
    %1359 = vmatpush1.msra.mxu0 0.0
    %1360 = vmatprep.subr.mxu0 0.0
    %1361 = vmatpush1.msra.mxu0 0.0
    %1362 = vmatprep.subr.mxu0 0.0
    %1363 = vmatpush1.msra.mxu0 0.0
    %1364 = vmatprep.subr.mxu0 0.0
    %1365 = vmatpush1.msra.mxu0 0.0
    %1366 = vmatprep.subr.mxu0 0.0
    %1367 = vmatpush1.msra.mxu0 0.0
    %1368 = vmatprep.subr.mxu0 0.0
    %1369 = vmatpush1.msra.mxu0 0.0
    %1370 = vmatprep.subr.mxu0 0.0
    %1371 = vmatpush1.msra.mxu0 0.0
    %1372 = vmatprep.subr.mxu0 0.0
    %1373 = vmatpush1.msra.mxu0 0.0
    %1374 = vmatprep.subr.mxu0 0.0
    %1375 = vmatpush1.msra.mxu0 0.0
    %1376 = vmatprep.subr.mxu0 0.0
    %1377 = vmatpush1.msra.mxu0 0.0
    %1378 = vmatprep.subr.mxu0 0.0
    %1379 = vmatpush1.msra.mxu0 0.0
    %1380 = vmatprep.subr.mxu0 0.0
    %1381 = vmatpush1.msra.mxu0 0.0
    %1382 = vmatprep.subr.mxu0 0.0
    %1383 = vmatpush1.msra.mxu0 0.0
    %1384 = vmatprep.subr.mxu0 0.0
    %1385 = vmatpush1.msra.mxu0 0.0
    %1386 = vmatprep.subr.mxu0 0.0
    %1387 = vmatpush1.msra.mxu0 0.0
    %1388 = vmatprep.subr.mxu0 0.0
    %1389 = vmatpush1.msra.mxu0 0.0
    %1390 = vmatprep.subr.mxu0 0.0
    %1391 = vmatpush1.msra.mxu0 0.0
    %1392 = vmatprep.subr.mxu0 0.0
    %1393 = vmatpush1.msra.mxu0 0.0
    %1394 = vmatprep.subr.mxu0 0.0
    %1395 = vmatpush1.msra.mxu0 0.0
    %1396 = vmatprep.subr.mxu0 0.0
    %1397 = vmatpush1.msra.mxu0 0.0
    %1398 = vmatprep.subr.mxu0 0.0
    %1399 = vmatpush1.msra.mxu0 0.0
    %1400 = vmatprep.subr.mxu0 0.0
    %1401 = vmatpush1.msra.mxu0 0.0
    %1402 = vmatprep.subr.mxu0 0.0
    %1403 = vmatpush1.msra.mxu0 0.0
    %1404 = vmatprep.subr.mxu0 0.0
    %1405 = vmatpush1.msra.mxu0 0.0
    %1406 = vmatprep.subr.mxu0 0.0
    %1407 = vmatpush1.msra.mxu0 0.0
    %1408 = vmatprep.mubr.f32.mxu0 0.0
    %1409 = vmatmul.mubr.f32.gmra.mrb[0].mxu0 %v1342
    %v1410 = vpop.f32.mrb[0].mxu0
    %v1411 = vadd.f32 0.0, %v1410
    %v1412 = vpop.f32.mrb[0].mxu0
    %1413 = vdwg.mxu0
    %v1414 = vadd.f32 %v1337, %v1411
    %v1415 = vxor.u32 %v1414, 2147483648
    %v1416 = vmul.f32 %v1415, 1.442695
    %v1417 = vpow.pop %v1416
    %v1418 = vadd.f32 %v1417, 1.0
    %v1419 = vrcp.pop %v1418
    %v1420 = vmul.f32 1.0, %v1419
    %v1421 = vtanh.pop %v1414
    %v1422 = vmul.f32 %v1420, %v1068
    %1424 = vrot.lane.b32.xlu0 %v1421, 64
    %v1425 = vpop.permute.xlu0 %1424
    %v1427 = vmul.f32 %v1420, %v1425
    %1429 = vrot.lane.b32.xlu0 %v1427, 32
    %v1430 = vpop.permute.xlu0 %1429
    %v1432 = vadd.f32 %v1422, %v1430
    %v1433 = vtanh.pop %v1432
    %1435 = vrot.lane.b32.xlu0 %v1433, 64
    %v1436 = vpop.permute.xlu0 %1435
    %v1438 = vmul.f32 %v1420, %v1436
    %v1439 = vsel %vm78, %v1254, 0
    %1441 = vmatprep.subr.mxu0 0.0
    %1442 = vmatpush1.msra.mxu0 %v236
    %1443 = vmatprep.subr.mxu0 0.0
    %1444 = vmatpush1.msra.mxu0 %v237
    %1445 = vmatprep.subr.mxu0 0.0
    %1446 = vmatpush1.msra.mxu0 %v238
    %1447 = vmatprep.subr.mxu0 0.0
    %1448 = vmatpush1.msra.mxu0 %v239
    %1449 = vmatprep.subr.mxu0 0.0
    %1450 = vmatpush1.msra.mxu0 0.0
    %1451 = vmatprep.subr.mxu0 0.0
    %1452 = vmatpush1.msra.mxu0 0.0
    %1453 = vmatprep.subr.mxu0 0.0
    %1454 = vmatpush1.msra.mxu0 0.0
    %1455 = vmatprep.subr.mxu0 0.0
    %1456 = vmatpush1.msra.mxu0 0.0
    %1457 = vmatprep.subr.mxu0 0.0
    %1458 = vmatpush1.msra.mxu0 0.0
    %1459 = vmatprep.subr.mxu0 0.0
    %1460 = vmatpush1.msra.mxu0 0.0
    %1461 = vmatprep.subr.mxu0 0.0
    %1462 = vmatpush1.msra.mxu0 0.0
    %1463 = vmatprep.subr.mxu0 0.0
    %1464 = vmatpush1.msra.mxu0 0.0
    %1465 = vmatprep.subr.mxu0 0.0
    %1466 = vmatpush1.msra.mxu0 0.0
    %1467 = vmatprep.subr.mxu0 0.0
    %1468 = vmatpush1.msra.mxu0 0.0
    %1469 = vmatprep.subr.mxu0 0.0
    %1470 = vmatpush1.msra.mxu0 0.0
    %1471 = vmatprep.subr.mxu0 0.0
    %1472 = vmatpush1.msra.mxu0 0.0
    %1473 = vmatprep.subr.mxu0 0.0
    %1474 = vmatpush1.msra.mxu0 0.0
    %1475 = vmatprep.subr.mxu0 0.0
    %1476 = vmatpush1.msra.mxu0 0.0
    %1477 = vmatprep.subr.mxu0 0.0
    %1478 = vmatpush1.msra.mxu0 0.0
    %1479 = vmatprep.subr.mxu0 0.0
    %1480 = vmatpush1.msra.mxu0 0.0
    %1481 = vmatprep.subr.mxu0 0.0
    %1482 = vmatpush1.msra.mxu0 0.0
    %1483 = vmatprep.subr.mxu0 0.0
    %1484 = vmatpush1.msra.mxu0 0.0
    %1485 = vmatprep.subr.mxu0 0.0
    %1486 = vmatpush1.msra.mxu0 0.0
    %1487 = vmatprep.subr.mxu0 0.0
    %1488 = vmatpush1.msra.mxu0 0.0
    %1489 = vmatprep.subr.mxu0 0.0
    %1490 = vmatpush1.msra.mxu0 0.0
    %1491 = vmatprep.subr.mxu0 0.0
    %1492 = vmatpush1.msra.mxu0 0.0
    %1493 = vmatprep.subr.mxu0 0.0
    %1494 = vmatpush1.msra.mxu0 0.0
    %1495 = vmatprep.subr.mxu0 0.0
    %1496 = vmatpush1.msra.mxu0 0.0
    %1497 = vmatprep.subr.mxu0 0.0
    %1498 = vmatpush1.msra.mxu0 0.0
    %1499 = vmatprep.subr.mxu0 0.0
    %1500 = vmatpush1.msra.mxu0 0.0
    %1501 = vmatprep.subr.mxu0 0.0
    %1502 = vmatpush1.msra.mxu0 0.0
    %1503 = vmatprep.subr.mxu0 0.0
    %1504 = vmatpush1.msra.mxu0 0.0
    %1505 = vmatprep.mubr.f32.mxu0 0.0
    %1506 = vmatmul.mubr.f32.gmra.mrb[0].mxu0 %v1439
    %v1507 = vpop.f32.mrb[0].mxu0
    %v1508 = vadd.f32 0.0, %v1507
    %v1509 = vpop.f32.mrb[0].mxu0
    %1510 = vdwg.mxu0
    %v1511 = vadd.f32 %v1341, %v1508
    %v1512 = vxor.u32 %v1511, 2147483648
    %v1513 = vmul.f32 %v1512, 1.442695
    %v1514 = vpow.pop %v1513
    %v1515 = vadd.f32 %v1514, 1.0
    %v1516 = vrcp.pop %v1515
    %v1517 = vmul.f32 1.0, %v1516
    %v1518 = vtanh.pop %v1511
    %v1519 = vmul.f32 %v1517, %v1165
    %1521 = vrot.lane.b32.xlu0 %v1518, 64
    %v1522 = vpop.permute.xlu0 %1521
    %v1524 = vmul.f32 %v1517, %v1522
    %1526 = vrot.lane.b32.xlu0 %v1524, 32
    %v1527 = vpop.permute.xlu0 %1526
    %v1529 = vadd.f32 %v1519, %v1527
    %v1530 = vtanh.pop %v1529
    %1532 = vrot.lane.b32.xlu0 %v1530, 64
    %v1533 = vpop.permute.xlu0 %1532
    %v1535 = vmul.f32 %v1517, %v1533
    %v1536 = vld [vmem:[#allocation3 + $0x3] sm:$0x1]
    %v1537 = vld [vmem:[#allocation3 + $0x4] sm:$0x1]
    %1539 = vrot.lane.b32.xlu0 %v1438, 32
    %v1540 = vpop.permute.xlu0 %1539
    %v1543 = vsel %vm447, %v1536, 0
    %1545 = vmatprep.subr.mxu0 0.0
    %1546 = vmatpush1.msra.mxu0 %v1540
    %1547 = vmatprep.subr.mxu0 0.0
    %1548 = vmatpush1.msra.mxu0 0.0
    %1549 = vmatprep.subr.mxu0 0.0
    %1550 = vmatpush1.msra.mxu0 0.0
    %1551 = vmatprep.subr.mxu0 0.0
    %1552 = vmatpush1.msra.mxu0 0.0
    %1553 = vmatprep.subr.mxu0 0.0
    %1554 = vmatpush1.msra.mxu0 0.0
    %1555 = vmatprep.subr.mxu0 0.0
    %1556 = vmatpush1.msra.mxu0 0.0
    %1557 = vmatprep.subr.mxu0 0.0
    %1558 = vmatpush1.msra.mxu0 0.0
    %1559 = vmatprep.subr.mxu0 0.0
    %1560 = vmatpush1.msra.mxu0 0.0
    %1561 = vmatprep.subr.mxu0 0.0
    %1562 = vmatpush1.msra.mxu0 0.0
    %1563 = vmatprep.subr.mxu0 0.0
    %1564 = vmatpush1.msra.mxu0 0.0
    %1565 = vmatprep.subr.mxu0 0.0
    %1566 = vmatpush1.msra.mxu0 0.0
    %1567 = vmatprep.subr.mxu0 0.0
    %1568 = vmatpush1.msra.mxu0 0.0
    %1569 = vmatprep.subr.mxu0 0.0
    %1570 = vmatpush1.msra.mxu0 0.0
    %1571 = vmatprep.subr.mxu0 0.0
    %1572 = vmatpush1.msra.mxu0 0.0
    %1573 = vmatprep.subr.mxu0 0.0
    %1574 = vmatpush1.msra.mxu0 0.0
    %1575 = vmatprep.subr.mxu0 0.0
    %1576 = vmatpush1.msra.mxu0 0.0
    %1577 = vmatprep.subr.mxu0 0.0
    %1578 = vmatpush1.msra.mxu0 0.0
    %1579 = vmatprep.subr.mxu0 0.0
    %1580 = vmatpush1.msra.mxu0 0.0
    %1581 = vmatprep.subr.mxu0 0.0
    %1582 = vmatpush1.msra.mxu0 0.0
    %1583 = vmatprep.subr.mxu0 0.0
    %1584 = vmatpush1.msra.mxu0 0.0
    %1585 = vmatprep.subr.mxu0 0.0
    %1586 = vmatpush1.msra.mxu0 0.0
    %1587 = vmatprep.subr.mxu0 0.0
    %1588 = vmatpush1.msra.mxu0 0.0
    %1589 = vmatprep.subr.mxu0 0.0
    %1590 = vmatpush1.msra.mxu0 0.0
    %1591 = vmatprep.subr.mxu0 0.0
    %1592 = vmatpush1.msra.mxu0 0.0
    %1593 = vmatprep.subr.mxu0 0.0
    %1594 = vmatpush1.msra.mxu0 0.0
    %1595 = vmatprep.subr.mxu0 0.0
    %1596 = vmatpush1.msra.mxu0 0.0
    %1597 = vmatprep.subr.mxu0 0.0
    %1598 = vmatpush1.msra.mxu0 0.0
    %1599 = vmatprep.subr.mxu0 0.0
    %1600 = vmatpush1.msra.mxu0 0.0
    %1601 = vmatprep.subr.mxu0 0.0
    %1602 = vmatpush1.msra.mxu0 0.0
    %1603 = vmatprep.subr.mxu0 0.0
    %1604 = vmatpush1.msra.mxu0 0.0
    %1605 = vmatprep.subr.mxu0 0.0
    %1606 = vmatpush1.msra.mxu0 0.0
    %1607 = vmatprep.subr.mxu0 0.0
    %1608 = vmatpush1.msra.mxu0 0.0
    %1609 = vmatprep.mubr.f32.mxu0 0.0
    %1610 = vmatmul.mubr.f32.gmra.mrb[0].mxu0 %v1543
    %v1611 = vpop.f32.mrb[0].mxu0
    %v1612 = vadd.f32 0.0, %v1611
    %v1613 = vpop.f32.mrb[0].mxu0
    %1614 = vdwg.mxu0
    %1615 = vst.msk [vmem:[#allocation8 + $0x3] sm:$0x1] %vm521, %v1612
    %1617 = vrot.lane.b32.xlu0 %v1535, 32
    %v1618 = vpop.permute.xlu0 %1617
    %v1621 = vsel %vm447, %v1537, 0
    %1623 = vmatprep.subr.mxu0 0.0
    %1624 = vmatpush1.msra.mxu0 %v1618
    %1625 = vmatprep.subr.mxu0 0.0
    %1626 = vmatpush1.msra.mxu0 0.0
    %1627 = vmatprep.subr.mxu0 0.0
    %1628 = vmatpush1.msra.mxu0 0.0
    %1629 = vmatprep.subr.mxu0 0.0
    %1630 = vmatpush1.msra.mxu0 0.0
    %1631 = vmatprep.subr.mxu0 0.0
    %1632 = vmatpush1.msra.mxu0 0.0
    %1633 = vmatprep.subr.mxu0 0.0
    %1634 = vmatpush1.msra.mxu0 0.0
    %1635 = vmatprep.subr.mxu0 0.0
    %1636 = vmatpush1.msra.mxu0 0.0
    %1637 = vmatprep.subr.mxu0 0.0
    %1638 = vmatpush1.msra.mxu0 0.0
    %1639 = vmatprep.subr.mxu0 0.0
    %1640 = vmatpush1.msra.mxu0 0.0
    %1641 = vmatprep.subr.mxu0 0.0
    %1642 = vmatpush1.msra.mxu0 0.0
    %1643 = vmatprep.subr.mxu0 0.0
    %1644 = vmatpush1.msra.mxu0 0.0
    %1645 = vmatprep.subr.mxu0 0.0
    %1646 = vmatpush1.msra.mxu0 0.0
    %1647 = vmatprep.subr.mxu0 0.0
    %1648 = vmatpush1.msra.mxu0 0.0
    %1649 = vmatprep.subr.mxu0 0.0
    %1650 = vmatpush1.msra.mxu0 0.0
    %1651 = vmatprep.subr.mxu0 0.0
    %1652 = vmatpush1.msra.mxu0 0.0
    %1653 = vmatprep.subr.mxu0 0.0
    %1654 = vmatpush1.msra.mxu0 0.0
    %1655 = vmatprep.subr.mxu0 0.0
    %1656 = vmatpush1.msra.mxu0 0.0
    %1657 = vmatprep.subr.mxu0 0.0
    %1658 = vmatpush1.msra.mxu0 0.0
    %1659 = vmatprep.subr.mxu0 0.0
    %1660 = vmatpush1.msra.mxu0 0.0
    %1661 = vmatprep.subr.mxu0 0.0
    %1662 = vmatpush1.msra.mxu0 0.0
    %1663 = vmatprep.subr.mxu0 0.0
    %1664 = vmatpush1.msra.mxu0 0.0
    %1665 = vmatprep.subr.mxu0 0.0
    %1666 = vmatpush1.msra.mxu0 0.0
    %1667 = vmatprep.subr.mxu0 0.0
    %1668 = vmatpush1.msra.mxu0 0.0
    %1669 = vmatprep.subr.mxu0 0.0
    %1670 = vmatpush1.msra.mxu0 0.0
    %1671 = vmatprep.subr.mxu0 0.0
    %1672 = vmatpush1.msra.mxu0 0.0
    %1673 = vmatprep.subr.mxu0 0.0
    %1674 = vmatpush1.msra.mxu0 0.0
    %1675 = vmatprep.subr.mxu0 0.0
    %1676 = vmatpush1.msra.mxu0 0.0
    %1677 = vmatprep.subr.mxu0 0.0
    %1678 = vmatpush1.msra.mxu0 0.0
    %1679 = vmatprep.subr.mxu0 0.0
    %1680 = vmatpush1.msra.mxu0 0.0
    %1681 = vmatprep.subr.mxu0 0.0
    %1682 = vmatpush1.msra.mxu0 0.0
    %1683 = vmatprep.subr.mxu0 0.0
    %1684 = vmatpush1.msra.mxu0 0.0
    %1685 = vmatprep.subr.mxu0 0.0
    %1686 = vmatpush1.msra.mxu0 0.0
    %1687 = vmatprep.mubr.f32.mxu0 0.0
    %1688 = vmatmul.mubr.f32.gmra.mrb[0].mxu0 %v1621
    %v1689 = vpop.f32.mrb[0].mxu0
    %v1690 = vadd.f32 0.0, %v1689
    %v1691 = vpop.f32.mrb[0].mxu0
    %1692 = vdwg.mxu0
    %1694 = vrot.lane.b32.xlu0 %v1690, 32
    %v1695 = vpop.permute.xlu0 %1694
    %1697 = vst.msk [vmem:[#allocation8 + $0x4] sm:$0x1] %vm604, %v1695
    %v1698 = vld [vmem:[%s1340] sm:$0xff]
    %v1699 = vld [vmem:[%s1336 + $0x8] sm:$0xff]
    %v1700 = vsel %vm78, %v1540, 0
    %1702 = vmatprep.subr.mxu0 0.0
    %1703 = vmatpush1.msra.mxu0 %v232
    %1704 = vmatprep.subr.mxu0 0.0
    %1705 = vmatpush1.msra.mxu0 %v233
    %1706 = vmatprep.subr.mxu0 0.0
    %1707 = vmatpush1.msra.mxu0 %v234
    %1708 = vmatprep.subr.mxu0 0.0
    %1709 = vmatpush1.msra.mxu0 %v235
    %1710 = vmatprep.subr.mxu0 0.0
    %1711 = vmatpush1.msra.mxu0 0.0
    %1712 = vmatprep.subr.mxu0 0.0
    %1713 = vmatpush1.msra.mxu0 0.0
    %1714 = vmatprep.subr.mxu0 0.0
    %1715 = vmatpush1.msra.mxu0 0.0
    %1716 = vmatprep.subr.mxu0 0.0
    %1717 = vmatpush1.msra.mxu0 0.0
    %1718 = vmatprep.subr.mxu0 0.0
    %1719 = vmatpush1.msra.mxu0 0.0
    %1720 = vmatprep.subr.mxu0 0.0
    %1721 = vmatpush1.msra.mxu0 0.0
    %1722 = vmatprep.subr.mxu0 0.0
    %1723 = vmatpush1.msra.mxu0 0.0
    %1724 = vmatprep.subr.mxu0 0.0
    %1725 = vmatpush1.msra.mxu0 0.0
    %1726 = vmatprep.subr.mxu0 0.0
    %1727 = vmatpush1.msra.mxu0 0.0
    %1728 = vmatprep.subr.mxu0 0.0
    %1729 = vmatpush1.msra.mxu0 0.0
    %1730 = vmatprep.subr.mxu0 0.0
    %1731 = vmatpush1.msra.mxu0 0.0
    %1732 = vmatprep.subr.mxu0 0.0
    %1733 = vmatpush1.msra.mxu0 0.0
    %1734 = vmatprep.subr.mxu0 0.0
    %1735 = vmatpush1.msra.mxu0 0.0
    %1736 = vmatprep.subr.mxu0 0.0
    %1737 = vmatpush1.msra.mxu0 0.0
    %1738 = vmatprep.subr.mxu0 0.0
    %1739 = vmatpush1.msra.mxu0 0.0
    %1740 = vmatprep.subr.mxu0 0.0
    %1741 = vmatpush1.msra.mxu0 0.0
    %1742 = vmatprep.subr.mxu0 0.0
    %1743 = vmatpush1.msra.mxu0 0.0
    %1744 = vmatprep.subr.mxu0 0.0
    %1745 = vmatpush1.msra.mxu0 0.0
    %1746 = vmatprep.subr.mxu0 0.0
    %1747 = vmatpush1.msra.mxu0 0.0
    %1748 = vmatprep.subr.mxu0 0.0
    %1749 = vmatpush1.msra.mxu0 0.0
    %1750 = vmatprep.subr.mxu0 0.0
    %1751 = vmatpush1.msra.mxu0 0.0
    %1752 = vmatprep.subr.mxu0 0.0
    %1753 = vmatpush1.msra.mxu0 0.0
    %1754 = vmatprep.subr.mxu0 0.0
    %1755 = vmatpush1.msra.mxu0 0.0
    %1756 = vmatprep.subr.mxu0 0.0
    %1757 = vmatpush1.msra.mxu0 0.0
    %1758 = vmatprep.subr.mxu0 0.0
    %1759 = vmatpush1.msra.mxu0 0.0
    %1760 = vmatprep.subr.mxu0 0.0
    %1761 = vmatpush1.msra.mxu0 0.0
    %1762 = vmatprep.subr.mxu0 0.0
    %1763 = vmatpush1.msra.mxu0 0.0
    %1764 = vmatprep.subr.mxu0 0.0
    %1765 = vmatpush1.msra.mxu0 0.0
    %1766 = vmatprep.mubr.f32.mxu0 0.0
    %1767 = vmatmul.mubr.f32.gmra.mrb[0].mxu0 %v1700
    %v1768 = vpop.f32.mrb[0].mxu0
    %v1769 = vadd.f32 0.0, %v1768
    %v1770 = vpop.f32.mrb[0].mxu0
    %1771 = vdwg.mxu0
    %v1772 = vadd.f32 %v1698, %v1769
    %v1773 = vxor.u32 %v1772, 2147483648
    %v1774 = vmul.f32 %v1773, 1.442695
    %v1775 = vpow.pop %v1774
    %v1776 = vadd.f32 %v1775, 1.0
    %v1777 = vrcp.pop %v1776
    %v1778 = vmul.f32 1.0, %v1777
    %v1779 = vtanh.pop %v1772
    %v1780 = vmul.f32 %v1778, %v1432
    %1782 = vrot.lane.b32.xlu0 %v1779, 64
    %v1783 = vpop.permute.xlu0 %1782
    %v1785 = vmul.f32 %v1778, %v1783
    %1787 = vrot.lane.b32.xlu0 %v1785, 32
    %v1788 = vpop.permute.xlu0 %1787
    %v1790 = vadd.f32 %v1780, %v1788
    %v1791 = vtanh.pop %v1790
    %1793 = vrot.lane.b32.xlu0 %v1791, 64
    %v1794 = vpop.permute.xlu0 %1793
    %v1796 = vmul.f32 %v1778, %v1794
    %v1797 = vsel %vm78, %v1618, 0
    %1799 = vmatprep.subr.mxu0 0.0
    %1800 = vmatpush1.msra.mxu0 %v236
    %1801 = vmatprep.subr.mxu0 0.0
    %1802 = vmatpush1.msra.mxu0 %v237
    %1803 = vmatprep.subr.mxu0 0.0
    %1804 = vmatpush1.msra.mxu0 %v238
    %1805 = vmatprep.subr.mxu0 0.0
    %1806 = vmatpush1.msra.mxu0 %v239
    %1807 = vmatprep.subr.mxu0 0.0
    %1808 = vmatpush1.msra.mxu0 0.0
    %1809 = vmatprep.subr.mxu0 0.0
    %1810 = vmatpush1.msra.mxu0 0.0
    %1811 = vmatprep.subr.mxu0 0.0
    %1812 = vmatpush1.msra.mxu0 0.0
    %1813 = vmatprep.subr.mxu0 0.0
    %1814 = vmatpush1.msra.mxu0 0.0
    %1815 = vmatprep.subr.mxu0 0.0
    %1816 = vmatpush1.msra.mxu0 0.0
    %1817 = vmatprep.subr.mxu0 0.0
    %1818 = vmatpush1.msra.mxu0 0.0
    %1819 = vmatprep.subr.mxu0 0.0
    %1820 = vmatpush1.msra.mxu0 0.0
    %1821 = vmatprep.subr.mxu0 0.0
    %1822 = vmatpush1.msra.mxu0 0.0
    %1823 = vmatprep.subr.mxu0 0.0
    %1824 = vmatpush1.msra.mxu0 0.0
    %1825 = vmatprep.subr.mxu0 0.0
    %1826 = vmatpush1.msra.mxu0 0.0
    %1827 = vmatprep.subr.mxu0 0.0
    %1828 = vmatpush1.msra.mxu0 0.0
    %1829 = vmatprep.subr.mxu0 0.0
    %1830 = vmatpush1.msra.mxu0 0.0
    %1831 = vmatprep.subr.mxu0 0.0
    %1832 = vmatpush1.msra.mxu0 0.0
    %1833 = vmatprep.subr.mxu0 0.0
    %1834 = vmatpush1.msra.mxu0 0.0
    %1835 = vmatprep.subr.mxu0 0.0
    %1836 = vmatpush1.msra.mxu0 0.0
    %1837 = vmatprep.subr.mxu0 0.0
    %1838 = vmatpush1.msra.mxu0 0.0
    %1839 = vmatprep.subr.mxu0 0.0
    %1840 = vmatpush1.msra.mxu0 0.0
    %1841 = vmatprep.subr.mxu0 0.0
    %1842 = vmatpush1.msra.mxu0 0.0
    %1843 = vmatprep.subr.mxu0 0.0
    %1844 = vmatpush1.msra.mxu0 0.0
    %1845 = vmatprep.subr.mxu0 0.0
    %1846 = vmatpush1.msra.mxu0 0.0
    %1847 = vmatprep.subr.mxu0 0.0
    %1848 = vmatpush1.msra.mxu0 0.0
    %1849 = vmatprep.subr.mxu0 0.0
    %1850 = vmatpush1.msra.mxu0 0.0
    %1851 = vmatprep.subr.mxu0 0.0
    %1852 = vmatpush1.msra.mxu0 0.0
    %1853 = vmatprep.subr.mxu0 0.0
    %1854 = vmatpush1.msra.mxu0 0.0
    %1855 = vmatprep.subr.mxu0 0.0
    %1856 = vmatpush1.msra.mxu0 0.0
    %1857 = vmatprep.subr.mxu0 0.0
    %1858 = vmatpush1.msra.mxu0 0.0
    %1859 = vmatprep.subr.mxu0 0.0
    %1860 = vmatpush1.msra.mxu0 0.0
    %1861 = vmatprep.subr.mxu0 0.0
    %1862 = vmatpush1.msra.mxu0 0.0
    %1863 = vmatprep.mubr.f32.mxu0 0.0
    %1864 = vmatmul.mubr.f32.gmra.mrb[0].mxu0 %v1797
    %v1865 = vpop.f32.mrb[0].mxu0
    %v1866 = vadd.f32 0.0, %v1865
    %v1867 = vpop.f32.mrb[0].mxu0
    %1868 = vdwg.mxu0
    %v1869 = vadd.f32 %v1699, %v1866
    %v1870 = vxor.u32 %v1869, 2147483648
    %v1871 = vmul.f32 %v1870, 1.442695
    %v1872 = vpow.pop %v1871
    %v1873 = vadd.f32 %v1872, 1.0
    %v1874 = vrcp.pop %v1873
    %v1875 = vmul.f32 1.0, %v1874
    %v1876 = vtanh.pop %v1869
    %v1877 = vmul.f32 %v1875, %v1529
    %1879 = vrot.lane.b32.xlu0 %v1876, 64
    %v1880 = vpop.permute.xlu0 %1879
    %v1882 = vmul.f32 %v1875, %v1880
    %1884 = vrot.lane.b32.xlu0 %v1882, 32
    %v1885 = vpop.permute.xlu0 %1884
    %v1887 = vadd.f32 %v1877, %v1885
    %v1888 = vtanh.pop %v1887
    %1890 = vrot.lane.b32.xlu0 %v1888, 64
    %v1891 = vpop.permute.xlu0 %1890
    %v1893 = vmul.f32 %v1875, %v1891
    %v1894 = vld [vmem:[#allocation3 + $0x4] sm:$0x1]
    %v1895 = vld [vmem:[#allocation3 + $0x3] sm:$0x1]
    %1897 = vrot.lane.b32.xlu0 %v1796, 32
    %v1898 = vpop.permute.xlu0 %1897
    %v1901 = vsel %vm447, %v1894, 0
    %1903 = vmatprep.subr.mxu0 0.0
    %1904 = vmatpush1.msra.mxu0 %v1898
    %1905 = vmatprep.subr.mxu0 0.0
    %1906 = vmatpush1.msra.mxu0 0.0
    %1907 = vmatprep.subr.mxu0 0.0
    %1908 = vmatpush1.msra.mxu0 0.0
    %1909 = vmatprep.subr.mxu0 0.0
    %1910 = vmatpush1.msra.mxu0 0.0
    %1911 = vmatprep.subr.mxu0 0.0
    %1912 = vmatpush1.msra.mxu0 0.0
    %1913 = vmatprep.subr.mxu0 0.0
    %1914 = vmatpush1.msra.mxu0 0.0
    %1915 = vmatprep.subr.mxu0 0.0
    %1916 = vmatpush1.msra.mxu0 0.0
    %1917 = vmatprep.subr.mxu0 0.0
    %1918 = vmatpush1.msra.mxu0 0.0
    %1919 = vmatprep.subr.mxu0 0.0
    %1920 = vmatpush1.msra.mxu0 0.0
    %1921 = vmatprep.subr.mxu0 0.0
    %1922 = vmatpush1.msra.mxu0 0.0
    %1923 = vmatprep.subr.mxu0 0.0
    %1924 = vmatpush1.msra.mxu0 0.0
    %1925 = vmatprep.subr.mxu0 0.0
    %1926 = vmatpush1.msra.mxu0 0.0
    %1927 = vmatprep.subr.mxu0 0.0
    %1928 = vmatpush1.msra.mxu0 0.0
    %1929 = vmatprep.subr.mxu0 0.0
    %1930 = vmatpush1.msra.mxu0 0.0
    %1931 = vmatprep.subr.mxu0 0.0
    %1932 = vmatpush1.msra.mxu0 0.0
    %1933 = vmatprep.subr.mxu0 0.0
    %1934 = vmatpush1.msra.mxu0 0.0
    %1935 = vmatprep.subr.mxu0 0.0
    %1936 = vmatpush1.msra.mxu0 0.0
    %1937 = vmatprep.subr.mxu0 0.0
    %1938 = vmatpush1.msra.mxu0 0.0
    %1939 = vmatprep.subr.mxu0 0.0
    %1940 = vmatpush1.msra.mxu0 0.0
    %1941 = vmatprep.subr.mxu0 0.0
    %1942 = vmatpush1.msra.mxu0 0.0
    %1943 = vmatprep.subr.mxu0 0.0
    %1944 = vmatpush1.msra.mxu0 0.0
    %1945 = vmatprep.subr.mxu0 0.0
    %1946 = vmatpush1.msra.mxu0 0.0
    %1947 = vmatprep.subr.mxu0 0.0
    %1948 = vmatpush1.msra.mxu0 0.0
    %1949 = vmatprep.subr.mxu0 0.0
    %1950 = vmatpush1.msra.mxu0 0.0
    %1951 = vmatprep.subr.mxu0 0.0
    %1952 = vmatpush1.msra.mxu0 0.0
    %1953 = vmatprep.subr.mxu0 0.0
    %1954 = vmatpush1.msra.mxu0 0.0
    %1955 = vmatprep.subr.mxu0 0.0
    %1956 = vmatpush1.msra.mxu0 0.0
    %1957 = vmatprep.subr.mxu0 0.0
    %1958 = vmatpush1.msra.mxu0 0.0
    %1959 = vmatprep.subr.mxu0 0.0
    %1960 = vmatpush1.msra.mxu0 0.0
    %1961 = vmatprep.subr.mxu0 0.0
    %1962 = vmatpush1.msra.mxu0 0.0
    %1963 = vmatprep.subr.mxu0 0.0
    %1964 = vmatpush1.msra.mxu0 0.0
    %1965 = vmatprep.subr.mxu0 0.0
    %1966 = vmatpush1.msra.mxu0 0.0
    %1967 = vmatprep.mubr.f32.mxu0 0.0
    %1968 = vmatmul.mubr.f32.gmra.mrb[0].mxu0 %v1901
    %v1969 = vpop.f32.mrb[0].mxu0
    %v1970 = vadd.f32 0.0, %v1969
    %v1971 = vpop.f32.mrb[0].mxu0
    %1972 = vdwg.mxu0
    %1973 = vst.msk [vmem:[#allocation8 + $0x4] sm:$0x1] %vm521, %v1970
    %1975 = vrot.lane.b32.xlu0 %v1893, 32
    %v1976 = vpop.permute.xlu0 %1975
    %v1979 = vsel %vm447, %v1895, 0
    %1981 = vmatprep.subr.mxu0 0.0
    %1982 = vmatpush1.msra.mxu0 %v1976
    %1983 = vmatprep.subr.mxu0 0.0
    %1984 = vmatpush1.msra.mxu0 0.0
    %1985 = vmatprep.subr.mxu0 0.0
    %1986 = vmatpush1.msra.mxu0 0.0
    %1987 = vmatprep.subr.mxu0 0.0
    %1988 = vmatpush1.msra.mxu0 0.0
    %1989 = vmatprep.subr.mxu0 0.0
    %1990 = vmatpush1.msra.mxu0 0.0
    %1991 = vmatprep.subr.mxu0 0.0
    %1992 = vmatpush1.msra.mxu0 0.0
    %1993 = vmatprep.subr.mxu0 0.0
    %1994 = vmatpush1.msra.mxu0 0.0
    %1995 = vmatprep.subr.mxu0 0.0
    %1996 = vmatpush1.msra.mxu0 0.0
    %1997 = vmatprep.subr.mxu0 0.0
    %1998 = vmatpush1.msra.mxu0 0.0
    %1999 = vmatprep.subr.mxu0 0.0
    %2000 = vmatpush1.msra.mxu0 0.0
    %2001 = vmatprep.subr.mxu0 0.0
    %2002 = vmatpush1.msra.mxu0 0.0
    %2003 = vmatprep.subr.mxu0 0.0
    %2004 = vmatpush1.msra.mxu0 0.0
    %2005 = vmatprep.subr.mxu0 0.0
    %2006 = vmatpush1.msra.mxu0 0.0
    %2007 = vmatprep.subr.mxu0 0.0
    %2008 = vmatpush1.msra.mxu0 0.0
    %2009 = vmatprep.subr.mxu0 0.0
    %2010 = vmatpush1.msra.mxu0 0.0
    %2011 = vmatprep.subr.mxu0 0.0
    %2012 = vmatpush1.msra.mxu0 0.0
    %2013 = vmatprep.subr.mxu0 0.0
    %2014 = vmatpush1.msra.mxu0 0.0
    %2015 = vmatprep.subr.mxu0 0.0
    %2016 = vmatpush1.msra.mxu0 0.0
    %2017 = vmatprep.subr.mxu0 0.0
    %2018 = vmatpush1.msra.mxu0 0.0
    %2019 = vmatprep.subr.mxu0 0.0
    %2020 = vmatpush1.msra.mxu0 0.0
    %2021 = vmatprep.subr.mxu0 0.0
    %2022 = vmatpush1.msra.mxu0 0.0
    %2023 = vmatprep.subr.mxu0 0.0
    %2024 = vmatpush1.msra.mxu0 0.0
    %2025 = vmatprep.subr.mxu0 0.0
    %2026 = vmatpush1.msra.mxu0 0.0
    %2027 = vmatprep.subr.mxu0 0.0
    %2028 = vmatpush1.msra.mxu0 0.0
    %2029 = vmatprep.subr.mxu0 0.0
    %2030 = vmatpush1.msra.mxu0 0.0
    %2031 = vmatprep.subr.mxu0 0.0
    %2032 = vmatpush1.msra.mxu0 0.0
    %2033 = vmatprep.subr.mxu0 0.0
    %2034 = vmatpush1.msra.mxu0 0.0
    %2035 = vmatprep.subr.mxu0 0.0
    %2036 = vmatpush1.msra.mxu0 0.0
    %2037 = vmatprep.subr.mxu0 0.0
    %2038 = vmatpush1.msra.mxu0 0.0
    %2039 = vmatprep.subr.mxu0 0.0
    %2040 = vmatpush1.msra.mxu0 0.0
    %2041 = vmatprep.subr.mxu0 0.0
    %2042 = vmatpush1.msra.mxu0 0.0
    %2043 = vmatprep.subr.mxu0 0.0
    %2044 = vmatpush1.msra.mxu0 0.0
    %2045 = vmatprep.mubr.f32.mxu0 0.0
    %2046 = vmatmul.mubr.f32.gmra.mrb[0].mxu0 %v1979
    %v2047 = vpop.f32.mrb[0].mxu0
    %v2048 = vadd.f32 0.0, %v2047
    %v2049 = vpop.f32.mrb[0].mxu0
    %2050 = vdwg.mxu0
    %2052 = vrot.lane.b32.xlu0 %v2048, 32
    %v2053 = vpop.permute.xlu0 %2052
    %2055 = vst.msk [vmem:[#allocation8 + $0x3] sm:$0x1] %vm604, %v2053
    %v2056 = vld [vmem:[%s976] sm:$0xff]
    %v2057 = vld [vmem:[%s972 + $0x8] sm:$0xff]
    %v2058 = vsel %vm78, %v1898, 0
    %2060 = vmatprep.subr.mxu0 0.0
    %2061 = vmatpush1.msra.mxu0 %v232
    %2062 = vmatprep.subr.mxu0 0.0
    %2063 = vmatpush1.msra.mxu0 %v233
    %2064 = vmatprep.subr.mxu0 0.0
    %2065 = vmatpush1.msra.mxu0 %v234
    %2066 = vmatprep.subr.mxu0 0.0
    %2067 = vmatpush1.msra.mxu0 %v235
    %2068 = vmatprep.subr.mxu0 0.0
    %2069 = vmatpush1.msra.mxu0 0.0
    %2070 = vmatprep.subr.mxu0 0.0
    %2071 = vmatpush1.msra.mxu0 0.0
    %2072 = vmatprep.subr.mxu0 0.0
    %2073 = vmatpush1.msra.mxu0 0.0
    %2074 = vmatprep.subr.mxu0 0.0
    %2075 = vmatpush1.msra.mxu0 0.0
    %2076 = vmatprep.subr.mxu0 0.0
    %2077 = vmatpush1.msra.mxu0 0.0
    %2078 = vmatprep.subr.mxu0 0.0
    %2079 = vmatpush1.msra.mxu0 0.0
    %2080 = vmatprep.subr.mxu0 0.0
    %2081 = vmatpush1.msra.mxu0 0.0
    %2082 = vmatprep.subr.mxu0 0.0
    %2083 = vmatpush1.msra.mxu0 0.0
    %2084 = vmatprep.subr.mxu0 0.0
    %2085 = vmatpush1.msra.mxu0 0.0
    %2086 = vmatprep.subr.mxu0 0.0
    %2087 = vmatpush1.msra.mxu0 0.0
    %2088 = vmatprep.subr.mxu0 0.0
    %2089 = vmatpush1.msra.mxu0 0.0
    %2090 = vmatprep.subr.mxu0 0.0
    %2091 = vmatpush1.msra.mxu0 0.0
    %2092 = vmatprep.subr.mxu0 0.0
    %2093 = vmatpush1.msra.mxu0 0.0
    %2094 = vmatprep.subr.mxu0 0.0
    %2095 = vmatpush1.msra.mxu0 0.0
    %2096 = vmatprep.subr.mxu0 0.0
    %2097 = vmatpush1.msra.mxu0 0.0
    %2098 = vmatprep.subr.mxu0 0.0
    %2099 = vmatpush1.msra.mxu0 0.0
    %2100 = vmatprep.subr.mxu0 0.0
    %2101 = vmatpush1.msra.mxu0 0.0
    %2102 = vmatprep.subr.mxu0 0.0
    %2103 = vmatpush1.msra.mxu0 0.0
    %2104 = vmatprep.subr.mxu0 0.0
    %2105 = vmatpush1.msra.mxu0 0.0
    %2106 = vmatprep.subr.mxu0 0.0
    %2107 = vmatpush1.msra.mxu0 0.0
    %2108 = vmatprep.subr.mxu0 0.0
    %2109 = vmatpush1.msra.mxu0 0.0
    %2110 = vmatprep.subr.mxu0 0.0
    %2111 = vmatpush1.msra.mxu0 0.0
    %2112 = vmatprep.subr.mxu0 0.0
    %2113 = vmatpush1.msra.mxu0 0.0
    %2114 = vmatprep.subr.mxu0 0.0
    %2115 = vmatpush1.msra.mxu0 0.0
    %2116 = vmatprep.subr.mxu0 0.0
    %2117 = vmatpush1.msra.mxu0 0.0
    %2118 = vmatprep.subr.mxu0 0.0
    %2119 = vmatpush1.msra.mxu0 0.0
    %2120 = vmatprep.subr.mxu0 0.0
    %2121 = vmatpush1.msra.mxu0 0.0
    %2122 = vmatprep.subr.mxu0 0.0
    %2123 = vmatpush1.msra.mxu0 0.0
    %2124 = vmatprep.mubr.f32.mxu0 0.0
    %2125 = vmatmul.mubr.f32.gmra.mrb[0].mxu0 %v2058
    %v2126 = vpop.f32.mrb[0].mxu0
    %v2127 = vadd.f32 0.0, %v2126
    %v2128 = vpop.f32.mrb[0].mxu0
    %2129 = vdwg.mxu0
    %v2130 = vadd.f32 %v2056, %v2127
    %v2131 = vxor.u32 %v2130, 2147483648
    %v2132 = vmul.f32 %v2131, 1.442695
    %v2133 = vpow.pop %v2132
    %v2134 = vadd.f32 %v2133, 1.0
    %v2135 = vrcp.pop %v2134
    %v2136 = vmul.f32 1.0, %v2135
    %v2137 = vtanh.pop %v2130
    %v2138 = vmul.f32 %v2136, %v1790
    %2140 = vrot.lane.b32.xlu0 %v2137, 64
    %v2141 = vpop.permute.xlu0 %2140
    %v2143 = vmul.f32 %v2136, %v2141
    %2145 = vrot.lane.b32.xlu0 %v2143, 32
    %v2146 = vpop.permute.xlu0 %2145
    %v2148 = vadd.f32 %v2138, %v2146
    %v2149 = vtanh.pop %v2148
    %2151 = vrot.lane.b32.xlu0 %v2149, 64
    %v2152 = vpop.permute.xlu0 %2151
    %v2154 = vmul.f32 %v2136, %v2152
    %v2155 = vsel %vm78, %v1976, 0
    %2157 = vmatprep.subr.mxu0 0.0
    %2158 = vmatpush1.msra.mxu0 %v236
    %2159 = vmatprep.subr.mxu0 0.0
    %2160 = vmatpush1.msra.mxu0 %v237
    %2161 = vmatprep.subr.mxu0 0.0
    %2162 = vmatpush1.msra.mxu0 %v238
    %2163 = vmatprep.subr.mxu0 0.0
    %2164 = vmatpush1.msra.mxu0 %v239
    %2165 = vmatprep.subr.mxu0 0.0
    %2166 = vmatpush1.msra.mxu0 0.0
    %2167 = vmatprep.subr.mxu0 0.0
    %2168 = vmatpush1.msra.mxu0 0.0
    %2169 = vmatprep.subr.mxu0 0.0
    %2170 = vmatpush1.msra.mxu0 0.0
    %2171 = vmatprep.subr.mxu0 0.0
    %2172 = vmatpush1.msra.mxu0 0.0
    %2173 = vmatprep.subr.mxu0 0.0
    %2174 = vmatpush1.msra.mxu0 0.0
    %2175 = vmatprep.subr.mxu0 0.0
    %2176 = vmatpush1.msra.mxu0 0.0
    %2177 = vmatprep.subr.mxu0 0.0
    %2178 = vmatpush1.msra.mxu0 0.0
    %2179 = vmatprep.subr.mxu0 0.0
    %2180 = vmatpush1.msra.mxu0 0.0
    %2181 = vmatprep.subr.mxu0 0.0
    %2182 = vmatpush1.msra.mxu0 0.0
    %2183 = vmatprep.subr.mxu0 0.0
    %2184 = vmatpush1.msra.mxu0 0.0
    %2185 = vmatprep.subr.mxu0 0.0
    %2186 = vmatpush1.msra.mxu0 0.0
    %2187 = vmatprep.subr.mxu0 0.0
    %2188 = vmatpush1.msra.mxu0 0.0
    %2189 = vmatprep.subr.mxu0 0.0
    %2190 = vmatpush1.msra.mxu0 0.0
    %2191 = vmatprep.subr.mxu0 0.0
    %2192 = vmatpush1.msra.mxu0 0.0
    %2193 = vmatprep.subr.mxu0 0.0
    %2194 = vmatpush1.msra.mxu0 0.0
    %2195 = vmatprep.subr.mxu0 0.0
    %2196 = vmatpush1.msra.mxu0 0.0
    %2197 = vmatprep.subr.mxu0 0.0
    %2198 = vmatpush1.msra.mxu0 0.0
    %2199 = vmatprep.subr.mxu0 0.0
    %2200 = vmatpush1.msra.mxu0 0.0
    %2201 = vmatprep.subr.mxu0 0.0
    %2202 = vmatpush1.msra.mxu0 0.0
    %2203 = vmatprep.subr.mxu0 0.0
    %2204 = vmatpush1.msra.mxu0 0.0
    %2205 = vmatprep.subr.mxu0 0.0
    %2206 = vmatpush1.msra.mxu0 0.0
    %2207 = vmatprep.subr.mxu0 0.0
    %2208 = vmatpush1.msra.mxu0 0.0
    %2209 = vmatprep.subr.mxu0 0.0
    %2210 = vmatpush1.msra.mxu0 0.0
    %2211 = vmatprep.subr.mxu0 0.0
    %2212 = vmatpush1.msra.mxu0 0.0
    %2213 = vmatprep.subr.mxu0 0.0
    %2214 = vmatpush1.msra.mxu0 0.0
    %2215 = vmatprep.subr.mxu0 0.0
    %2216 = vmatpush1.msra.mxu0 0.0
    %2217 = vmatprep.subr.mxu0 0.0
    %2218 = vmatpush1.msra.mxu0 0.0
    %2219 = vmatprep.subr.mxu0 0.0
    %2220 = vmatpush1.msra.mxu0 0.0
    %2221 = vmatprep.mubr.f32.mxu0 0.0
    %2222 = vmatmul.mubr.f32.gmra.mrb[0].mxu0 %v2155
    %v2223 = vpop.f32.mrb[0].mxu0
    %v2224 = vadd.f32 0.0, %v2223
    %v2225 = vpop.f32.mrb[0].mxu0
    %2226 = vdwg.mxu0
    %v2227 = vadd.f32 %v2057, %v2224
    %v2228 = vxor.u32 %v2227, 2147483648
    %v2229 = vmul.f32 %v2228, 1.442695
    %v2230 = vpow.pop %v2229
    %v2231 = vadd.f32 %v2230, 1.0
    %v2232 = vrcp.pop %v2231
    %v2233 = vmul.f32 1.0, %v2232
    %v2234 = vtanh.pop %v2227
    %v2235 = vmul.f32 %v2233, %v1887
    %2237 = vrot.lane.b32.xlu0 %v2234, 64
    %v2238 = vpop.permute.xlu0 %2237
    %v2240 = vmul.f32 %v2233, %v2238
    %2242 = vrot.lane.b32.xlu0 %v2240, 32
    %v2243 = vpop.permute.xlu0 %2242
    %v2245 = vadd.f32 %v2235, %v2243
    %v2246 = vtanh.pop %v2245
    %2248 = vrot.lane.b32.xlu0 %v2246, 64
    %v2249 = vpop.permute.xlu0 %2248
    %v2251 = vmul.f32 %v2233, %v2249
    %v2252 = vld [vmem:[#allocation3 + $0x5] sm:$0x1]
    %v2253 = vld [vmem:[#allocation3 + $0x2] sm:$0x1]
    %2255 = vrot.lane.b32.xlu0 %v2154, 32
    %v2256 = vpop.permute.xlu0 %2255
    %v2259 = vsel %vm447, %v2252, 0
    %2261 = vmatprep.subr.mxu0 0.0
    %2262 = vmatpush1.msra.mxu0 %v2256
    %2263 = vmatprep.subr.mxu0 0.0
    %2264 = vmatpush1.msra.mxu0 0.0
    %2265 = vmatprep.subr.mxu0 0.0
    %2266 = vmatpush1.msra.mxu0 0.0
    %2267 = vmatprep.subr.mxu0 0.0
    %2268 = vmatpush1.msra.mxu0 0.0
    %2269 = vmatprep.subr.mxu0 0.0
    %2270 = vmatpush1.msra.mxu0 0.0
    %2271 = vmatprep.subr.mxu0 0.0
    %2272 = vmatpush1.msra.mxu0 0.0
    %2273 = vmatprep.subr.mxu0 0.0
    %2274 = vmatpush1.msra.mxu0 0.0
    %2275 = vmatprep.subr.mxu0 0.0
    %2276 = vmatpush1.msra.mxu0 0.0
    %2277 = vmatprep.subr.mxu0 0.0
    %2278 = vmatpush1.msra.mxu0 0.0
    %2279 = vmatprep.subr.mxu0 0.0
    %2280 = vmatpush1.msra.mxu0 0.0
    %2281 = vmatprep.subr.mxu0 0.0
    %2282 = vmatpush1.msra.mxu0 0.0
    %2283 = vmatprep.subr.mxu0 0.0
    %2284 = vmatpush1.msra.mxu0 0.0
    %2285 = vmatprep.subr.mxu0 0.0
    %2286 = vmatpush1.msra.mxu0 0.0
    %2287 = vmatprep.subr.mxu0 0.0
    %2288 = vmatpush1.msra.mxu0 0.0
    %2289 = vmatprep.subr.mxu0 0.0
    %2290 = vmatpush1.msra.mxu0 0.0
    %2291 = vmatprep.subr.mxu0 0.0
    %2292 = vmatpush1.msra.mxu0 0.0
    %2293 = vmatprep.subr.mxu0 0.0
    %2294 = vmatpush1.msra.mxu0 0.0
    %2295 = vmatprep.subr.mxu0 0.0
    %2296 = vmatpush1.msra.mxu0 0.0
    %2297 = vmatprep.subr.mxu0 0.0
    %2298 = vmatpush1.msra.mxu0 0.0
    %2299 = vmatprep.subr.mxu0 0.0
    %2300 = vmatpush1.msra.mxu0 0.0
    %2301 = vmatprep.subr.mxu0 0.0
    %2302 = vmatpush1.msra.mxu0 0.0
    %2303 = vmatprep.subr.mxu0 0.0
    %2304 = vmatpush1.msra.mxu0 0.0
    %2305 = vmatprep.subr.mxu0 0.0
    %2306 = vmatpush1.msra.mxu0 0.0
    %2307 = vmatprep.subr.mxu0 0.0
    %2308 = vmatpush1.msra.mxu0 0.0
    %2309 = vmatprep.subr.mxu0 0.0
    %2310 = vmatpush1.msra.mxu0 0.0
    %2311 = vmatprep.subr.mxu0 0.0
    %2312 = vmatpush1.msra.mxu0 0.0
    %2313 = vmatprep.subr.mxu0 0.0
    %2314 = vmatpush1.msra.mxu0 0.0
    %2315 = vmatprep.subr.mxu0 0.0
    %2316 = vmatpush1.msra.mxu0 0.0
    %2317 = vmatprep.subr.mxu0 0.0
    %2318 = vmatpush1.msra.mxu0 0.0
    %2319 = vmatprep.subr.mxu0 0.0
    %2320 = vmatpush1.msra.mxu0 0.0
    %2321 = vmatprep.subr.mxu0 0.0
    %2322 = vmatpush1.msra.mxu0 0.0
    %2323 = vmatprep.subr.mxu0 0.0
    %2324 = vmatpush1.msra.mxu0 0.0
    %2325 = vmatprep.mubr.f32.mxu0 0.0
    %2326 = vmatmul.mubr.f32.gmra.mrb[0].mxu0 %v2259
    %v2327 = vpop.f32.mrb[0].mxu0
    %v2328 = vadd.f32 0.0, %v2327
    %v2329 = vpop.f32.mrb[0].mxu0
    %2330 = vdwg.mxu0
    %2331 = vst.msk [vmem:[#allocation8 + $0x5] sm:$0x1] %vm521, %v2328
    %2333 = vrot.lane.b32.xlu0 %v2251, 32
    %v2334 = vpop.permute.xlu0 %2333
    %v2337 = vsel %vm447, %v2253, 0
    %2339 = vmatprep.subr.mxu0 0.0
    %2340 = vmatpush1.msra.mxu0 %v2334
    %2341 = vmatprep.subr.mxu0 0.0
    %2342 = vmatpush1.msra.mxu0 0.0
    %2343 = vmatprep.subr.mxu0 0.0
    %2344 = vmatpush1.msra.mxu0 0.0
    %2345 = vmatprep.subr.mxu0 0.0
    %2346 = vmatpush1.msra.mxu0 0.0
    %2347 = vmatprep.subr.mxu0 0.0
    %2348 = vmatpush1.msra.mxu0 0.0
    %2349 = vmatprep.subr.mxu0 0.0
    %2350 = vmatpush1.msra.mxu0 0.0
    %2351 = vmatprep.subr.mxu0 0.0
    %2352 = vmatpush1.msra.mxu0 0.0
    %2353 = vmatprep.subr.mxu0 0.0
    %2354 = vmatpush1.msra.mxu0 0.0
    %2355 = vmatprep.subr.mxu0 0.0
    %2356 = vmatpush1.msra.mxu0 0.0
    %2357 = vmatprep.subr.mxu0 0.0
    %2358 = vmatpush1.msra.mxu0 0.0
    %2359 = vmatprep.subr.mxu0 0.0
    %2360 = vmatpush1.msra.mxu0 0.0
    %2361 = vmatprep.subr.mxu0 0.0
    %2362 = vmatpush1.msra.mxu0 0.0
    %2363 = vmatprep.subr.mxu0 0.0
    %2364 = vmatpush1.msra.mxu0 0.0
    %2365 = vmatprep.subr.mxu0 0.0
    %2366 = vmatpush1.msra.mxu0 0.0
    %2367 = vmatprep.subr.mxu0 0.0
    %2368 = vmatpush1.msra.mxu0 0.0
    %2369 = vmatprep.subr.mxu0 0.0
    %2370 = vmatpush1.msra.mxu0 0.0
    %2371 = vmatprep.subr.mxu0 0.0
    %2372 = vmatpush1.msra.mxu0 0.0
    %2373 = vmatprep.subr.mxu0 0.0
    %2374 = vmatpush1.msra.mxu0 0.0
    %2375 = vmatprep.subr.mxu0 0.0
    %2376 = vmatpush1.msra.mxu0 0.0
    %2377 = vmatprep.subr.mxu0 0.0
    %2378 = vmatpush1.msra.mxu0 0.0
    %2379 = vmatprep.subr.mxu0 0.0
    %2380 = vmatpush1.msra.mxu0 0.0
    %2381 = vmatprep.subr.mxu0 0.0
    %2382 = vmatpush1.msra.mxu0 0.0
    %2383 = vmatprep.subr.mxu0 0.0
    %2384 = vmatpush1.msra.mxu0 0.0
    %2385 = vmatprep.subr.mxu0 0.0
    %2386 = vmatpush1.msra.mxu0 0.0
    %2387 = vmatprep.subr.mxu0 0.0
    %2388 = vmatpush1.msra.mxu0 0.0
    %2389 = vmatprep.subr.mxu0 0.0
    %2390 = vmatpush1.msra.mxu0 0.0
    %2391 = vmatprep.subr.mxu0 0.0
    %2392 = vmatpush1.msra.mxu0 0.0
    %2393 = vmatprep.subr.mxu0 0.0
    %2394 = vmatpush1.msra.mxu0 0.0
    %2395 = vmatprep.subr.mxu0 0.0
    %2396 = vmatpush1.msra.mxu0 0.0
    %2397 = vmatprep.subr.mxu0 0.0
    %2398 = vmatpush1.msra.mxu0 0.0
    %2399 = vmatprep.subr.mxu0 0.0
    %2400 = vmatpush1.msra.mxu0 0.0
    %2401 = vmatprep.subr.mxu0 0.0
    %2402 = vmatpush1.msra.mxu0 0.0
    %2403 = vmatprep.mubr.f32.mxu0 0.0
    %2404 = vmatmul.mubr.f32.gmra.mrb[0].mxu0 %v2337
    %v2405 = vpop.f32.mrb[0].mxu0
    %v2406 = vadd.f32 0.0, %v2405
    %v2407 = vpop.f32.mrb[0].mxu0
    %2408 = vdwg.mxu0
    %2410 = vrot.lane.b32.xlu0 %v2406, 32
    %v2411 = vpop.permute.xlu0 %2410
    %2413 = vst.msk [vmem:[#allocation8 + $0x2] sm:$0x1] %vm604, %v2411
    %v2414 = vld [vmem:[%s612] sm:$0xff]
    %v2415 = vld [vmem:[%s608 + $0x8] sm:$0xff]
    %v2416 = vsel %vm78, %v2256, 0
    %2418 = vmatprep.subr.mxu0 0.0
    %2419 = vmatpush1.msra.mxu0 %v232
    %2420 = vmatprep.subr.mxu0 0.0
    %2421 = vmatpush1.msra.mxu0 %v233
    %2422 = vmatprep.subr.mxu0 0.0
    %2423 = vmatpush1.msra.mxu0 %v234
    %2424 = vmatprep.subr.mxu0 0.0
    %2425 = vmatpush1.msra.mxu0 %v235
    %2426 = vmatprep.subr.mxu0 0.0
    %2427 = vmatpush1.msra.mxu0 0.0
    %2428 = vmatprep.subr.mxu0 0.0
    %2429 = vmatpush1.msra.mxu0 0.0
    %2430 = vmatprep.subr.mxu0 0.0
    %2431 = vmatpush1.msra.mxu0 0.0
    %2432 = vmatprep.subr.mxu0 0.0
    %2433 = vmatpush1.msra.mxu0 0.0
    %2434 = vmatprep.subr.mxu0 0.0
    %2435 = vmatpush1.msra.mxu0 0.0
    %2436 = vmatprep.subr.mxu0 0.0
    %2437 = vmatpush1.msra.mxu0 0.0
    %2438 = vmatprep.subr.mxu0 0.0
    %2439 = vmatpush1.msra.mxu0 0.0
    %2440 = vmatprep.subr.mxu0 0.0
    %2441 = vmatpush1.msra.mxu0 0.0
    %2442 = vmatprep.subr.mxu0 0.0
    %2443 = vmatpush1.msra.mxu0 0.0
    %2444 = vmatprep.subr.mxu0 0.0
    %2445 = vmatpush1.msra.mxu0 0.0
    %2446 = vmatprep.subr.mxu0 0.0
    %2447 = vmatpush1.msra.mxu0 0.0
    %2448 = vmatprep.subr.mxu0 0.0
    %2449 = vmatpush1.msra.mxu0 0.0
    %2450 = vmatprep.subr.mxu0 0.0
    %2451 = vmatpush1.msra.mxu0 0.0
    %2452 = vmatprep.subr.mxu0 0.0
    %2453 = vmatpush1.msra.mxu0 0.0
    %2454 = vmatprep.subr.mxu0 0.0
    %2455 = vmatpush1.msra.mxu0 0.0
    %2456 = vmatprep.subr.mxu0 0.0
    %2457 = vmatpush1.msra.mxu0 0.0
    %2458 = vmatprep.subr.mxu0 0.0
    %2459 = vmatpush1.msra.mxu0 0.0
    %2460 = vmatprep.subr.mxu0 0.0
    %2461 = vmatpush1.msra.mxu0 0.0
    %2462 = vmatprep.subr.mxu0 0.0
    %2463 = vmatpush1.msra.mxu0 0.0
    %2464 = vmatprep.subr.mxu0 0.0
    %2465 = vmatpush1.msra.mxu0 0.0
    %2466 = vmatprep.subr.mxu0 0.0
    %2467 = vmatpush1.msra.mxu0 0.0
    %2468 = vmatprep.subr.mxu0 0.0
    %2469 = vmatpush1.msra.mxu0 0.0
    %2470 = vmatprep.subr.mxu0 0.0
    %2471 = vmatpush1.msra.mxu0 0.0
    %2472 = vmatprep.subr.mxu0 0.0
    %2473 = vmatpush1.msra.mxu0 0.0
    %2474 = vmatprep.subr.mxu0 0.0
    %2475 = vmatpush1.msra.mxu0 0.0
    %2476 = vmatprep.subr.mxu0 0.0
    %2477 = vmatpush1.msra.mxu0 0.0
    %2478 = vmatprep.subr.mxu0 0.0
    %2479 = vmatpush1.msra.mxu0 0.0
    %2480 = vmatprep.subr.mxu0 0.0
    %2481 = vmatpush1.msra.mxu0 0.0
    %2482 = vmatprep.mubr.f32.mxu0 0.0
    %2483 = vmatmul.mubr.f32.gmra.mrb[0].mxu0 %v2416
    %v2484 = vpop.f32.mrb[0].mxu0
    %v2485 = vadd.f32 0.0, %v2484
    %v2486 = vpop.f32.mrb[0].mxu0
    %2487 = vdwg.mxu0
    %v2488 = vadd.f32 %v2414, %v2485
    %v2489 = vxor.u32 %v2488, 2147483648
    %v2490 = vmul.f32 %v2489, 1.442695
    %v2491 = vpow.pop %v2490
    %v2492 = vadd.f32 %v2491, 1.0
    %v2493 = vrcp.pop %v2492
    %v2494 = vmul.f32 1.0, %v2493
    %v2495 = vtanh.pop %v2488
    %v2496 = vmul.f32 %v2494, %v2148
    %2498 = vrot.lane.b32.xlu0 %v2495, 64
    %v2499 = vpop.permute.xlu0 %2498
    %v2501 = vmul.f32 %v2494, %v2499
    %2503 = vrot.lane.b32.xlu0 %v2501, 32
    %v2504 = vpop.permute.xlu0 %2503
    %v2506 = vadd.f32 %v2496, %v2504
    %v2507 = vtanh.pop %v2506
    %2509 = vrot.lane.b32.xlu0 %v2507, 64
    %v2510 = vpop.permute.xlu0 %2509
    %v2512 = vmul.f32 %v2494, %v2510
    %v2513 = vsel %vm78, %v2334, 0
    %2515 = vmatprep.subr.mxu0 0.0
    %2516 = vmatpush1.msra.mxu0 %v236
    %2517 = vmatprep.subr.mxu0 0.0
    %2518 = vmatpush1.msra.mxu0 %v237
    %2519 = vmatprep.subr.mxu0 0.0
    %2520 = vmatpush1.msra.mxu0 %v238
    %2521 = vmatprep.subr.mxu0 0.0
    %2522 = vmatpush1.msra.mxu0 %v239
    %2523 = vmatprep.subr.mxu0 0.0
    %2524 = vmatpush1.msra.mxu0 0.0
    %2525 = vmatprep.subr.mxu0 0.0
    %2526 = vmatpush1.msra.mxu0 0.0
    %2527 = vmatprep.subr.mxu0 0.0
    %2528 = vmatpush1.msra.mxu0 0.0
    %2529 = vmatprep.subr.mxu0 0.0
    %2530 = vmatpush1.msra.mxu0 0.0
    %2531 = vmatprep.subr.mxu0 0.0
    %2532 = vmatpush1.msra.mxu0 0.0
    %2533 = vmatprep.subr.mxu0 0.0
    %2534 = vmatpush1.msra.mxu0 0.0
    %2535 = vmatprep.subr.mxu0 0.0
    %2536 = vmatpush1.msra.mxu0 0.0
    %2537 = vmatprep.subr.mxu0 0.0
    %2538 = vmatpush1.msra.mxu0 0.0
    %2539 = vmatprep.subr.mxu0 0.0
    %2540 = vmatpush1.msra.mxu0 0.0
    %2541 = vmatprep.subr.mxu0 0.0
    %2542 = vmatpush1.msra.mxu0 0.0
    %2543 = vmatprep.subr.mxu0 0.0
    %2544 = vmatpush1.msra.mxu0 0.0
    %2545 = vmatprep.subr.mxu0 0.0
    %2546 = vmatpush1.msra.mxu0 0.0
    %2547 = vmatprep.subr.mxu0 0.0
    %2548 = vmatpush1.msra.mxu0 0.0
    %2549 = vmatprep.subr.mxu0 0.0
    %2550 = vmatpush1.msra.mxu0 0.0
    %2551 = vmatprep.subr.mxu0 0.0
    %2552 = vmatpush1.msra.mxu0 0.0
    %2553 = vmatprep.subr.mxu0 0.0
    %2554 = vmatpush1.msra.mxu0 0.0
    %2555 = vmatprep.subr.mxu0 0.0
    %2556 = vmatpush1.msra.mxu0 0.0
    %2557 = vmatprep.subr.mxu0 0.0
    %2558 = vmatpush1.msra.mxu0 0.0
    %2559 = vmatprep.subr.mxu0 0.0
    %2560 = vmatpush1.msra.mxu0 0.0
    %2561 = vmatprep.subr.mxu0 0.0
    %2562 = vmatpush1.msra.mxu0 0.0
    %2563 = vmatprep.subr.mxu0 0.0
    %2564 = vmatpush1.msra.mxu0 0.0
    %2565 = vmatprep.subr.mxu0 0.0
    %2566 = vmatpush1.msra.mxu0 0.0
    %2567 = vmatprep.subr.mxu0 0.0
    %2568 = vmatpush1.msra.mxu0 0.0
    %2569 = vmatprep.subr.mxu0 0.0
    %2570 = vmatpush1.msra.mxu0 0.0
    %2571 = vmatprep.subr.mxu0 0.0
    %2572 = vmatpush1.msra.mxu0 0.0
    %2573 = vmatprep.subr.mxu0 0.0
    %2574 = vmatpush1.msra.mxu0 0.0
    %2575 = vmatprep.subr.mxu0 0.0
    %2576 = vmatpush1.msra.mxu0 0.0
    %2577 = vmatprep.subr.mxu0 0.0
    %2578 = vmatpush1.msra.mxu0 0.0
    %2579 = vmatprep.mubr.f32.mxu0 0.0
    %2580 = vmatmul.mubr.f32.gmra.mrb[0].mxu0 %v2513
    %v2581 = vpop.f32.mrb[0].mxu0
    %v2582 = vadd.f32 0.0, %v2581
    %v2583 = vpop.f32.mrb[0].mxu0
    %2584 = vdwg.mxu0
    %v2585 = vadd.f32 %v2415, %v2582
    %v2586 = vxor.u32 %v2585, 2147483648
    %v2587 = vmul.f32 %v2586, 1.442695
    %v2588 = vpow.pop %v2587
    %v2589 = vadd.f32 %v2588, 1.0
    %v2590 = vrcp.pop %v2589
    %v2591 = vmul.f32 1.0, %v2590
    %v2592 = vtanh.pop %v2585
    %v2593 = vmul.f32 %v2591, %v2245
    %2595 = vrot.lane.b32.xlu0 %v2592, 64
    %v2596 = vpop.permute.xlu0 %2595
    %v2598 = vmul.f32 %v2591, %v2596
    %2600 = vrot.lane.b32.xlu0 %v2598, 32
    %v2601 = vpop.permute.xlu0 %2600
    %v2603 = vadd.f32 %v2593, %v2601
    %v2604 = vtanh.pop %v2603
    %2606 = vrot.lane.b32.xlu0 %v2604, 64
    %v2607 = vpop.permute.xlu0 %2606
    %v2609 = vmul.f32 %v2591, %v2607
    %v2610 = vld [vmem:[#allocation3 + $0x6] sm:$0x1]
    %v2611 = vld [vmem:[#allocation3 + $0x1] sm:$0x1]
    %2613 = vrot.lane.b32.xlu0 %v2512, 32
    %v2614 = vpop.permute.xlu0 %2613
    %v2617 = vsel %vm447, %v2610, 0
    %2619 = vmatprep.subr.mxu0 0.0
    %2620 = vmatpush1.msra.mxu0 %v2614
    %2621 = vmatprep.subr.mxu0 0.0
    %2622 = vmatpush1.msra.mxu0 0.0
    %2623 = vmatprep.subr.mxu0 0.0
    %2624 = vmatpush1.msra.mxu0 0.0
    %2625 = vmatprep.subr.mxu0 0.0
    %2626 = vmatpush1.msra.mxu0 0.0
    %2627 = vmatprep.subr.mxu0 0.0
    %2628 = vmatpush1.msra.mxu0 0.0
    %2629 = vmatprep.subr.mxu0 0.0
    %2630 = vmatpush1.msra.mxu0 0.0
    %2631 = vmatprep.subr.mxu0 0.0
    %2632 = vmatpush1.msra.mxu0 0.0
    %2633 = vmatprep.subr.mxu0 0.0
    %2634 = vmatpush1.msra.mxu0 0.0
    %2635 = vmatprep.subr.mxu0 0.0
    %2636 = vmatpush1.msra.mxu0 0.0
    %2637 = vmatprep.subr.mxu0 0.0
    %2638 = vmatpush1.msra.mxu0 0.0
    %2639 = vmatprep.subr.mxu0 0.0
    %2640 = vmatpush1.msra.mxu0 0.0
    %2641 = vmatprep.subr.mxu0 0.0
    %2642 = vmatpush1.msra.mxu0 0.0
    %2643 = vmatprep.subr.mxu0 0.0
    %2644 = vmatpush1.msra.mxu0 0.0
    %2645 = vmatprep.subr.mxu0 0.0
    %2646 = vmatpush1.msra.mxu0 0.0
    %2647 = vmatprep.subr.mxu0 0.0
    %2648 = vmatpush1.msra.mxu0 0.0
    %2649 = vmatprep.subr.mxu0 0.0
    %2650 = vmatpush1.msra.mxu0 0.0
    %2651 = vmatprep.subr.mxu0 0.0
    %2652 = vmatpush1.msra.mxu0 0.0
    %2653 = vmatprep.subr.mxu0 0.0
    %2654 = vmatpush1.msra.mxu0 0.0
    %2655 = vmatprep.subr.mxu0 0.0
    %2656 = vmatpush1.msra.mxu0 0.0
    %2657 = vmatprep.subr.mxu0 0.0
    %2658 = vmatpush1.msra.mxu0 0.0
    %2659 = vmatprep.subr.mxu0 0.0
    %2660 = vmatpush1.msra.mxu0 0.0
    %2661 = vmatprep.subr.mxu0 0.0
    %2662 = vmatpush1.msra.mxu0 0.0
    %2663 = vmatprep.subr.mxu0 0.0
    %2664 = vmatpush1.msra.mxu0 0.0
    %2665 = vmatprep.subr.mxu0 0.0
    %2666 = vmatpush1.msra.mxu0 0.0
    %2667 = vmatprep.subr.mxu0 0.0
    %2668 = vmatpush1.msra.mxu0 0.0
    %2669 = vmatprep.subr.mxu0 0.0
    %2670 = vmatpush1.msra.mxu0 0.0
    %2671 = vmatprep.subr.mxu0 0.0
    %2672 = vmatpush1.msra.mxu0 0.0
    %2673 = vmatprep.subr.mxu0 0.0
    %2674 = vmatpush1.msra.mxu0 0.0
    %2675 = vmatprep.subr.mxu0 0.0
    %2676 = vmatpush1.msra.mxu0 0.0
    %2677 = vmatprep.subr.mxu0 0.0
    %2678 = vmatpush1.msra.mxu0 0.0
    %2679 = vmatprep.subr.mxu0 0.0
    %2680 = vmatpush1.msra.mxu0 0.0
    %2681 = vmatprep.subr.mxu0 0.0
    %2682 = vmatpush1.msra.mxu0 0.0
    %2683 = vmatprep.mubr.f32.mxu0 0.0
    %2684 = vmatmul.mubr.f32.gmra.mrb[0].mxu0 %v2617
    %v2685 = vpop.f32.mrb[0].mxu0
    %v2686 = vadd.f32 0.0, %v2685
    %v2687 = vpop.f32.mrb[0].mxu0
    %2688 = vdwg.mxu0
    %2689 = vst.msk [vmem:[#allocation8 + $0x6] sm:$0x1] %vm521, %v2686
    %2691 = vrot.lane.b32.xlu0 %v2609, 32
    %v2692 = vpop.permute.xlu0 %2691
    %v2695 = vsel %vm447, %v2611, 0
    %2697 = vmatprep.subr.mxu0 0.0
    %2698 = vmatpush1.msra.mxu0 %v2692
    %2699 = vmatprep.subr.mxu0 0.0
    %2700 = vmatpush1.msra.mxu0 0.0
    %2701 = vmatprep.subr.mxu0 0.0
    %2702 = vmatpush1.msra.mxu0 0.0
    %2703 = vmatprep.subr.mxu0 0.0
    %2704 = vmatpush1.msra.mxu0 0.0
    %2705 = vmatprep.subr.mxu0 0.0
    %2706 = vmatpush1.msra.mxu0 0.0
    %2707 = vmatprep.subr.mxu0 0.0
    %2708 = vmatpush1.msra.mxu0 0.0
    %2709 = vmatprep.subr.mxu0 0.0
    %2710 = vmatpush1.msra.mxu0 0.0
    %2711 = vmatprep.subr.mxu0 0.0
    %2712 = vmatpush1.msra.mxu0 0.0
    %2713 = vmatprep.subr.mxu0 0.0
    %2714 = vmatpush1.msra.mxu0 0.0
    %2715 = vmatprep.subr.mxu0 0.0
    %2716 = vmatpush1.msra.mxu0 0.0
    %2717 = vmatprep.subr.mxu0 0.0
    %2718 = vmatpush1.msra.mxu0 0.0
    %2719 = vmatprep.subr.mxu0 0.0
    %2720 = vmatpush1.msra.mxu0 0.0
    %2721 = vmatprep.subr.mxu0 0.0
    %2722 = vmatpush1.msra.mxu0 0.0
    %2723 = vmatprep.subr.mxu0 0.0
    %2724 = vmatpush1.msra.mxu0 0.0
    %2725 = vmatprep.subr.mxu0 0.0
    %2726 = vmatpush1.msra.mxu0 0.0
    %2727 = vmatprep.subr.mxu0 0.0
    %2728 = vmatpush1.msra.mxu0 0.0
    %2729 = vmatprep.subr.mxu0 0.0
    %2730 = vmatpush1.msra.mxu0 0.0
    %2731 = vmatprep.subr.mxu0 0.0
    %2732 = vmatpush1.msra.mxu0 0.0
    %2733 = vmatprep.subr.mxu0 0.0
    %2734 = vmatpush1.msra.mxu0 0.0
    %2735 = vmatprep.subr.mxu0 0.0
    %2736 = vmatpush1.msra.mxu0 0.0
    %2737 = vmatprep.subr.mxu0 0.0
    %2738 = vmatpush1.msra.mxu0 0.0
    %2739 = vmatprep.subr.mxu0 0.0
    %2740 = vmatpush1.msra.mxu0 0.0
    %2741 = vmatprep.subr.mxu0 0.0
    %2742 = vmatpush1.msra.mxu0 0.0
    %2743 = vmatprep.subr.mxu0 0.0
    %2744 = vmatpush1.msra.mxu0 0.0
    %2745 = vmatprep.subr.mxu0 0.0
    %2746 = vmatpush1.msra.mxu0 0.0
    %2747 = vmatprep.subr.mxu0 0.0
    %2748 = vmatpush1.msra.mxu0 0.0
    %2749 = vmatprep.subr.mxu0 0.0
    %2750 = vmatpush1.msra.mxu0 0.0
    %2751 = vmatprep.subr.mxu0 0.0
    %2752 = vmatpush1.msra.mxu0 0.0
    %2753 = vmatprep.subr.mxu0 0.0
    %2754 = vmatpush1.msra.mxu0 0.0
    %2755 = vmatprep.subr.mxu0 0.0
    %2756 = vmatpush1.msra.mxu0 0.0
    %2757 = vmatprep.subr.mxu0 0.0
    %2758 = vmatpush1.msra.mxu0 0.0
    %2759 = vmatprep.subr.mxu0 0.0
    %2760 = vmatpush1.msra.mxu0 0.0
    %2761 = vmatprep.mubr.f32.mxu0 0.0
    %2762 = vmatmul.mubr.f32.gmra.mrb[0].mxu0 %v2695
    %v2763 = vpop.f32.mrb[0].mxu0
    %v2764 = vadd.f32 0.0, %v2763
    %v2765 = vpop.f32.mrb[0].mxu0
    %2766 = vdwg.mxu0
    %2768 = vrot.lane.b32.xlu0 %v2764, 32
    %v2769 = vpop.permute.xlu0 %2768
    %2771 = vst.msk [vmem:[#allocation8 + $0x1] sm:$0x1] %vm604, %v2769
    %v2772 = vld [vmem:[%s246] sm:$0xff]
    %v2773 = vld [vmem:[%s242 + $0x8] sm:$0xff]
    %v2774 = vsel %vm78, %v2614, 0
    %2776 = vmatprep.subr.mxu0 0.0
    %2777 = vmatpush1.msra.mxu0 %v232
    %2778 = vmatprep.subr.mxu0 0.0
    %2779 = vmatpush1.msra.mxu0 %v233
    %2780 = vmatprep.subr.mxu0 0.0
    %2781 = vmatpush1.msra.mxu0 %v234
    %2782 = vmatprep.subr.mxu0 0.0
    %2783 = vmatpush1.msra.mxu0 %v235
    %2784 = vmatprep.subr.mxu0 0.0
    %2785 = vmatpush1.msra.mxu0 0.0
    %2786 = vmatprep.subr.mxu0 0.0
    %2787 = vmatpush1.msra.mxu0 0.0
    %2788 = vmatprep.subr.mxu0 0.0
    %2789 = vmatpush1.msra.mxu0 0.0
    %2790 = vmatprep.subr.mxu0 0.0
    %2791 = vmatpush1.msra.mxu0 0.0
    %2792 = vmatprep.subr.mxu0 0.0
    %2793 = vmatpush1.msra.mxu0 0.0
    %2794 = vmatprep.subr.mxu0 0.0
    %2795 = vmatpush1.msra.mxu0 0.0
    %2796 = vmatprep.subr.mxu0 0.0
    %2797 = vmatpush1.msra.mxu0 0.0
    %2798 = vmatprep.subr.mxu0 0.0
    %2799 = vmatpush1.msra.mxu0 0.0
    %2800 = vmatprep.subr.mxu0 0.0
    %2801 = vmatpush1.msra.mxu0 0.0
    %2802 = vmatprep.subr.mxu0 0.0
    %2803 = vmatpush1.msra.mxu0 0.0
    %2804 = vmatprep.subr.mxu0 0.0
    %2805 = vmatpush1.msra.mxu0 0.0
    %2806 = vmatprep.subr.mxu0 0.0
    %2807 = vmatpush1.msra.mxu0 0.0
    %2808 = vmatprep.subr.mxu0 0.0
    %2809 = vmatpush1.msra.mxu0 0.0
    %2810 = vmatprep.subr.mxu0 0.0
    %2811 = vmatpush1.msra.mxu0 0.0
    %2812 = vmatprep.subr.mxu0 0.0
    %2813 = vmatpush1.msra.mxu0 0.0
    %2814 = vmatprep.subr.mxu0 0.0
    %2815 = vmatpush1.msra.mxu0 0.0
    %2816 = vmatprep.subr.mxu0 0.0
    %2817 = vmatpush1.msra.mxu0 0.0
    %2818 = vmatprep.subr.mxu0 0.0
    %2819 = vmatpush1.msra.mxu0 0.0
    %2820 = vmatprep.subr.mxu0 0.0
    %2821 = vmatpush1.msra.mxu0 0.0
    %2822 = vmatprep.subr.mxu0 0.0
    %2823 = vmatpush1.msra.mxu0 0.0
    %2824 = vmatprep.subr.mxu0 0.0
    %2825 = vmatpush1.msra.mxu0 0.0
    %2826 = vmatprep.subr.mxu0 0.0
    %2827 = vmatpush1.msra.mxu0 0.0
    %2828 = vmatprep.subr.mxu0 0.0
    %2829 = vmatpush1.msra.mxu0 0.0
    %2830 = vmatprep.subr.mxu0 0.0
    %2831 = vmatpush1.msra.mxu0 0.0
    %2832 = vmatprep.subr.mxu0 0.0
    %2833 = vmatpush1.msra.mxu0 0.0
    %2834 = vmatprep.subr.mxu0 0.0
    %2835 = vmatpush1.msra.mxu0 0.0
    %2836 = vmatprep.subr.mxu0 0.0
    %2837 = vmatpush1.msra.mxu0 0.0
    %2838 = vmatprep.subr.mxu0 0.0
    %2839 = vmatpush1.msra.mxu0 0.0
    %2840 = vmatprep.mubr.f32.mxu0 0.0
    %2841 = vmatmul.mubr.f32.gmra.mrb[0].mxu0 %v2774
    %v2842 = vpop.f32.mrb[0].mxu0
    %v2843 = vadd.f32 0.0, %v2842
    %v2844 = vpop.f32.mrb[0].mxu0
    %2845 = vdwg.mxu0
    %v2846 = vadd.f32 %v2772, %v2843
    %v2847 = vxor.u32 %v2846, 2147483648
    %v2848 = vmul.f32 %v2847, 1.442695
    %v2849 = vpow.pop %v2848
    %v2850 = vadd.f32 %v2849, 1.0
    %v2851 = vrcp.pop %v2850
    %v2852 = vmul.f32 1.0, %v2851
    %v2853 = vtanh.pop %v2846
    %v2854 = vmul.f32 %v2852, %v2506
    %2856 = vrot.lane.b32.xlu0 %v2853, 64
    %v2857 = vpop.permute.xlu0 %2856
    %v2859 = vmul.f32 %v2852, %v2857
    %2861 = vrot.lane.b32.xlu0 %v2859, 32
    %v2862 = vpop.permute.xlu0 %2861
    %v2864 = vadd.f32 %v2854, %v2862
    %v2865 = vtanh.pop %v2864
    %2867 = vrot.lane.b32.xlu0 %v2865, 64
    %v2868 = vpop.permute.xlu0 %2867
    %v2870 = vmul.f32 %v2852, %v2868
    %v2871 = vsel %vm78, %v2692, 0
    %2873 = vmatprep.subr.mxu0 0.0
    %2874 = vmatpush1.msra.mxu0 %v236
    %2875 = vmatprep.subr.mxu0 0.0
    %2876 = vmatpush1.msra.mxu0 %v237
    %2877 = vmatprep.subr.mxu0 0.0
    %2878 = vmatpush1.msra.mxu0 %v238
    %2879 = vmatprep.subr.mxu0 0.0
    %2880 = vmatpush1.msra.mxu0 %v239
    %2881 = vmatprep.subr.mxu0 0.0
    %2882 = vmatpush1.msra.mxu0 0.0
    %2883 = vmatprep.subr.mxu0 0.0
    %2884 = vmatpush1.msra.mxu0 0.0
    %2885 = vmatprep.subr.mxu0 0.0
    %2886 = vmatpush1.msra.mxu0 0.0
    %2887 = vmatprep.subr.mxu0 0.0
    %2888 = vmatpush1.msra.mxu0 0.0
    %2889 = vmatprep.subr.mxu0 0.0
    %2890 = vmatpush1.msra.mxu0 0.0
    %2891 = vmatprep.subr.mxu0 0.0
    %2892 = vmatpush1.msra.mxu0 0.0
    %2893 = vmatprep.subr.mxu0 0.0
    %2894 = vmatpush1.msra.mxu0 0.0
    %2895 = vmatprep.subr.mxu0 0.0
    %2896 = vmatpush1.msra.mxu0 0.0
    %2897 = vmatprep.subr.mxu0 0.0
    %2898 = vmatpush1.msra.mxu0 0.0
    %2899 = vmatprep.subr.mxu0 0.0
    %2900 = vmatpush1.msra.mxu0 0.0
    %2901 = vmatprep.subr.mxu0 0.0
    %2902 = vmatpush1.msra.mxu0 0.0
    %2903 = vmatprep.subr.mxu0 0.0
    %2904 = vmatpush1.msra.mxu0 0.0
    %2905 = vmatprep.subr.mxu0 0.0
    %2906 = vmatpush1.msra.mxu0 0.0
    %2907 = vmatprep.subr.mxu0 0.0
    %2908 = vmatpush1.msra.mxu0 0.0
    %2909 = vmatprep.subr.mxu0 0.0
    %2910 = vmatpush1.msra.mxu0 0.0
    %2911 = vmatprep.subr.mxu0 0.0
    %2912 = vmatpush1.msra.mxu0 0.0
    %2913 = vmatprep.subr.mxu0 0.0
    %2914 = vmatpush1.msra.mxu0 0.0
    %2915 = vmatprep.subr.mxu0 0.0
    %2916 = vmatpush1.msra.mxu0 0.0
    %2917 = vmatprep.subr.mxu0 0.0
    %2918 = vmatpush1.msra.mxu0 0.0
    %2919 = vmatprep.subr.mxu0 0.0
    %2920 = vmatpush1.msra.mxu0 0.0
    %2921 = vmatprep.subr.mxu0 0.0
    %2922 = vmatpush1.msra.mxu0 0.0
    %2923 = vmatprep.subr.mxu0 0.0
    %2924 = vmatpush1.msra.mxu0 0.0
    %2925 = vmatprep.subr.mxu0 0.0
    %2926 = vmatpush1.msra.mxu0 0.0
    %2927 = vmatprep.subr.mxu0 0.0
    %2928 = vmatpush1.msra.mxu0 0.0
    %2929 = vmatprep.subr.mxu0 0.0
    %2930 = vmatpush1.msra.mxu0 0.0
    %2931 = vmatprep.subr.mxu0 0.0
    %2932 = vmatpush1.msra.mxu0 0.0
    %2933 = vmatprep.subr.mxu0 0.0
    %2934 = vmatpush1.msra.mxu0 0.0
    %2935 = vmatprep.subr.mxu0 0.0
    %2936 = vmatpush1.msra.mxu0 0.0
    %2937 = vmatprep.mubr.f32.mxu0 0.0
    %2938 = vmatmul.mubr.f32.gmra.mrb[0].mxu0 %v2871
    %v2939 = vpop.f32.mrb[0].mxu0
    %v2940 = vadd.f32 0.0, %v2939
    %v2941 = vpop.f32.mrb[0].mxu0
    %2942 = vdwg.mxu0
    %v2943 = vadd.f32 %v2773, %v2940
    %v2944 = vxor.u32 %v2943, 2147483648
    %v2945 = vmul.f32 %v2944, 1.442695
    %v2946 = vpow.pop %v2945
    %v2947 = vadd.f32 %v2946, 1.0
    %v2948 = vrcp.pop %v2947
    %v2949 = vmul.f32 1.0, %v2948
    %v2950 = vtanh.pop %v2943
    %v2951 = vmul.f32 %v2949, %v2603
    %2953 = vrot.lane.b32.xlu0 %v2950, 64
    %v2954 = vpop.permute.xlu0 %2953
    %v2956 = vmul.f32 %v2949, %v2954
    %2958 = vrot.lane.b32.xlu0 %v2956, 32
    %v2959 = vpop.permute.xlu0 %2958
    %v2961 = vadd.f32 %v2951, %v2959
    %v2962 = vtanh.pop %v2961
    %2964 = vrot.lane.b32.xlu0 %v2962, 64
    %v2965 = vpop.permute.xlu0 %2964
    %v2967 = vmul.f32 %v2949, %v2965
    %v2968 = vld [vmem:[#allocation3 + $0x7] sm:$0x1]
    %v2969 = vld [vmem:[#allocation3] sm:$0x1]
    %2971 = vrot.lane.b32.xlu0 %v2870, 32
    %v2972 = vpop.permute.xlu0 %2971
    %v2975 = vsel %vm447, %v2968, 0
    %2977 = vmatprep.subr.mxu0 0.0
    %2978 = vmatpush1.msra.mxu0 %v2972
    %2979 = vmatprep.subr.mxu0 0.0
    %2980 = vmatpush1.msra.mxu0 0.0
    %2981 = vmatprep.subr.mxu0 0.0
    %2982 = vmatpush1.msra.mxu0 0.0
    %2983 = vmatprep.subr.mxu0 0.0
    %2984 = vmatpush1.msra.mxu0 0.0
    %2985 = vmatprep.subr.mxu0 0.0
    %2986 = vmatpush1.msra.mxu0 0.0
    %2987 = vmatprep.subr.mxu0 0.0
    %2988 = vmatpush1.msra.mxu0 0.0
    %2989 = vmatprep.subr.mxu0 0.0
    %2990 = vmatpush1.msra.mxu0 0.0
    %2991 = vmatprep.subr.mxu0 0.0
    %2992 = vmatpush1.msra.mxu0 0.0
    %2993 = vmatprep.subr.mxu0 0.0
    %2994 = vmatpush1.msra.mxu0 0.0
    %2995 = vmatprep.subr.mxu0 0.0
    %2996 = vmatpush1.msra.mxu0 0.0
    %2997 = vmatprep.subr.mxu0 0.0
    %2998 = vmatpush1.msra.mxu0 0.0
    %2999 = vmatprep.subr.mxu0 0.0
    %3000 = vmatpush1.msra.mxu0 0.0
    %3001 = vmatprep.subr.mxu0 0.0
    %3002 = vmatpush1.msra.mxu0 0.0
    %3003 = vmatprep.subr.mxu0 0.0
    %3004 = vmatpush1.msra.mxu0 0.0
    %3005 = vmatprep.subr.mxu0 0.0
    %3006 = vmatpush1.msra.mxu0 0.0
    %3007 = vmatprep.subr.mxu0 0.0
    %3008 = vmatpush1.msra.mxu0 0.0
    %3009 = vmatprep.subr.mxu0 0.0
    %3010 = vmatpush1.msra.mxu0 0.0
    %3011 = vmatprep.subr.mxu0 0.0
    %3012 = vmatpush1.msra.mxu0 0.0
    %3013 = vmatprep.subr.mxu0 0.0
    %3014 = vmatpush1.msra.mxu0 0.0
    %3015 = vmatprep.subr.mxu0 0.0
    %3016 = vmatpush1.msra.mxu0 0.0
    %3017 = vmatprep.subr.mxu0 0.0
    %3018 = vmatpush1.msra.mxu0 0.0
    %3019 = vmatprep.subr.mxu0 0.0
    %3020 = vmatpush1.msra.mxu0 0.0
    %3021 = vmatprep.subr.mxu0 0.0
    %3022 = vmatpush1.msra.mxu0 0.0
    %3023 = vmatprep.subr.mxu0 0.0
    %3024 = vmatpush1.msra.mxu0 0.0
    %3025 = vmatprep.subr.mxu0 0.0
    %3026 = vmatpush1.msra.mxu0 0.0
    %3027 = vmatprep.subr.mxu0 0.0
    %3028 = vmatpush1.msra.mxu0 0.0
    %3029 = vmatprep.subr.mxu0 0.0
    %3030 = vmatpush1.msra.mxu0 0.0
    %3031 = vmatprep.subr.mxu0 0.0
    %3032 = vmatpush1.msra.mxu0 0.0
    %3033 = vmatprep.subr.mxu0 0.0
    %3034 = vmatpush1.msra.mxu0 0.0
    %3035 = vmatprep.subr.mxu0 0.0
    %3036 = vmatpush1.msra.mxu0 0.0
    %3037 = vmatprep.subr.mxu0 0.0
    %3038 = vmatpush1.msra.mxu0 0.0
    %3039 = vmatprep.subr.mxu0 0.0
    %3040 = vmatpush1.msra.mxu0 0.0
    %3041 = vmatprep.mubr.f32.mxu0 0.0
    %3042 = vmatmul.mubr.f32.gmra.mrb[0].mxu0 %v2975
    %v3043 = vpop.f32.mrb[0].mxu0
    %v3044 = vadd.f32 0.0, %v3043
    %v3045 = vpop.f32.mrb[0].mxu0
    %3046 = vdwg.mxu0
    %3047 = vst.msk [vmem:[#allocation8 + $0x7] sm:$0x1] %vm521, %v3044
    %3049 = vrot.lane.b32.xlu0 %v2967, 32
    %v3050 = vpop.permute.xlu0 %3049
    %v3053 = vsel %vm447, %v2969, 0
    %3055 = vmatprep.subr.mxu0 0.0
    %3056 = vmatpush1.msra.mxu0 %v3050
    %3057 = vmatprep.subr.mxu0 0.0
    %3058 = vmatpush1.msra.mxu0 0.0
    %3059 = vmatprep.subr.mxu0 0.0
    %3060 = vmatpush1.msra.mxu0 0.0
    %3061 = vmatprep.subr.mxu0 0.0
    %3062 = vmatpush1.msra.mxu0 0.0
    %3063 = vmatprep.subr.mxu0 0.0
    %3064 = vmatpush1.msra.mxu0 0.0
    %3065 = vmatprep.subr.mxu0 0.0
    %3066 = vmatpush1.msra.mxu0 0.0
    %3067 = vmatprep.subr.mxu0 0.0
    %3068 = vmatpush1.msra.mxu0 0.0
    %3069 = vmatprep.subr.mxu0 0.0
    %3070 = vmatpush1.msra.mxu0 0.0
    %3071 = vmatprep.subr.mxu0 0.0
    %3072 = vmatpush1.msra.mxu0 0.0
    %3073 = vmatprep.subr.mxu0 0.0
    %3074 = vmatpush1.msra.mxu0 0.0
    %3075 = vmatprep.subr.mxu0 0.0
    %3076 = vmatpush1.msra.mxu0 0.0
    %3077 = vmatprep.subr.mxu0 0.0
    %3078 = vmatpush1.msra.mxu0 0.0
    %3079 = vmatprep.subr.mxu0 0.0
    %3080 = vmatpush1.msra.mxu0 0.0
    %3081 = vmatprep.subr.mxu0 0.0
    %3082 = vmatpush1.msra.mxu0 0.0
    %3083 = vmatprep.subr.mxu0 0.0
    %3084 = vmatpush1.msra.mxu0 0.0
    %3085 = vmatprep.subr.mxu0 0.0
    %3086 = vmatpush1.msra.mxu0 0.0
    %3087 = vmatprep.subr.mxu0 0.0
    %3088 = vmatpush1.msra.mxu0 0.0
    %3089 = vmatprep.subr.mxu0 0.0
    %3090 = vmatpush1.msra.mxu0 0.0
    %3091 = vmatprep.subr.mxu0 0.0
    %3092 = vmatpush1.msra.mxu0 0.0
    %3093 = vmatprep.subr.mxu0 0.0
    %3094 = vmatpush1.msra.mxu0 0.0
    %3095 = vmatprep.subr.mxu0 0.0
    %3096 = vmatpush1.msra.mxu0 0.0
    %3097 = vmatprep.subr.mxu0 0.0
    %3098 = vmatpush1.msra.mxu0 0.0
    %3099 = vmatprep.subr.mxu0 0.0
    %3100 = vmatpush1.msra.mxu0 0.0
    %3101 = vmatprep.subr.mxu0 0.0
    %3102 = vmatpush1.msra.mxu0 0.0
    %3103 = vmatprep.subr.mxu0 0.0
    %3104 = vmatpush1.msra.mxu0 0.0
    %3105 = vmatprep.subr.mxu0 0.0
    %3106 = vmatpush1.msra.mxu0 0.0
    %3107 = vmatprep.subr.mxu0 0.0
    %3108 = vmatpush1.msra.mxu0 0.0
    %3109 = vmatprep.subr.mxu0 0.0
    %3110 = vmatpush1.msra.mxu0 0.0
    %3111 = vmatprep.subr.mxu0 0.0
    %3112 = vmatpush1.msra.mxu0 0.0
    %3113 = vmatprep.subr.mxu0 0.0
    %3114 = vmatpush1.msra.mxu0 0.0
    %3115 = vmatprep.subr.mxu0 0.0
    %3116 = vmatpush1.msra.mxu0 0.0
    %3117 = vmatprep.subr.mxu0 0.0
    %3118 = vmatpush1.msra.mxu0 0.0
    %3119 = vmatprep.mubr.f32.mxu0 0.0
    %3120 = vmatmul.mubr.f32.gmra.mrb[0].mxu0 %v3053
    %v3121 = vpop.f32.mrb[0].mxu0
    %v3122 = vadd.f32 0.0, %v3121
    %v3123 = vpop.f32.mrb[0].mxu0
    %3124 = vdwg.mxu0
    %3126 = vrot.lane.b32.xlu0 %v3122, 32
    %v3127 = vpop.permute.xlu0 %3126
    %3129 = vst.msk [vmem:[#allocation8] sm:$0x1] %vm604, %v3127
    %v3130 = vld [vmem:[#allocation3] sm:$0xff]
    %v3131 = vsel %vm447, %v3130, 0.0
    %3132 = vadd.xlane.f32.xlu0 %v3131
    %v3133 = vpop.xlane.xlu0 %3132
    %v3134 = vmax.f32 %v3133, 1e-09
    %v3135 = vld [vmem:[#allocation8] sm:$0xff]
    %v3136 = vrcp.pop %v3134
    %v3137 = vmul.f32 %v3135, %v3136
    %vm3138 = vcmask 523264
    %3139 = vst.msk [vmem:[#allocation8] sm:$0xff] %vm3138, %v3137
    // Predicated region
    $region34: #{tpu_custom_call.1} parent=1 // pred_check
      _
    $region35: #{tpu_custom_call.1} parent=1 // pred_check_branch
      %3141 = sbr.rel (0) target = $region37
    $region36: #{tpu_custom_call.1} parent=1 // pred_region
      %s3143 = ssub.s32 128, 128
      %3144 = vsyncadd [#allocation5], %s3143
      %s3146 = sshll.u32 [#allocation8], 4
      %s3147 = int_to_ptr.vmem [resolvable:$true] %s3146
      %3149 = dma.vmem_to_hbm [thread:$0]  %s3147, 128, %s6, [#allocation5]
    $region37: #{tpu_custom_call.1} parent=1 // pred_fallthru
      _
    // Predicated region
    $region38: #{tpu_custom_call.1} parent=1 // pred_check
      _
    $region39: #{tpu_custom_call.1} parent=1 // pred_check_branch
      %3151 = sbr.rel (0) target = $region41
    $region40: #{tpu_custom_call.1} parent=1 // pred_region
      %3152 = dma.done [#allocation5], 128
    $region41: #{tpu_custom_call.1} parent=1 // pred_fallthru
      _
    %3153 = vsyncpa [#allocation4], 1
    %3154 = vsyncpa [#allocation7], 1
    %3155 = vsyncpa [#allocation5], 1

</llo_original>
